<compile_context>
chip_gen: v6e
topology: v6e:2x2x1
jax: 0.10.0
libtpu: 0.0.40
codegen_flags: <defaults>
</compile_context>

<pallas_src>
import jax
import jax.numpy as jnp
from jax import lax
from jax.experimental import pallas as pl
from jax.experimental.pallas import tpu as pltpu


def lstm_seq_kernel(keep_ref, emb_ref, h0_ref, c0_ref, w_ref, b_ref,
                    h_seq_ref, c_fin_ref, h_scr, c_scr, xh_scr):
    """One time-tile (TB steps) of the fused LSTM (grid = (batch_blocks, T/TB)).

    keep_ref  : (TB, Bb, 1) f32    1.0 where token == 0 -> keep previous state
    emb_ref   : (TB, Bb, H) bf16   embedded (post-dropout) inputs
    h0_ref    : (Bb, H)     f32    initial hidden (read at first time tile)
    c0_ref    : (Bb, H)     f32    initial cell
    w_ref     : (2H, 4H)    bf16   [W_ih.T ; W_hh.T]  (VMEM-resident, constant)
    b_ref     : (1, 4H)     f32    b_ih + b_hh        (VMEM-resident, constant)
    h_seq_ref : (TB, Bb, H) f32    hidden after each step of this tile (output)
    c_fin_ref : (Bb, H)     f32    final cell (resident across t, written once)
    h_scr/c_scr : (Bb, H)   f32    carried state (scratch persists over grid)
    xh_scr    : (Bb, 2H)    bf16   staged [x, h_prev] MXU operand (carried)
    """
    tb = pl.program_id(1)
    H = h_scr.shape[-1]
    TB = emb_ref.shape[0]

    @pl.when(tb == 0)
    def _():
        h_scr[...] = h0_ref[...]
        c_scr[...] = c0_ref[...]
        # Prime the MXU operand's h-half; later steps refresh it in their
        # epilogue so the cast/store is off the per-step critical path.
        xh_scr[:, H:] = h0_ref[...].astype(jnp.bfloat16)

    def step(t, carry):
        h_prev = h_scr[...]
        c_prev = c_scr[...]

        # Only the x-half needs staging here; h-half was staged last epilogue.
        xh_scr[:, :H] = emb_ref[t]
        gates = jnp.dot(xh_scr[...], w_ref[...],
                        preferred_element_type=jnp.float32) + b_ref[...]

        # PyTorch LSTMCell gate order: [input, forget, cell(g), output]; f32.
        i_g = jax.nn.sigmoid(gates[:, 0 * H:1 * H])
        f_g = jax.nn.sigmoid(gates[:, 1 * H:2 * H])
        g_g = jnp.tanh(gates[:, 2 * H:3 * H])
        o_g = jax.nn.sigmoid(gates[:, 3 * H:4 * H])

        c_new = f_g * c_prev + i_g * g_g
        h_new = o_g * jnp.tanh(c_new)

        # mask == 0 (token id literally 0, as in the PyTorch module): keep prev.
        keep_prev = keep_ref[t] != 0.0                 # (Bb, 1) -> broadcasts
        h_next = jnp.where(keep_prev, h_prev, h_new)
        c_next = jnp.where(keep_prev, c_prev, c_new)

        h_scr[...] = h_next
        c_scr[...] = c_next
        # Epilogue: stage next step's MXU h-operand (overlaps with stores/DMA).
        xh_scr[:, H:] = h_next.astype(jnp.bfloat16)
        h_seq_ref[t] = h_next
        return carry

    lax.fori_loop(0, TB, step, 0, unroll=True)
    # Final-cell output block is resident across the t axis (constant
    # index_map), so this costs one HBM writeback per batch block.
    c_fin_ref[...] = c_scr[...]


def _padded_vmem_bytes(shape, dtype):
    """Conservative VMEM footprint of one buffer (pads last dims to (16,128))."""
    d = jnp.dtype(dtype)
    s = list(shape)
    if len(s) >= 1:
        s[-1] = -(-s[-1] // 128) * 128
    if len(s) >= 2:
        s[-2] = -(-s[-2] // 16) * 16
    n = 1
    for v in s:
        n *= v
    return n * d.itemsize


def encoder_lstm_sequence(tokens, pre_hidden, pre_cell, params, *,
                          block_b=None, block_t=8):
    """Apply EncoderLSTM.forward over every row of `tokens` in ONE pallas_call.

    tokens     : (T, B) int32
    pre_hidden : (B, H) f32
    pre_cell   : (B, H) f32
    returns (h_seq, c_final):
      h_seq   : (T, B, H) f32  hidden after each timestep
      c_final : (B, H)    f32  cell state after the last timestep
    """
    emb_table = params["embedding"]        # (dict_size, H) f32, PAD row zeroed
    w_cat = params["w_cat_bf16"]           # (2H, 4H) bf16 == [W_ih.T ; W_hh.T]
    bias = params["bias"]                  # (1, 4H)  f32  == b_ih + b_hh

    T, B = tokens.shape
    H = pre_hidden.shape[-1]

    if block_b is None:
        # MXU-row-sized batch blocks; prefer >=2 blocks so both TensorCores
        # get work on v7x.  Must divide B; multiples of 16 keep the bf16 xh
        # staging fully sublane-packed.
        target = 256 if B >= 512 else max(8, B // 2)
        block_b = B
        for cand in (256, 128, 64, 32, 16, 8):
            if cand <= target and B % cand == 0:
                block_b = cand
                break
    assert B % block_b == 0, "block_b must divide batch"

    block_t = max(1, min(block_t, T))

    # Embedding lookup for the whole sequence (one XLA gather); streamed to the
    # kernel as bf16 to halve activation DMA bytes.
    # TODO(synk): could be fused in-kernel via a manual DMA row gather.
    embedded = emb_table[tokens].astype(jnp.bfloat16)            # (T, B, H)
    # TODO(synk): nn.Dropout(p=0.1) is stochastic; treated as identity (eval).

    # Precomputed keep-mask (1.0 == token id 0 -> keep previous state).
    keep = (tokens == 0).astype(jnp.float32)[:, :, None]         # (T, B, 1)

    # Pad T to a multiple of block_t with no-op steps (keep=1, zero input).
    T_pad = pl.cdiv(T, block_t) * block_t
    if T_pad != T:
        pad = T_pad - T
        embedded = jnp.concatenate(
            [embedded, jnp.zeros((pad, B, H), embedded.dtype)], axis=0)
        keep = jnp.concatenate(
            [keep, jnp.ones((pad, B, 1), keep.dtype)], axis=0)

    grid = (B // block_b, T_pad // block_t)

    in_specs = [
        pl.BlockSpec((block_t, block_b, 1), lambda b, t: (t, b, 0)),  # keep mask
        pl.BlockSpec((block_t, block_b, H), lambda b, t: (t, b, 0)),  # embedded
        pl.BlockSpec((block_b, H), lambda b, t: (b, 0)),              # h0
        pl.BlockSpec((block_b, H), lambda b, t: (b, 0)),              # c0
        pl.BlockSpec((2 * H, 4 * H), lambda b, t: (0, 0)),            # weights
        pl.BlockSpec((1, 4 * H), lambda b, t: (0, 0)),                # bias
    ]
    out_specs = (
        pl.BlockSpec((block_t, block_b, H), lambda b, t: (t, b, 0)),  # h_seq
        pl.BlockSpec((block_b, H), lambda b, t: (b, 0)),              # c_final
    )
    scratch_shapes = [
        pltpu.VMEM((block_b, H), jnp.float32),        # h carry
        pltpu.VMEM((block_b, H), jnp.float32),        # c carry
        pltpu.VMEM((block_b, 2 * H), jnp.bfloat16),   # [x, h] MXU operand
    ]

    # VMEM budget from the actual (padded) buffers: resident weights/bias,
    # double-buffered streamed blocks, resident scratch.  No 32 MiB floor
    # (v7x: 64 MiB physical / 32 MiB default scoped).
    resident = (_padded_vmem_bytes((2 * H, 4 * H), jnp.bfloat16)
                + _padded_vmem_bytes((1, 4 * H), jnp.float32))
    stream_in = (_padded_vmem_bytes((block_t, block_b, 1), jnp.float32)
                 + _padded_vmem_bytes((block_t, block_b, H), jnp.bfloat16)
                 + 2 * _padded_vmem_bytes((block_b, H), jnp.float32))
    stream_out = (_padded_vmem_bytes((block_t, block_b, H), jnp.float32)
                  + _padded_vmem_bytes((block_b, H), jnp.float32))
    scratch_b = (2 * _padded_vmem_bytes((block_b, H), jnp.float32)
                 + _padded_vmem_bytes((block_b, 2 * H), jnp.bfloat16))
    budget = 2 * resident + 2 * (stream_in + stream_out) + scratch_b
    vmem_limit = max(int(1.5 * budget) + (2 << 20), 4 << 20)

    h_seq, c_final = pl.pallas_call(
        lstm_seq_kernel,
        out_shape=(jax.ShapeDtypeStruct((T_pad, B, H), jnp.float32),
                   jax.ShapeDtypeStruct((B, H), jnp.float32)),
        grid_spec=pltpu.PrefetchScalarGridSpec(
            num_scalar_prefetch=0, grid=grid,
            in_specs=in_specs, out_specs=out_specs,
            scratch_shapes=scratch_shapes),
        compiler_params=pltpu.CompilerParams(
            dimension_semantics=("parallel", "arbitrary"),
            vmem_limit_bytes=vmem_limit),
    )(keep, embedded, pre_hidden, pre_cell, w_cat, bias)

    if T_pad != T:
        h_seq = h_seq[:T]
    return h_seq, c_final


def encoder_lstm_forward(input_, pre_hidden, pre_cell, params):
    """Exact EncoderLSTM.forward interface: one masked LSTMCell step."""
    h_seq, c_final = encoder_lstm_sequence(input_[None, :], pre_hidden,
                                           pre_cell, params, block_t=1)
    return h_seq[0], c_final


def init_params(key, dict_size, hidden_size, pad_idx):
    k_emb, k_wih, k_whh, k_bih, k_bhh = jax.random.split(key, 5)
    emb = jax.random.normal(k_emb, (dict_size, hidden_size), jnp.float32)
    emb = emb.at[pad_idx].set(0.0)           # nn.Embedding(padding_idx=PAD)

    bound = 1.0 / jnp.sqrt(hidden_size)
    w_ih = jax.random.uniform(k_wih, (4 * hidden_size, hidden_size),
                              jnp.float32, -bound, bound)
    w_hh = jax.random.uniform(k_whh, (4 * hidden_size, hidden_size),
                              jnp.float32, -bound, bound)
    b_ih = jax.random.uniform(k_bih, (4 * hidden_size,), jnp.float32, -bound, bound)
    b_hh = jax.random.uniform(k_bhh, (4 * hidden_size,), jnp.float32, -bound, bound)

    # Fused MXU weight: [x, h] @ [W_ih.T ; W_hh.T] == x @ W_ih.T + h @ W_hh.T.
    w_cat = jnp.concatenate([w_ih.T, w_hh.T], axis=0)            # (2H, 4H)
    return {
        "embedding": emb,
        "w_cat_bf16": w_cat.astype(jnp.bfloat16),
        "bias": (b_ih + b_hh).reshape(1, 4 * hidden_size),
    }


def reference_step(tok, x_bf16, h_prev, c_prev, params):
    """Pure-JAX EncoderLSTM.forward with the same bf16-MXU / f32-accum numerics."""
    xh = jnp.concatenate([x_bf16, h_prev.astype(jnp.bfloat16)], axis=-1)
    gates = jnp.dot(xh, params["w_cat_bf16"],
                    preferred_element_type=jnp.float32) + params["bias"]
    H = h_prev.shape[-1]
    i = jax.nn.sigmoid(gates[:, :H])
    f = jax.nn.sigmoid(gates[:, H:2 * H])
    g = jnp.tanh(gates[:, 2 * H:3 * H])
    o = jax.nn.sigmoid(gates[:, 3 * H:])
    c_new = f * c_prev + i * g
    h_new = o * jnp.tanh(c_new)
    keep = (tok == 0)[:, None]
    return jnp.where(keep, h_prev, h_new), jnp.where(keep, c_prev, c_new)


def reference_sequence(tokens, pre_hidden, pre_cell, params):
    emb = params["embedding"][tokens].astype(jnp.bfloat16)
    h, c = pre_hidden, pre_cell
    hs, cs = [], []
    for t in range(tokens.shape[0]):
        h, c = reference_step(tokens[t], emb[t], h, c, params)
        hs.append(h)
        cs.append(c)
    return jnp.stack(hs), jnp.stack(cs)


if __name__ == "__main__":
    PAD = 0
    batch = 32          # 2 batch blocks of 16 -> feeds both TCs on v7x
    hidden_size = 128   # lane-aligned -> lane-dense gate slabs and outputs
    dict_size = 64
    seq_len = 20        # NOT a multiple of block_t -> exercises time padding

    key = jax.random.PRNGKey(0)
    k_params, k_tok, k_h, k_c = jax.random.split(key, 4)

    params = init_params(k_params, dict_size, hidden_size, PAD)

    tokens = jax.random.randint(k_tok, (seq_len, batch), 0, dict_size, jnp.int32)
    tokens = tokens.at[0, 0].set(PAD)       # exercise the PAD mask
    tokens = tokens.at[3, :7].set(PAD)
    tokens = tokens.at[11, 5:9].set(PAD)
    pre_hidden = jax.random.normal(k_h, (batch, hidden_size), jnp.float32)
    pre_cell = jax.random.normal(k_c, (batch, hidden_size), jnp.float32)

    # (1) Fused full-sequence kernel (time-tiled, weights VMEM-resident).
    h_seq, c_fin = encoder_lstm_sequence(tokens, pre_hidden, pre_cell, params,
                                         block_b=16, block_t=8)
    jax.block_until_ready((h_seq, c_fin))

    h_ref, c_ref = reference_sequence(tokens, pre_hidden, pre_cell, params)
    assert h_seq.shape == (seq_len, batch, hidden_size)
    assert jnp.allclose(h_seq, h_ref, atol=2e-3, rtol=2e-3), \
        float(jnp.max(jnp.abs(h_seq - h_ref)))
    assert jnp.allclose(c_fin, c_ref[-1], atol=2e-3, rtol=2e-3), \
        float(jnp.max(jnp.abs(c_fin - c_ref[-1])))

    # (2) Single-step module interface (EncoderLSTM.forward) via the same kernel.
    h1, c1 = encoder_lstm_forward(tokens[0], pre_hidden, pre_cell, params)
    jax.block_until_ready((h1, c1))
    emb0 = params["embedding"][tokens[0]].astype(jnp.bfloat16)
    h1_ref, c1_ref = reference_step(tokens[0], emb0, pre_hidden, pre_cell, params)
    assert jnp.allclose(h1, h1_ref, atol=2e-3, rtol=2e-3)
    assert jnp.allclose(c1, c1_ref, atol=2e-3, rtol=2e-3)

    print("KERNEL_OK")
</pallas_src>

<mosaic_0001>
module attributes {stable_mosaic.version = 11 : i64} {
  func.func @lstm_seq_kernel(%arg0: i32, %arg1: i32, %arg2: memref<8x16x1xf32, #tpu.memory_space<vmem>>, %arg3: memref<8x16x128xbf16, #tpu.memory_space<vmem>>, %arg4: memref<16x128xf32, #tpu.memory_space<vmem>>, %arg5: memref<16x128xf32, #tpu.memory_space<vmem>>, %arg6: memref<256x512xbf16, #tpu.memory_space<vmem>>, %arg7: memref<1x512xf32, #tpu.memory_space<vmem>>, %arg8: memref<8x16x128xf32, #tpu.memory_space<vmem>>, %arg9: memref<16x128xf32, #tpu.memory_space<vmem>>, %arg10: memref<16x128xf32, #tpu.memory_space<vmem>>, %arg11: memref<16x128xf32, #tpu.memory_space<vmem>>, %arg12: memref<16x256xbf16, #tpu.memory_space<vmem>>) attributes {dimension_semantics = [#tpu.dimension_semantics<parallel>, #tpu.dimension_semantics<arbitrary>], iteration_bounds = array<i64: 2, 3>, scalar_prefetch = 0 : i64, scratch_operands = 3 : i64, tpu.core_type = #tpu.core_type<tc>, window_params = [{transform_indices = @transform_0, window_bounds = array<i64: 8, 16, 1>}, {transform_indices = @transform_1, window_bounds = array<i64: 8, 16, 128>}, {transform_indices = @transform_2, window_bounds = array<i64: 16, 128>}, {transform_indices = @transform_3, window_bounds = array<i64: 16, 128>}, {pipeline_mode = #tpu.pipeline_mode<synchronous>, transform_indices = @transform_4, window_bounds = array<i64: 256, 512>}, {pipeline_mode = #tpu.pipeline_mode<synchronous>, transform_indices = @transform_5, window_bounds = array<i64: 1, 512>}, {transform_indices = @transform_6, window_bounds = array<i64: 8, 16, 128>}, {transform_indices = @transform_7, window_bounds = array<i64: 16, 128>}]} {
    %c0_i32 = arith.constant 0 : i32
    %0 = arith.cmpi eq, %arg1, %c0_i32 : i32
    %1 = arith.extui %0 : i1 to i32
    %c0_i32_0 = arith.constant 0 : i32
    %2 = arith.cmpi ne, %1, %c0_i32_0 : i32
    scf.if %2 {
      %c0_235 = arith.constant 0 : index
      %c0_236 = arith.constant 0 : index
      %453 = vector.load %arg4[%c0_235, %c0_236] : memref<16x128xf32, #tpu.memory_space<vmem>>, vector<16x128xf32>
      %c0_237 = arith.constant 0 : index
      %c0_238 = arith.constant 0 : index
      %454 = vector.load %arg10[%c0_237, %c0_238] : memref<16x128xf32, #tpu.memory_space<vmem>>, vector<16x128xf32>
      tpu.vector_store %arg10[%c0_237, %c0_238], %453 {strides = array<i32>} : memref<16x128xf32, #tpu.memory_space<vmem>>, vector<16x128xf32>,
      %c0_239 = arith.constant 0 : index
      %c0_240 = arith.constant 0 : index
      %455 = vector.load %arg5[%c0_239, %c0_240] : memref<16x128xf32, #tpu.memory_space<vmem>>, vector<16x128xf32>
      %c0_241 = arith.constant 0 : index
      %c0_242 = arith.constant 0 : index
      %456 = vector.load %arg11[%c0_241, %c0_242] : memref<16x128xf32, #tpu.memory_space<vmem>>, vector<16x128xf32>
      tpu.vector_store %arg11[%c0_241, %c0_242], %455 {strides = array<i32>} : memref<16x128xf32, #tpu.memory_space<vmem>>, vector<16x128xf32>,
      %c0_243 = arith.constant 0 : index
      %c0_244 = arith.constant 0 : index
      %457 = vector.load %arg4[%c0_243, %c0_244] : memref<16x128xf32, #tpu.memory_space<vmem>>, vector<16x128xf32>
      %458 = arith.truncf %457 : vector<16x128xf32> to vector<16x128xbf16>
      %c0_245 = arith.constant 0 : index
      %c128_246 = arith.constant 128 : index
      %459 = vector.load %arg12[%c0_245, %c128_246] : memref<16x256xbf16, #tpu.memory_space<vmem>>, vector<16x128xbf16>
      tpu.vector_store %arg12[%c0_245, %c128_246], %458 {strides = array<i32>} : memref<16x256xbf16, #tpu.memory_space<vmem>>, vector<16x128xbf16>,
    } else {
    }
    %c0_i32_1 = arith.constant 0 : i32
    %c0 = arith.constant 0 : index
    %c0_2 = arith.constant 0 : index
    %3 = vector.load %arg10[%c0, %c0_2] : memref<16x128xf32, #tpu.memory_space<vmem>>, vector<16x128xf32>
    %c0_3 = arith.constant 0 : index
    %c0_4 = arith.constant 0 : index
    %4 = vector.load %arg11[%c0_3, %c0_4] : memref<16x128xf32, #tpu.memory_space<vmem>>, vector<16x128xf32>
    %5 = arith.index_cast %c0_i32_1 : i32 to index
    %c0_5 = arith.constant 0 : index
    %c0_6 = arith.constant 0 : index
    %6 = vector.load %arg3[%5, %c0_5, %c0_6] : memref<8x16x128xbf16, #tpu.memory_space<vmem>>, vector<1x16x128xbf16>
    %7 = vector.shape_cast %6 : vector<1x16x128xbf16> to vector<16x128xbf16>
    %c0_7 = arith.constant 0 : index
    %c0_8 = arith.constant 0 : index
    %8 = vector.load %arg12[%c0_7, %c0_8] : memref<16x256xbf16, #tpu.memory_space<vmem>>, vector<16x128xbf16>
    tpu.vector_store %arg12[%c0_7, %c0_8], %7 {strides = array<i32>} : memref<16x256xbf16, #tpu.memory_space<vmem>>, vector<16x128xbf16>,
    %c0_9 = arith.constant 0 : index
    %c0_10 = arith.constant 0 : index
    %9 = vector.load %arg12[%c0_9, %c0_10] : memref<16x256xbf16, #tpu.memory_space<vmem>>, vector<16x256xbf16>
    %c0_11 = arith.constant 0 : index
    %c0_12 = arith.constant 0 : index
    %10 = vector.load %arg6[%c0_11, %c0_12] : memref<256x512xbf16, #tpu.memory_space<vmem>>, vector<256x512xbf16>
    %cst = arith.constant dense<0.000000e+00> : vector<16x512xf32>
    %11 = tpu.matmul %9, %10, %cst {dimension_numbers = #tpu.dot_dimension_numbers<[1], [0], [0], [1], [0, 0, 1, 1], [], []>} : vector<16x256xbf16>, vector<256x512xbf16>, vector<16x512xf32> -> vector<16x512xf32>
    %c0_13 = arith.constant 0 : index
    %c0_14 = arith.constant 0 : index
    %12 = vector.load %arg7[%c0_13, %c0_14] : memref<1x512xf32, #tpu.memory_space<vmem>>, vector<1x512xf32>
    %13 = vector.broadcast %12 : vector<1x512xf32> to vector<16x512xf32>
    %14 = arith.addf %11, %13 : vector<16x512xf32>
    %15 = vector.extract_strided_slice %14 {offsets = [0, 0], sizes = [16, 128], strides = [1, 1]} : vector<16x512xf32> to vector<16x128xf32>
    %16 = arith.negf %15 : vector<16x128xf32>
    %17 = math.exp %16 : vector<16x128xf32>
    %cst_15 = arith.constant 1.000000e+00 : f32
    %18 = vector.broadcast %cst_15 : f32 to vector<16x128xf32>
    %19 = arith.addf %18, %17 : vector<16x128xf32>
    %20 = arith.divf %18, %19 : vector<16x128xf32>
    %21 = vector.extract_strided_slice %14 {offsets = [0, 128], sizes = [16, 128], strides = [1, 1]} : vector<16x512xf32> to vector<16x128xf32>
    %22 = arith.negf %21 : vector<16x128xf32>
    %23 = math.exp %22 : vector<16x128xf32>
    %cst_16 = arith.constant 1.000000e+00 : f32
    %24 = vector.broadcast %cst_16 : f32 to vector<16x128xf32>
    %25 = arith.addf %24, %23 : vector<16x128xf32>
    %26 = arith.divf %24, %25 : vector<16x128xf32>
    %27 = vector.extract_strided_slice %14 {offsets = [0, 256], sizes = [16, 128], strides = [1, 1]} : vector<16x512xf32> to vector<16x128xf32>
    %28 = math.tanh %27 : vector<16x128xf32>
    %29 = vector.extract_strided_slice %14 {offsets = [0, 384], sizes = [16, 128], strides = [1, 1]} : vector<16x512xf32> to vector<16x128xf32>
    %30 = arith.negf %29 : vector<16x128xf32>
    %31 = math.exp %30 : vector<16x128xf32>
    %cst_17 = arith.constant 1.000000e+00 : f32
    %32 = vector.broadcast %cst_17 : f32 to vector<16x128xf32>
    %33 = arith.addf %32, %31 : vector<16x128xf32>
    %34 = arith.divf %32, %33 : vector<16x128xf32>
    %35 = arith.mulf %26, %4 : vector<16x128xf32>
    %36 = arith.mulf %20, %28 : vector<16x128xf32>
    %37 = arith.addf %35, %36 : vector<16x128xf32>
    %38 = math.tanh %37 : vector<16x128xf32>
    %39 = arith.mulf %34, %38 : vector<16x128xf32>
    %40 = arith.index_cast %c0_i32_1 : i32 to index
    %c0_18 = arith.constant 0 : index
    %c0_19 = arith.constant 0 : index
    %41 = vector.load %arg2[%40, %c0_18, %c0_19] : memref<8x16x1xf32, #tpu.memory_space<vmem>>, vector<1x16x1xf32>
    %42 = vector.shape_cast %41 : vector<1x16x1xf32> to vector<16x1xf32>
    %cst_20 = arith.constant 0.000000e+00 : f32
    %43 = vector.broadcast %cst_20 : f32 to vector<16x1xf32>
    %44 = arith.cmpf one, %42, %43 : vector<16x1xf32>
    %45 = vector.shape_cast %44 : vector<16x1xi1> to vector<16x1xi1>
    %46 = vector.broadcast %45 : vector<16x1xi1> to vector<16x128xi1>
    %47 = arith.select %46, %3, %39 : vector<16x128xi1>, vector<16x128xf32>
    %48 = vector.shape_cast %44 : vector<16x1xi1> to vector<16x1xi1>
    %49 = vector.broadcast %48 : vector<16x1xi1> to vector<16x128xi1>
    %50 = arith.select %49, %4, %37 : vector<16x128xi1>, vector<16x128xf32>
    %c0_21 = arith.constant 0 : index
    %c0_22 = arith.constant 0 : index
    %51 = vector.load %arg10[%c0_21, %c0_22] : memref<16x128xf32, #tpu.memory_space<vmem>>, vector<16x128xf32>
    tpu.vector_store %arg10[%c0_21, %c0_22], %47 {strides = array<i32>} : memref<16x128xf32, #tpu.memory_space<vmem>>, vector<16x128xf32>,
    %c0_23 = arith.constant 0 : index
    %c0_24 = arith.constant 0 : index
    %52 = vector.load %arg11[%c0_23, %c0_24] : memref<16x128xf32, #tpu.memory_space<vmem>>, vector<16x128xf32>
    tpu.vector_store %arg11[%c0_23, %c0_24], %50 {strides = array<i32>} : memref<16x128xf32, #tpu.memory_space<vmem>>, vector<16x128xf32>,
    %53 = arith.truncf %47 : vector<16x128xf32> to vector<16x128xbf16>
    %c0_25 = arith.constant 0 : index
    %c128 = arith.constant 128 : index
    %54 = vector.load %arg12[%c0_25, %c128] : memref<16x256xbf16, #tpu.memory_space<vmem>>, vector<16x128xbf16>
    tpu.vector_store %arg12[%c0_25, %c128], %53 {strides = array<i32>} : memref<16x256xbf16, #tpu.memory_space<vmem>>, vector<16x128xbf16>,
    %55 = arith.index_cast %c0_i32_1 : i32 to index
    %c0_26 = arith.constant 0 : index
    %c0_27 = arith.constant 0 : index
    %56 = vector.load %arg8[%55, %c0_26, %c0_27] : memref<8x16x128xf32, #tpu.memory_space<vmem>>, vector<1x16x128xf32>
    %57 = vector.shape_cast %56 : vector<1x16x128xf32> to vector<16x128xf32>
    %58 = vector.shape_cast %47 : vector<16x128xf32> to vector<1x16x128xf32>
    tpu.vector_store %arg8[%55, %c0_26, %c0_27], %58 {strides = array<i32>} : memref<8x16x128xf32, #tpu.memory_space<vmem>>, vector<1x16x128xf32>,
    %c1_i32 = arith.constant 1 : i32
    %c0_28 = arith.constant 0 : index
    %c0_29 = arith.constant 0 : index
    %59 = vector.load %arg10[%c0_28, %c0_29] : memref<16x128xf32, #tpu.memory_space<vmem>>, vector<16x128xf32>
    %c0_30 = arith.constant 0 : index
    %c0_31 = arith.constant 0 : index
    %60 = vector.load %arg11[%c0_30, %c0_31] : memref<16x128xf32, #tpu.memory_space<vmem>>, vector<16x128xf32>
    %61 = arith.index_cast %c1_i32 : i32 to index
    %c0_32 = arith.constant 0 : index
    %c0_33 = arith.constant 0 : index
    %62 = vector.load %arg3[%61, %c0_32, %c0_33] : memref<8x16x128xbf16, #tpu.memory_space<vmem>>, vector<1x16x128xbf16>
    %63 = vector.shape_cast %62 : vector<1x16x128xbf16> to vector<16x128xbf16>
    %c0_34 = arith.constant 0 : index
    %c0_35 = arith.constant 0 : index
    %64 = vector.load %arg12[%c0_34, %c0_35] : memref<16x256xbf16, #tpu.memory_space<vmem>>, vector<16x128xbf16>
    tpu.vector_store %arg12[%c0_34, %c0_35], %63 {strides = array<i32>} : memref<16x256xbf16, #tpu.memory_space<vmem>>, vector<16x128xbf16>,
    %c0_36 = arith.constant 0 : index
    %c0_37 = arith.constant 0 : index
    %65 = vector.load %arg12[%c0_36, %c0_37] : memref<16x256xbf16, #tpu.memory_space<vmem>>, vector<16x256xbf16>
    %c0_38 = arith.constant 0 : index
    %c0_39 = arith.constant 0 : index
    %66 = vector.load %arg6[%c0_38, %c0_39] : memref<256x512xbf16, #tpu.memory_space<vmem>>, vector<256x512xbf16>
    %cst_40 = arith.constant dense<0.000000e+00> : vector<16x512xf32>
    %67 = tpu.matmul %65, %66, %cst_40 {dimension_numbers = #tpu.dot_dimension_numbers<[1], [0], [0], [1], [0, 0, 1, 1], [], []>} : vector<16x256xbf16>, vector<256x512xbf16>, vector<16x512xf32> -> vector<16x512xf32>
    %c0_41 = arith.constant 0 : index
    %c0_42 = arith.constant 0 : index
    %68 = vector.load %arg7[%c0_41, %c0_42] : memref<1x512xf32, #tpu.memory_space<vmem>>, vector<1x512xf32>
    %69 = vector.broadcast %68 : vector<1x512xf32> to vector<16x512xf32>
    %70 = arith.addf %67, %69 : vector<16x512xf32>
    %71 = vector.extract_strided_slice %70 {offsets = [0, 0], sizes = [16, 128], strides = [1, 1]} : vector<16x512xf32> to vector<16x128xf32>
    %72 = arith.negf %71 : vector<16x128xf32>
    %73 = math.exp %72 : vector<16x128xf32>
    %cst_43 = arith.constant 1.000000e+00 : f32
    %74 = vector.broadcast %cst_43 : f32 to vector<16x128xf32>
    %75 = arith.addf %74, %73 : vector<16x128xf32>
    %76 = arith.divf %74, %75 : vector<16x128xf32>
    %77 = vector.extract_strided_slice %70 {offsets = [0, 128], sizes = [16, 128], strides = [1, 1]} : vector<16x512xf32> to vector<16x128xf32>
    %78 = arith.negf %77 : vector<16x128xf32>
    %79 = math.exp %78 : vector<16x128xf32>
    %cst_44 = arith.constant 1.000000e+00 : f32
    %80 = vector.broadcast %cst_44 : f32 to vector<16x128xf32>
    %81 = arith.addf %80, %79 : vector<16x128xf32>
    %82 = arith.divf %80, %81 : vector<16x128xf32>
    %83 = vector.extract_strided_slice %70 {offsets = [0, 256], sizes = [16, 128], strides = [1, 1]} : vector<16x512xf32> to vector<16x128xf32>
    %84 = math.tanh %83 : vector<16x128xf32>
    %85 = vector.extract_strided_slice %70 {offsets = [0, 384], sizes = [16, 128], strides = [1, 1]} : vector<16x512xf32> to vector<16x128xf32>
    %86 = arith.negf %85 : vector<16x128xf32>
    %87 = math.exp %86 : vector<16x128xf32>
    %cst_45 = arith.constant 1.000000e+00 : f32
    %88 = vector.broadcast %cst_45 : f32 to vector<16x128xf32>
    %89 = arith.addf %88, %87 : vector<16x128xf32>
    %90 = arith.divf %88, %89 : vector<16x128xf32>
    %91 = arith.mulf %82, %60 : vector<16x128xf32>
    %92 = arith.mulf %76, %84 : vector<16x128xf32>
    %93 = arith.addf %91, %92 : vector<16x128xf32>
    %94 = math.tanh %93 : vector<16x128xf32>
    %95 = arith.mulf %90, %94 : vector<16x128xf32>
    %96 = arith.index_cast %c1_i32 : i32 to index
    %c0_46 = arith.constant 0 : index
    %c0_47 = arith.constant 0 : index
    %97 = vector.load %arg2[%96, %c0_46, %c0_47] : memref<8x16x1xf32, #tpu.memory_space<vmem>>, vector<1x16x1xf32>
    %98 = vector.shape_cast %97 : vector<1x16x1xf32> to vector<16x1xf32>
    %cst_48 = arith.constant 0.000000e+00 : f32
    %99 = vector.broadcast %cst_48 : f32 to vector<16x1xf32>
    %100 = arith.cmpf one, %98, %99 : vector<16x1xf32>
    %101 = vector.shape_cast %100 : vector<16x1xi1> to vector<16x1xi1>
    %102 = vector.broadcast %101 : vector<16x1xi1> to vector<16x128xi1>
    %103 = arith.select %102, %59, %95 : vector<16x128xi1>, vector<16x128xf32>
    %104 = vector.shape_cast %100 : vector<16x1xi1> to vector<16x1xi1>
    %105 = vector.broadcast %104 : vector<16x1xi1> to vector<16x128xi1>
    %106 = arith.select %105, %60, %93 : vector<16x128xi1>, vector<16x128xf32>
    %c0_49 = arith.constant 0 : index
    %c0_50 = arith.constant 0 : index
    %107 = vector.load %arg10[%c0_49, %c0_50] : memref<16x128xf32, #tpu.memory_space<vmem>>, vector<16x128xf32>
    tpu.vector_store %arg10[%c0_49, %c0_50], %103 {strides = array<i32>} : memref<16x128xf32, #tpu.memory_space<vmem>>, vector<16x128xf32>,
    %c0_51 = arith.constant 0 : index
    %c0_52 = arith.constant 0 : index
    %108 = vector.load %arg11[%c0_51, %c0_52] : memref<16x128xf32, #tpu.memory_space<vmem>>, vector<16x128xf32>
    tpu.vector_store %arg11[%c0_51, %c0_52], %106 {strides = array<i32>} : memref<16x128xf32, #tpu.memory_space<vmem>>, vector<16x128xf32>,
    %109 = arith.truncf %103 : vector<16x128xf32> to vector<16x128xbf16>
    %c0_53 = arith.constant 0 : index
    %c128_54 = arith.constant 128 : index
    %110 = vector.load %arg12[%c0_53, %c128_54] : memref<16x256xbf16, #tpu.memory_space<vmem>>, vector<16x128xbf16>
    tpu.vector_store %arg12[%c0_53, %c128_54], %109 {strides = array<i32>} : memref<16x256xbf16, #tpu.memory_space<vmem>>, vector<16x128xbf16>,
    %111 = arith.index_cast %c1_i32 : i32 to index
    %c0_55 = arith.constant 0 : index
    %c0_56 = arith.constant 0 : index
    %112 = vector.load %arg8[%111, %c0_55, %c0_56] : memref<8x16x128xf32, #tpu.memory_space<vmem>>, vector<1x16x128xf32>
    %113 = vector.shape_cast %112 : vector<1x16x128xf32> to vector<16x128xf32>
    %114 = vector.shape_cast %103 : vector<16x128xf32> to vector<1x16x128xf32>
    tpu.vector_store %arg8[%111, %c0_55, %c0_56], %114 {strides = array<i32>} : memref<8x16x128xf32, #tpu.memory_space<vmem>>, vector<1x16x128xf32>,
    %c2_i32 = arith.constant 2 : i32
    %c0_57 = arith.constant 0 : index
    %c0_58 = arith.constant 0 : index
    %115 = vector.load %arg10[%c0_57, %c0_58] : memref<16x128xf32, #tpu.memory_space<vmem>>, vector<16x128xf32>
    %c0_59 = arith.constant 0 : index
    %c0_60 = arith.constant 0 : index
    %116 = vector.load %arg11[%c0_59, %c0_60] : memref<16x128xf32, #tpu.memory_space<vmem>>, vector<16x128xf32>
    %117 = arith.index_cast %c2_i32 : i32 to index
    %c0_61 = arith.constant 0 : index
    %c0_62 = arith.constant 0 : index
    %118 = vector.load %arg3[%117, %c0_61, %c0_62] : memref<8x16x128xbf16, #tpu.memory_space<vmem>>, vector<1x16x128xbf16>
    %119 = vector.shape_cast %118 : vector<1x16x128xbf16> to vector<16x128xbf16>
    %c0_63 = arith.constant 0 : index
    %c0_64 = arith.constant 0 : index
    %120 = vector.load %arg12[%c0_63, %c0_64] : memref<16x256xbf16, #tpu.memory_space<vmem>>, vector<16x128xbf16>
    tpu.vector_store %arg12[%c0_63, %c0_64], %119 {strides = array<i32>} : memref<16x256xbf16, #tpu.memory_space<vmem>>, vector<16x128xbf16>,
    %c0_65 = arith.constant 0 : index
    %c0_66 = arith.constant 0 : index
    %121 = vector.load %arg12[%c0_65, %c0_66] : memref<16x256xbf16, #tpu.memory_space<vmem>>, vector<16x256xbf16>
    %c0_67 = arith.constant 0 : index
    %c0_68 = arith.constant 0 : index
    %122 = vector.load %arg6[%c0_67, %c0_68] : memref<256x512xbf16, #tpu.memory_space<vmem>>, vector<256x512xbf16>
    %cst_69 = arith.constant dense<0.000000e+00> : vector<16x512xf32>
    %123 = tpu.matmul %121, %122, %cst_69 {dimension_numbers = #tpu.dot_dimension_numbers<[1], [0], [0], [1], [0, 0, 1, 1], [], []>} : vector<16x256xbf16>, vector<256x512xbf16>, vector<16x512xf32> -> vector<16x512xf32>
    %c0_70 = arith.constant 0 : index
    %c0_71 = arith.constant 0 : index
    %124 = vector.load %arg7[%c0_70, %c0_71] : memref<1x512xf32, #tpu.memory_space<vmem>>, vector<1x512xf32>
    %125 = vector.broadcast %124 : vector<1x512xf32> to vector<16x512xf32>
    %126 = arith.addf %123, %125 : vector<16x512xf32>
    %127 = vector.extract_strided_slice %126 {offsets = [0, 0], sizes = [16, 128], strides = [1, 1]} : vector<16x512xf32> to vector<16x128xf32>
    %128 = arith.negf %127 : vector<16x128xf32>
    %129 = math.exp %128 : vector<16x128xf32>
    %cst_72 = arith.constant 1.000000e+00 : f32
    %130 = vector.broadcast %cst_72 : f32 to vector<16x128xf32>
    %131 = arith.addf %130, %129 : vector<16x128xf32>
    %132 = arith.divf %130, %131 : vector<16x128xf32>
    %133 = vector.extract_strided_slice %126 {offsets = [0, 128], sizes = [16, 128], strides = [1, 1]} : vector<16x512xf32> to vector<16x128xf32>
    %134 = arith.negf %133 : vector<16x128xf32>
    %135 = math.exp %134 : vector<16x128xf32>
    %cst_73 = arith.constant 1.000000e+00 : f32
    %136 = vector.broadcast %cst_73 : f32 to vector<16x128xf32>
    %137 = arith.addf %136, %135 : vector<16x128xf32>
    %138 = arith.divf %136, %137 : vector<16x128xf32>
    %139 = vector.extract_strided_slice %126 {offsets = [0, 256], sizes = [16, 128], strides = [1, 1]} : vector<16x512xf32> to vector<16x128xf32>
    %140 = math.tanh %139 : vector<16x128xf32>
    %141 = vector.extract_strided_slice %126 {offsets = [0, 384], sizes = [16, 128], strides = [1, 1]} : vector<16x512xf32> to vector<16x128xf32>
    %142 = arith.negf %141 : vector<16x128xf32>
    %143 = math.exp %142 : vector<16x128xf32>
    %cst_74 = arith.constant 1.000000e+00 : f32
    %144 = vector.broadcast %cst_74 : f32 to vector<16x128xf32>
    %145 = arith.addf %144, %143 : vector<16x128xf32>
    %146 = arith.divf %144, %145 : vector<16x128xf32>
    %147 = arith.mulf %138, %116 : vector<16x128xf32>
    %148 = arith.mulf %132, %140 : vector<16x128xf32>
    %149 = arith.addf %147, %148 : vector<16x128xf32>
    %150 = math.tanh %149 : vector<16x128xf32>
    %151 = arith.mulf %146, %150 : vector<16x128xf32>
    %152 = arith.index_cast %c2_i32 : i32 to index
    %c0_75 = arith.constant 0 : index
    %c0_76 = arith.constant 0 : index
    %153 = vector.load %arg2[%152, %c0_75, %c0_76] : memref<8x16x1xf32, #tpu.memory_space<vmem>>, vector<1x16x1xf32>
    %154 = vector.shape_cast %153 : vector<1x16x1xf32> to vector<16x1xf32>
    %cst_77 = arith.constant 0.000000e+00 : f32
    %155 = vector.broadcast %cst_77 : f32 to vector<16x1xf32>
    %156 = arith.cmpf one, %154, %155 : vector<16x1xf32>
    %157 = vector.shape_cast %156 : vector<16x1xi1> to vector<16x1xi1>
    %158 = vector.broadcast %157 : vector<16x1xi1> to vector<16x128xi1>
    %159 = arith.select %158, %115, %151 : vector<16x128xi1>, vector<16x128xf32>
    %160 = vector.shape_cast %156 : vector<16x1xi1> to vector<16x1xi1>
    %161 = vector.broadcast %160 : vector<16x1xi1> to vector<16x128xi1>
    %162 = arith.select %161, %116, %149 : vector<16x128xi1>, vector<16x128xf32>
    %c0_78 = arith.constant 0 : index
    %c0_79 = arith.constant 0 : index
    %163 = vector.load %arg10[%c0_78, %c0_79] : memref<16x128xf32, #tpu.memory_space<vmem>>, vector<16x128xf32>
    tpu.vector_store %arg10[%c0_78, %c0_79], %159 {strides = array<i32>} : memref<16x128xf32, #tpu.memory_space<vmem>>, vector<16x128xf32>,
    %c0_80 = arith.constant 0 : index
    %c0_81 = arith.constant 0 : index
    %164 = vector.load %arg11[%c0_80, %c0_81] : memref<16x128xf32, #tpu.memory_space<vmem>>, vector<16x128xf32>
    tpu.vector_store %arg11[%c0_80, %c0_81], %162 {strides = array<i32>} : memref<16x128xf32, #tpu.memory_space<vmem>>, vector<16x128xf32>,
    %165 = arith.truncf %159 : vector<16x128xf32> to vector<16x128xbf16>
    %c0_82 = arith.constant 0 : index
    %c128_83 = arith.constant 128 : index
    %166 = vector.load %arg12[%c0_82, %c128_83] : memref<16x256xbf16, #tpu.memory_space<vmem>>, vector<16x128xbf16>
    tpu.vector_store %arg12[%c0_82, %c128_83], %165 {strides = array<i32>} : memref<16x256xbf16, #tpu.memory_space<vmem>>, vector<16x128xbf16>,
    %167 = arith.index_cast %c2_i32 : i32 to index
    %c0_84 = arith.constant 0 : index
    %c0_85 = arith.constant 0 : index
    %168 = vector.load %arg8[%167, %c0_84, %c0_85] : memref<8x16x128xf32, #tpu.memory_space<vmem>>, vector<1x16x128xf32>
    %169 = vector.shape_cast %168 : vector<1x16x128xf32> to vector<16x128xf32>
    %170 = vector.shape_cast %159 : vector<16x128xf32> to vector<1x16x128xf32>
    tpu.vector_store %arg8[%167, %c0_84, %c0_85], %170 {strides = array<i32>} : memref<8x16x128xf32, #tpu.memory_space<vmem>>, vector<1x16x128xf32>,
    %c3_i32 = arith.constant 3 : i32
    %c0_86 = arith.constant 0 : index
    %c0_87 = arith.constant 0 : index
    %171 = vector.load %arg10[%c0_86, %c0_87] : memref<16x128xf32, #tpu.memory_space<vmem>>, vector<16x128xf32>
    %c0_88 = arith.constant 0 : index
    %c0_89 = arith.constant 0 : index
    %172 = vector.load %arg11[%c0_88, %c0_89] : memref<16x128xf32, #tpu.memory_space<vmem>>, vector<16x128xf32>
    %173 = arith.index_cast %c3_i32 : i32 to index
    %c0_90 = arith.constant 0 : index
    %c0_91 = arith.constant 0 : index
    %174 = vector.load %arg3[%173, %c0_90, %c0_91] : memref<8x16x128xbf16, #tpu.memory_space<vmem>>, vector<1x16x128xbf16>
    %175 = vector.shape_cast %174 : vector<1x16x128xbf16> to vector<16x128xbf16>
    %c0_92 = arith.constant 0 : index
    %c0_93 = arith.constant 0 : index
    %176 = vector.load %arg12[%c0_92, %c0_93] : memref<16x256xbf16, #tpu.memory_space<vmem>>, vector<16x128xbf16>
    tpu.vector_store %arg12[%c0_92, %c0_93], %175 {strides = array<i32>} : memref<16x256xbf16, #tpu.memory_space<vmem>>, vector<16x128xbf16>,
    %c0_94 = arith.constant 0 : index
    %c0_95 = arith.constant 0 : index
    %177 = vector.load %arg12[%c0_94, %c0_95] : memref<16x256xbf16, #tpu.memory_space<vmem>>, vector<16x256xbf16>
    %c0_96 = arith.constant 0 : index
    %c0_97 = arith.constant 0 : index
    %178 = vector.load %arg6[%c0_96, %c0_97] : memref<256x512xbf16, #tpu.memory_space<vmem>>, vector<256x512xbf16>
    %cst_98 = arith.constant dense<0.000000e+00> : vector<16x512xf32>
    %179 = tpu.matmul %177, %178, %cst_98 {dimension_numbers = #tpu.dot_dimension_numbers<[1], [0], [0], [1], [0, 0, 1, 1], [], []>} : vector<16x256xbf16>, vector<256x512xbf16>, vector<16x512xf32> -> vector<16x512xf32>
    %c0_99 = arith.constant 0 : index
    %c0_100 = arith.constant 0 : index
    %180 = vector.load %arg7[%c0_99, %c0_100] : memref<1x512xf32, #tpu.memory_space<vmem>>, vector<1x512xf32>
    %181 = vector.broadcast %180 : vector<1x512xf32> to vector<16x512xf32>
    %182 = arith.addf %179, %181 : vector<16x512xf32>
    %183 = vector.extract_strided_slice %182 {offsets = [0, 0], sizes = [16, 128], strides = [1, 1]} : vector<16x512xf32> to vector<16x128xf32>
    %184 = arith.negf %183 : vector<16x128xf32>
    %185 = math.exp %184 : vector<16x128xf32>
    %cst_101 = arith.constant 1.000000e+00 : f32
    %186 = vector.broadcast %cst_101 : f32 to vector<16x128xf32>
    %187 = arith.addf %186, %185 : vector<16x128xf32>
    %188 = arith.divf %186, %187 : vector<16x128xf32>
    %189 = vector.extract_strided_slice %182 {offsets = [0, 128], sizes = [16, 128], strides = [1, 1]} : vector<16x512xf32> to vector<16x128xf32>
    %190 = arith.negf %189 : vector<16x128xf32>
    %191 = math.exp %190 : vector<16x128xf32>
    %cst_102 = arith.constant 1.000000e+00 : f32
    %192 = vector.broadcast %cst_102 : f32 to vector<16x128xf32>
    %193 = arith.addf %192, %191 : vector<16x128xf32>
    %194 = arith.divf %192, %193 : vector<16x128xf32>
    %195 = vector.extract_strided_slice %182 {offsets = [0, 256], sizes = [16, 128], strides = [1, 1]} : vector<16x512xf32> to vector<16x128xf32>
    %196 = math.tanh %195 : vector<16x128xf32>
    %197 = vector.extract_strided_slice %182 {offsets = [0, 384], sizes = [16, 128], strides = [1, 1]} : vector<16x512xf32> to vector<16x128xf32>
    %198 = arith.negf %197 : vector<16x128xf32>
    %199 = math.exp %198 : vector<16x128xf32>
    %cst_103 = arith.constant 1.000000e+00 : f32
    %200 = vector.broadcast %cst_103 : f32 to vector<16x128xf32>
    %201 = arith.addf %200, %199 : vector<16x128xf32>
    %202 = arith.divf %200, %201 : vector<16x128xf32>
    %203 = arith.mulf %194, %172 : vector<16x128xf32>
    %204 = arith.mulf %188, %196 : vector<16x128xf32>
    %205 = arith.addf %203, %204 : vector<16x128xf32>
    %206 = math.tanh %205 : vector<16x128xf32>
    %207 = arith.mulf %202, %206 : vector<16x128xf32>
    %208 = arith.index_cast %c3_i32 : i32 to index
    %c0_104 = arith.constant 0 : index
    %c0_105 = arith.constant 0 : index
    %209 = vector.load %arg2[%208, %c0_104, %c0_105] : memref<8x16x1xf32, #tpu.memory_space<vmem>>, vector<1x16x1xf32>
    %210 = vector.shape_cast %209 : vector<1x16x1xf32> to vector<16x1xf32>
    %cst_106 = arith.constant 0.000000e+00 : f32
    %211 = vector.broadcast %cst_106 : f32 to vector<16x1xf32>
    %212 = arith.cmpf one, %210, %211 : vector<16x1xf32>
    %213 = vector.shape_cast %212 : vector<16x1xi1> to vector<16x1xi1>
    %214 = vector.broadcast %213 : vector<16x1xi1> to vector<16x128xi1>
    %215 = arith.select %214, %171, %207 : vector<16x128xi1>, vector<16x128xf32>
    %216 = vector.shape_cast %212 : vector<16x1xi1> to vector<16x1xi1>
    %217 = vector.broadcast %216 : vector<16x1xi1> to vector<16x128xi1>
    %218 = arith.select %217, %172, %205 : vector<16x128xi1>, vector<16x128xf32>
    %c0_107 = arith.constant 0 : index
    %c0_108 = arith.constant 0 : index
    %219 = vector.load %arg10[%c0_107, %c0_108] : memref<16x128xf32, #tpu.memory_space<vmem>>, vector<16x128xf32>
    tpu.vector_store %arg10[%c0_107, %c0_108], %215 {strides = array<i32>} : memref<16x128xf32, #tpu.memory_space<vmem>>, vector<16x128xf32>,
    %c0_109 = arith.constant 0 : index
    %c0_110 = arith.constant 0 : index
    %220 = vector.load %arg11[%c0_109, %c0_110] : memref<16x128xf32, #tpu.memory_space<vmem>>, vector<16x128xf32>
    tpu.vector_store %arg11[%c0_109, %c0_110], %218 {strides = array<i32>} : memref<16x128xf32, #tpu.memory_space<vmem>>, vector<16x128xf32>,
    %221 = arith.truncf %215 : vector<16x128xf32> to vector<16x128xbf16>
    %c0_111 = arith.constant 0 : index
    %c128_112 = arith.constant 128 : index
    %222 = vector.load %arg12[%c0_111, %c128_112] : memref<16x256xbf16, #tpu.memory_space<vmem>>, vector<16x128xbf16>
    tpu.vector_store %arg12[%c0_111, %c128_112], %221 {strides = array<i32>} : memref<16x256xbf16, #tpu.memory_space<vmem>>, vector<16x128xbf16>,
    %223 = arith.index_cast %c3_i32 : i32 to index
    %c0_113 = arith.constant 0 : index
    %c0_114 = arith.constant 0 : index
    %224 = vector.load %arg8[%223, %c0_113, %c0_114] : memref<8x16x128xf32, #tpu.memory_space<vmem>>, vector<1x16x128xf32>
    %225 = vector.shape_cast %224 : vector<1x16x128xf32> to vector<16x128xf32>
    %226 = vector.shape_cast %215 : vector<16x128xf32> to vector<1x16x128xf32>
    tpu.vector_store %arg8[%223, %c0_113, %c0_114], %226 {strides = array<i32>} : memref<8x16x128xf32, #tpu.memory_space<vmem>>, vector<1x16x128xf32>,
    %c4_i32 = arith.constant 4 : i32
    %c0_115 = arith.constant 0 : index
    %c0_116 = arith.constant 0 : index
    %227 = vector.load %arg10[%c0_115, %c0_116] : memref<16x128xf32, #tpu.memory_space<vmem>>, vector<16x128xf32>
    %c0_117 = arith.constant 0 : index
    %c0_118 = arith.constant 0 : index
    %228 = vector.load %arg11[%c0_117, %c0_118] : memref<16x128xf32, #tpu.memory_space<vmem>>, vector<16x128xf32>
    %229 = arith.index_cast %c4_i32 : i32 to index
    %c0_119 = arith.constant 0 : index
    %c0_120 = arith.constant 0 : index
    %230 = vector.load %arg3[%229, %c0_119, %c0_120] : memref<8x16x128xbf16, #tpu.memory_space<vmem>>, vector<1x16x128xbf16>
    %231 = vector.shape_cast %230 : vector<1x16x128xbf16> to vector<16x128xbf16>
    %c0_121 = arith.constant 0 : index
    %c0_122 = arith.constant 0 : index
    %232 = vector.load %arg12[%c0_121, %c0_122] : memref<16x256xbf16, #tpu.memory_space<vmem>>, vector<16x128xbf16>
    tpu.vector_store %arg12[%c0_121, %c0_122], %231 {strides = array<i32>} : memref<16x256xbf16, #tpu.memory_space<vmem>>, vector<16x128xbf16>,
    %c0_123 = arith.constant 0 : index
    %c0_124 = arith.constant 0 : index
    %233 = vector.load %arg12[%c0_123, %c0_124] : memref<16x256xbf16, #tpu.memory_space<vmem>>, vector<16x256xbf16>
    %c0_125 = arith.constant 0 : index
    %c0_126 = arith.constant 0 : index
    %234 = vector.load %arg6[%c0_125, %c0_126] : memref<256x512xbf16, #tpu.memory_space<vmem>>, vector<256x512xbf16>
    %cst_127 = arith.constant dense<0.000000e+00> : vector<16x512xf32>
    %235 = tpu.matmul %233, %234, %cst_127 {dimension_numbers = #tpu.dot_dimension_numbers<[1], [0], [0], [1], [0, 0, 1, 1], [], []>} : vector<16x256xbf16>, vector<256x512xbf16>, vector<16x512xf32> -> vector<16x512xf32>
    %c0_128 = arith.constant 0 : index
    %c0_129 = arith.constant 0 : index
    %236 = vector.load %arg7[%c0_128, %c0_129] : memref<1x512xf32, #tpu.memory_space<vmem>>, vector<1x512xf32>
    %237 = vector.broadcast %236 : vector<1x512xf32> to vector<16x512xf32>
    %238 = arith.addf %235, %237 : vector<16x512xf32>
    %239 = vector.extract_strided_slice %238 {offsets = [0, 0], sizes = [16, 128], strides = [1, 1]} : vector<16x512xf32> to vector<16x128xf32>
    %240 = arith.negf %239 : vector<16x128xf32>
    %241 = math.exp %240 : vector<16x128xf32>
    %cst_130 = arith.constant 1.000000e+00 : f32
    %242 = vector.broadcast %cst_130 : f32 to vector<16x128xf32>
    %243 = arith.addf %242, %241 : vector<16x128xf32>
    %244 = arith.divf %242, %243 : vector<16x128xf32>
    %245 = vector.extract_strided_slice %238 {offsets = [0, 128], sizes = [16, 128], strides = [1, 1]} : vector<16x512xf32> to vector<16x128xf32>
    %246 = arith.negf %245 : vector<16x128xf32>
    %247 = math.exp %246 : vector<16x128xf32>
    %cst_131 = arith.constant 1.000000e+00 : f32
    %248 = vector.broadcast %cst_131 : f32 to vector<16x128xf32>
    %249 = arith.addf %248, %247 : vector<16x128xf32>
    %250 = arith.divf %248, %249 : vector<16x128xf32>
    %251 = vector.extract_strided_slice %238 {offsets = [0, 256], sizes = [16, 128], strides = [1, 1]} : vector<16x512xf32> to vector<16x128xf32>
    %252 = math.tanh %251 : vector<16x128xf32>
    %253 = vector.extract_strided_slice %238 {offsets = [0, 384], sizes = [16, 128], strides = [1, 1]} : vector<16x512xf32> to vector<16x128xf32>
    %254 = arith.negf %253 : vector<16x128xf32>
    %255 = math.exp %254 : vector<16x128xf32>
    %cst_132 = arith.constant 1.000000e+00 : f32
    %256 = vector.broadcast %cst_132 : f32 to vector<16x128xf32>
    %257 = arith.addf %256, %255 : vector<16x128xf32>
    %258 = arith.divf %256, %257 : vector<16x128xf32>
    %259 = arith.mulf %250, %228 : vector<16x128xf32>
    %260 = arith.mulf %244, %252 : vector<16x128xf32>
    %261 = arith.addf %259, %260 : vector<16x128xf32>
    %262 = math.tanh %261 : vector<16x128xf32>
    %263 = arith.mulf %258, %262 : vector<16x128xf32>
    %264 = arith.index_cast %c4_i32 : i32 to index
    %c0_133 = arith.constant 0 : index
    %c0_134 = arith.constant 0 : index
    %265 = vector.load %arg2[%264, %c0_133, %c0_134] : memref<8x16x1xf32, #tpu.memory_space<vmem>>, vector<1x16x1xf32>
    %266 = vector.shape_cast %265 : vector<1x16x1xf32> to vector<16x1xf32>
    %cst_135 = arith.constant 0.000000e+00 : f32
    %267 = vector.broadcast %cst_135 : f32 to vector<16x1xf32>
    %268 = arith.cmpf one, %266, %267 : vector<16x1xf32>
    %269 = vector.shape_cast %268 : vector<16x1xi1> to vector<16x1xi1>
    %270 = vector.broadcast %269 : vector<16x1xi1> to vector<16x128xi1>
    %271 = arith.select %270, %227, %263 : vector<16x128xi1>, vector<16x128xf32>
    %272 = vector.shape_cast %268 : vector<16x1xi1> to vector<16x1xi1>
    %273 = vector.broadcast %272 : vector<16x1xi1> to vector<16x128xi1>
    %274 = arith.select %273, %228, %261 : vector<16x128xi1>, vector<16x128xf32>
    %c0_136 = arith.constant 0 : index
    %c0_137 = arith.constant 0 : index
    %275 = vector.load %arg10[%c0_136, %c0_137] : memref<16x128xf32, #tpu.memory_space<vmem>>, vector<16x128xf32>
    tpu.vector_store %arg10[%c0_136, %c0_137], %271 {strides = array<i32>} : memref<16x128xf32, #tpu.memory_space<vmem>>, vector<16x128xf32>,
    %c0_138 = arith.constant 0 : index
    %c0_139 = arith.constant 0 : index
    %276 = vector.load %arg11[%c0_138, %c0_139] : memref<16x128xf32, #tpu.memory_space<vmem>>, vector<16x128xf32>
    tpu.vector_store %arg11[%c0_138, %c0_139], %274 {strides = array<i32>} : memref<16x128xf32, #tpu.memory_space<vmem>>, vector<16x128xf32>,
    %277 = arith.truncf %271 : vector<16x128xf32> to vector<16x128xbf16>
    %c0_140 = arith.constant 0 : index
    %c128_141 = arith.constant 128 : index
    %278 = vector.load %arg12[%c0_140, %c128_141] : memref<16x256xbf16, #tpu.memory_space<vmem>>, vector<16x128xbf16>
    tpu.vector_store %arg12[%c0_140, %c128_141], %277 {strides = array<i32>} : memref<16x256xbf16, #tpu.memory_space<vmem>>, vector<16x128xbf16>,
    %279 = arith.index_cast %c4_i32 : i32 to index
    %c0_142 = arith.constant 0 : index
    %c0_143 = arith.constant 0 : index
    %280 = vector.load %arg8[%279, %c0_142, %c0_143] : memref<8x16x128xf32, #tpu.memory_space<vmem>>, vector<1x16x128xf32>
    %281 = vector.shape_cast %280 : vector<1x16x128xf32> to vector<16x128xf32>
    %282 = vector.shape_cast %271 : vector<16x128xf32> to vector<1x16x128xf32>
    tpu.vector_store %arg8[%279, %c0_142, %c0_143], %282 {strides = array<i32>} : memref<8x16x128xf32, #tpu.memory_space<vmem>>, vector<1x16x128xf32>,
    %c5_i32 = arith.constant 5 : i32
    %c0_144 = arith.constant 0 : index
    %c0_145 = arith.constant 0 : index
    %283 = vector.load %arg10[%c0_144, %c0_145] : memref<16x128xf32, #tpu.memory_space<vmem>>, vector<16x128xf32>
    %c0_146 = arith.constant 0 : index
    %c0_147 = arith.constant 0 : index
    %284 = vector.load %arg11[%c0_146, %c0_147] : memref<16x128xf32, #tpu.memory_space<vmem>>, vector<16x128xf32>
    %285 = arith.index_cast %c5_i32 : i32 to index
    %c0_148 = arith.constant 0 : index
    %c0_149 = arith.constant 0 : index
    %286 = vector.load %arg3[%285, %c0_148, %c0_149] : memref<8x16x128xbf16, #tpu.memory_space<vmem>>, vector<1x16x128xbf16>
    %287 = vector.shape_cast %286 : vector<1x16x128xbf16> to vector<16x128xbf16>
    %c0_150 = arith.constant 0 : index
    %c0_151 = arith.constant 0 : index
    %288 = vector.load %arg12[%c0_150, %c0_151] : memref<16x256xbf16, #tpu.memory_space<vmem>>, vector<16x128xbf16>
    tpu.vector_store %arg12[%c0_150, %c0_151], %287 {strides = array<i32>} : memref<16x256xbf16, #tpu.memory_space<vmem>>, vector<16x128xbf16>,
    %c0_152 = arith.constant 0 : index
    %c0_153 = arith.constant 0 : index
    %289 = vector.load %arg12[%c0_152, %c0_153] : memref<16x256xbf16, #tpu.memory_space<vmem>>, vector<16x256xbf16>
    %c0_154 = arith.constant 0 : index
    %c0_155 = arith.constant 0 : index
    %290 = vector.load %arg6[%c0_154, %c0_155] : memref<256x512xbf16, #tpu.memory_space<vmem>>, vector<256x512xbf16>
    %cst_156 = arith.constant dense<0.000000e+00> : vector<16x512xf32>
    %291 = tpu.matmul %289, %290, %cst_156 {dimension_numbers = #tpu.dot_dimension_numbers<[1], [0], [0], [1], [0, 0, 1, 1], [], []>} : vector<16x256xbf16>, vector<256x512xbf16>, vector<16x512xf32> -> vector<16x512xf32>
    %c0_157 = arith.constant 0 : index
    %c0_158 = arith.constant 0 : index
    %292 = vector.load %arg7[%c0_157, %c0_158] : memref<1x512xf32, #tpu.memory_space<vmem>>, vector<1x512xf32>
    %293 = vector.broadcast %292 : vector<1x512xf32> to vector<16x512xf32>
    %294 = arith.addf %291, %293 : vector<16x512xf32>
    %295 = vector.extract_strided_slice %294 {offsets = [0, 0], sizes = [16, 128], strides = [1, 1]} : vector<16x512xf32> to vector<16x128xf32>
    %296 = arith.negf %295 : vector<16x128xf32>
    %297 = math.exp %296 : vector<16x128xf32>
    %cst_159 = arith.constant 1.000000e+00 : f32
    %298 = vector.broadcast %cst_159 : f32 to vector<16x128xf32>
    %299 = arith.addf %298, %297 : vector<16x128xf32>
    %300 = arith.divf %298, %299 : vector<16x128xf32>
    %301 = vector.extract_strided_slice %294 {offsets = [0, 128], sizes = [16, 128], strides = [1, 1]} : vector<16x512xf32> to vector<16x128xf32>
    %302 = arith.negf %301 : vector<16x128xf32>
    %303 = math.exp %302 : vector<16x128xf32>
    %cst_160 = arith.constant 1.000000e+00 : f32
    %304 = vector.broadcast %cst_160 : f32 to vector<16x128xf32>
    %305 = arith.addf %304, %303 : vector<16x128xf32>
    %306 = arith.divf %304, %305 : vector<16x128xf32>
    %307 = vector.extract_strided_slice %294 {offsets = [0, 256], sizes = [16, 128], strides = [1, 1]} : vector<16x512xf32> to vector<16x128xf32>
    %308 = math.tanh %307 : vector<16x128xf32>
    %309 = vector.extract_strided_slice %294 {offsets = [0, 384], sizes = [16, 128], strides = [1, 1]} : vector<16x512xf32> to vector<16x128xf32>
    %310 = arith.negf %309 : vector<16x128xf32>
    %311 = math.exp %310 : vector<16x128xf32>
    %cst_161 = arith.constant 1.000000e+00 : f32
    %312 = vector.broadcast %cst_161 : f32 to vector<16x128xf32>
    %313 = arith.addf %312, %311 : vector<16x128xf32>
    %314 = arith.divf %312, %313 : vector<16x128xf32>
    %315 = arith.mulf %306, %284 : vector<16x128xf32>
    %316 = arith.mulf %300, %308 : vector<16x128xf32>
    %317 = arith.addf %315, %316 : vector<16x128xf32>
    %318 = math.tanh %317 : vector<16x128xf32>
    %319 = arith.mulf %314, %318 : vector<16x128xf32>
    %320 = arith.index_cast %c5_i32 : i32 to index
    %c0_162 = arith.constant 0 : index
    %c0_163 = arith.constant 0 : index
    %321 = vector.load %arg2[%320, %c0_162, %c0_163] : memref<8x16x1xf32, #tpu.memory_space<vmem>>, vector<1x16x1xf32>
    %322 = vector.shape_cast %321 : vector<1x16x1xf32> to vector<16x1xf32>
    %cst_164 = arith.constant 0.000000e+00 : f32
    %323 = vector.broadcast %cst_164 : f32 to vector<16x1xf32>
    %324 = arith.cmpf one, %322, %323 : vector<16x1xf32>
    %325 = vector.shape_cast %324 : vector<16x1xi1> to vector<16x1xi1>
    %326 = vector.broadcast %325 : vector<16x1xi1> to vector<16x128xi1>
    %327 = arith.select %326, %283, %319 : vector<16x128xi1>, vector<16x128xf32>
    %328 = vector.shape_cast %324 : vector<16x1xi1> to vector<16x1xi1>
    %329 = vector.broadcast %328 : vector<16x1xi1> to vector<16x128xi1>
    %330 = arith.select %329, %284, %317 : vector<16x128xi1>, vector<16x128xf32>
    %c0_165 = arith.constant 0 : index
    %c0_166 = arith.constant 0 : index
    %331 = vector.load %arg10[%c0_165, %c0_166] : memref<16x128xf32, #tpu.memory_space<vmem>>, vector<16x128xf32>
    tpu.vector_store %arg10[%c0_165, %c0_166], %327 {strides = array<i32>} : memref<16x128xf32, #tpu.memory_space<vmem>>, vector<16x128xf32>,
    %c0_167 = arith.constant 0 : index
    %c0_168 = arith.constant 0 : index
    %332 = vector.load %arg11[%c0_167, %c0_168] : memref<16x128xf32, #tpu.memory_space<vmem>>, vector<16x128xf32>
    tpu.vector_store %arg11[%c0_167, %c0_168], %330 {strides = array<i32>} : memref<16x128xf32, #tpu.memory_space<vmem>>, vector<16x128xf32>,
    %333 = arith.truncf %327 : vector<16x128xf32> to vector<16x128xbf16>
    %c0_169 = arith.constant 0 : index
    %c128_170 = arith.constant 128 : index
    %334 = vector.load %arg12[%c0_169, %c128_170] : memref<16x256xbf16, #tpu.memory_space<vmem>>, vector<16x128xbf16>
    tpu.vector_store %arg12[%c0_169, %c128_170], %333 {strides = array<i32>} : memref<16x256xbf16, #tpu.memory_space<vmem>>, vector<16x128xbf16>,
    %335 = arith.index_cast %c5_i32 : i32 to index
    %c0_171 = arith.constant 0 : index
    %c0_172 = arith.constant 0 : index
    %336 = vector.load %arg8[%335, %c0_171, %c0_172] : memref<8x16x128xf32, #tpu.memory_space<vmem>>, vector<1x16x128xf32>
    %337 = vector.shape_cast %336 : vector<1x16x128xf32> to vector<16x128xf32>
    %338 = vector.shape_cast %327 : vector<16x128xf32> to vector<1x16x128xf32>
    tpu.vector_store %arg8[%335, %c0_171, %c0_172], %338 {strides = array<i32>} : memref<8x16x128xf32, #tpu.memory_space<vmem>>, vector<1x16x128xf32>,
    %c6_i32 = arith.constant 6 : i32
    %c0_173 = arith.constant 0 : index
    %c0_174 = arith.constant 0 : index
    %339 = vector.load %arg10[%c0_173, %c0_174] : memref<16x128xf32, #tpu.memory_space<vmem>>, vector<16x128xf32>
    %c0_175 = arith.constant 0 : index
    %c0_176 = arith.constant 0 : index
    %340 = vector.load %arg11[%c0_175, %c0_176] : memref<16x128xf32, #tpu.memory_space<vmem>>, vector<16x128xf32>
    %341 = arith.index_cast %c6_i32 : i32 to index
    %c0_177 = arith.constant 0 : index
    %c0_178 = arith.constant 0 : index
    %342 = vector.load %arg3[%341, %c0_177, %c0_178] : memref<8x16x128xbf16, #tpu.memory_space<vmem>>, vector<1x16x128xbf16>
    %343 = vector.shape_cast %342 : vector<1x16x128xbf16> to vector<16x128xbf16>
    %c0_179 = arith.constant 0 : index
    %c0_180 = arith.constant 0 : index
    %344 = vector.load %arg12[%c0_179, %c0_180] : memref<16x256xbf16, #tpu.memory_space<vmem>>, vector<16x128xbf16>
    tpu.vector_store %arg12[%c0_179, %c0_180], %343 {strides = array<i32>} : memref<16x256xbf16, #tpu.memory_space<vmem>>, vector<16x128xbf16>,
    %c0_181 = arith.constant 0 : index
    %c0_182 = arith.constant 0 : index
    %345 = vector.load %arg12[%c0_181, %c0_182] : memref<16x256xbf16, #tpu.memory_space<vmem>>, vector<16x256xbf16>
    %c0_183 = arith.constant 0 : index
    %c0_184 = arith.constant 0 : index
    %346 = vector.load %arg6[%c0_183, %c0_184] : memref<256x512xbf16, #tpu.memory_space<vmem>>, vector<256x512xbf16>
    %cst_185 = arith.constant dense<0.000000e+00> : vector<16x512xf32>
    %347 = tpu.matmul %345, %346, %cst_185 {dimension_numbers = #tpu.dot_dimension_numbers<[1], [0], [0], [1], [0, 0, 1, 1], [], []>} : vector<16x256xbf16>, vector<256x512xbf16>, vector<16x512xf32> -> vector<16x512xf32>
    %c0_186 = arith.constant 0 : index
    %c0_187 = arith.constant 0 : index
    %348 = vector.load %arg7[%c0_186, %c0_187] : memref<1x512xf32, #tpu.memory_space<vmem>>, vector<1x512xf32>
    %349 = vector.broadcast %348 : vector<1x512xf32> to vector<16x512xf32>
    %350 = arith.addf %347, %349 : vector<16x512xf32>
    %351 = vector.extract_strided_slice %350 {offsets = [0, 0], sizes = [16, 128], strides = [1, 1]} : vector<16x512xf32> to vector<16x128xf32>
    %352 = arith.negf %351 : vector<16x128xf32>
    %353 = math.exp %352 : vector<16x128xf32>
    %cst_188 = arith.constant 1.000000e+00 : f32
    %354 = vector.broadcast %cst_188 : f32 to vector<16x128xf32>
    %355 = arith.addf %354, %353 : vector<16x128xf32>
    %356 = arith.divf %354, %355 : vector<16x128xf32>
    %357 = vector.extract_strided_slice %350 {offsets = [0, 128], sizes = [16, 128], strides = [1, 1]} : vector<16x512xf32> to vector<16x128xf32>
    %358 = arith.negf %357 : vector<16x128xf32>
    %359 = math.exp %358 : vector<16x128xf32>
    %cst_189 = arith.constant 1.000000e+00 : f32
    %360 = vector.broadcast %cst_189 : f32 to vector<16x128xf32>
    %361 = arith.addf %360, %359 : vector<16x128xf32>
    %362 = arith.divf %360, %361 : vector<16x128xf32>
    %363 = vector.extract_strided_slice %350 {offsets = [0, 256], sizes = [16, 128], strides = [1, 1]} : vector<16x512xf32> to vector<16x128xf32>
    %364 = math.tanh %363 : vector<16x128xf32>
    %365 = vector.extract_strided_slice %350 {offsets = [0, 384], sizes = [16, 128], strides = [1, 1]} : vector<16x512xf32> to vector<16x128xf32>
    %366 = arith.negf %365 : vector<16x128xf32>
    %367 = math.exp %366 : vector<16x128xf32>
    %cst_190 = arith.constant 1.000000e+00 : f32
    %368 = vector.broadcast %cst_190 : f32 to vector<16x128xf32>
    %369 = arith.addf %368, %367 : vector<16x128xf32>
    %370 = arith.divf %368, %369 : vector<16x128xf32>
    %371 = arith.mulf %362, %340 : vector<16x128xf32>
    %372 = arith.mulf %356, %364 : vector<16x128xf32>
    %373 = arith.addf %371, %372 : vector<16x128xf32>
    %374 = math.tanh %373 : vector<16x128xf32>
    %375 = arith.mulf %370, %374 : vector<16x128xf32>
    %376 = arith.index_cast %c6_i32 : i32 to index
    %c0_191 = arith.constant 0 : index
    %c0_192 = arith.constant 0 : index
    %377 = vector.load %arg2[%376, %c0_191, %c0_192] : memref<8x16x1xf32, #tpu.memory_space<vmem>>, vector<1x16x1xf32>
    %378 = vector.shape_cast %377 : vector<1x16x1xf32> to vector<16x1xf32>
    %cst_193 = arith.constant 0.000000e+00 : f32
    %379 = vector.broadcast %cst_193 : f32 to vector<16x1xf32>
    %380 = arith.cmpf one, %378, %379 : vector<16x1xf32>
    %381 = vector.shape_cast %380 : vector<16x1xi1> to vector<16x1xi1>
    %382 = vector.broadcast %381 : vector<16x1xi1> to vector<16x128xi1>
    %383 = arith.select %382, %339, %375 : vector<16x128xi1>, vector<16x128xf32>
    %384 = vector.shape_cast %380 : vector<16x1xi1> to vector<16x1xi1>
    %385 = vector.broadcast %384 : vector<16x1xi1> to vector<16x128xi1>
    %386 = arith.select %385, %340, %373 : vector<16x128xi1>, vector<16x128xf32>
    %c0_194 = arith.constant 0 : index
    %c0_195 = arith.constant 0 : index
    %387 = vector.load %arg10[%c0_194, %c0_195] : memref<16x128xf32, #tpu.memory_space<vmem>>, vector<16x128xf32>
    tpu.vector_store %arg10[%c0_194, %c0_195], %383 {strides = array<i32>} : memref<16x128xf32, #tpu.memory_space<vmem>>, vector<16x128xf32>,
    %c0_196 = arith.constant 0 : index
    %c0_197 = arith.constant 0 : index
    %388 = vector.load %arg11[%c0_196, %c0_197] : memref<16x128xf32, #tpu.memory_space<vmem>>, vector<16x128xf32>
    tpu.vector_store %arg11[%c0_196, %c0_197], %386 {strides = array<i32>} : memref<16x128xf32, #tpu.memory_space<vmem>>, vector<16x128xf32>,
    %389 = arith.truncf %383 : vector<16x128xf32> to vector<16x128xbf16>
    %c0_198 = arith.constant 0 : index
    %c128_199 = arith.constant 128 : index
    %390 = vector.load %arg12[%c0_198, %c128_199] : memref<16x256xbf16, #tpu.memory_space<vmem>>, vector<16x128xbf16>
    tpu.vector_store %arg12[%c0_198, %c128_199], %389 {strides = array<i32>} : memref<16x256xbf16, #tpu.memory_space<vmem>>, vector<16x128xbf16>,
    %391 = arith.index_cast %c6_i32 : i32 to index
    %c0_200 = arith.constant 0 : index
    %c0_201 = arith.constant 0 : index
    %392 = vector.load %arg8[%391, %c0_200, %c0_201] : memref<8x16x128xf32, #tpu.memory_space<vmem>>, vector<1x16x128xf32>
    %393 = vector.shape_cast %392 : vector<1x16x128xf32> to vector<16x128xf32>
    %394 = vector.shape_cast %383 : vector<16x128xf32> to vector<1x16x128xf32>
    tpu.vector_store %arg8[%391, %c0_200, %c0_201], %394 {strides = array<i32>} : memref<8x16x128xf32, #tpu.memory_space<vmem>>, vector<1x16x128xf32>,
    %c7_i32 = arith.constant 7 : i32
    %c0_202 = arith.constant 0 : index
    %c0_203 = arith.constant 0 : index
    %395 = vector.load %arg10[%c0_202, %c0_203] : memref<16x128xf32, #tpu.memory_space<vmem>>, vector<16x128xf32>
    %c0_204 = arith.constant 0 : index
    %c0_205 = arith.constant 0 : index
    %396 = vector.load %arg11[%c0_204, %c0_205] : memref<16x128xf32, #tpu.memory_space<vmem>>, vector<16x128xf32>
    %397 = arith.index_cast %c7_i32 : i32 to index
    %c0_206 = arith.constant 0 : index
    %c0_207 = arith.constant 0 : index
    %398 = vector.load %arg3[%397, %c0_206, %c0_207] : memref<8x16x128xbf16, #tpu.memory_space<vmem>>, vector<1x16x128xbf16>
    %399 = vector.shape_cast %398 : vector<1x16x128xbf16> to vector<16x128xbf16>
    %c0_208 = arith.constant 0 : index
    %c0_209 = arith.constant 0 : index
    %400 = vector.load %arg12[%c0_208, %c0_209] : memref<16x256xbf16, #tpu.memory_space<vmem>>, vector<16x128xbf16>
    tpu.vector_store %arg12[%c0_208, %c0_209], %399 {strides = array<i32>} : memref<16x256xbf16, #tpu.memory_space<vmem>>, vector<16x128xbf16>,
    %c0_210 = arith.constant 0 : index
    %c0_211 = arith.constant 0 : index
    %401 = vector.load %arg12[%c0_210, %c0_211] : memref<16x256xbf16, #tpu.memory_space<vmem>>, vector<16x256xbf16>
    %c0_212 = arith.constant 0 : index
    %c0_213 = arith.constant 0 : index
    %402 = vector.load %arg6[%c0_212, %c0_213] : memref<256x512xbf16, #tpu.memory_space<vmem>>, vector<256x512xbf16>
    %cst_214 = arith.constant dense<0.000000e+00> : vector<16x512xf32>
    %403 = tpu.matmul %401, %402, %cst_214 {dimension_numbers = #tpu.dot_dimension_numbers<[1], [0], [0], [1], [0, 0, 1, 1], [], []>} : vector<16x256xbf16>, vector<256x512xbf16>, vector<16x512xf32> -> vector<16x512xf32>
    %c0_215 = arith.constant 0 : index
    %c0_216 = arith.constant 0 : index
    %404 = vector.load %arg7[%c0_215, %c0_216] : memref<1x512xf32, #tpu.memory_space<vmem>>, vector<1x512xf32>
    %405 = vector.broadcast %404 : vector<1x512xf32> to vector<16x512xf32>
    %406 = arith.addf %403, %405 : vector<16x512xf32>
    %407 = vector.extract_strided_slice %406 {offsets = [0, 0], sizes = [16, 128], strides = [1, 1]} : vector<16x512xf32> to vector<16x128xf32>
    %408 = arith.negf %407 : vector<16x128xf32>
    %409 = math.exp %408 : vector<16x128xf32>
    %cst_217 = arith.constant 1.000000e+00 : f32
    %410 = vector.broadcast %cst_217 : f32 to vector<16x128xf32>
    %411 = arith.addf %410, %409 : vector<16x128xf32>
    %412 = arith.divf %410, %411 : vector<16x128xf32>
    %413 = vector.extract_strided_slice %406 {offsets = [0, 128], sizes = [16, 128], strides = [1, 1]} : vector<16x512xf32> to vector<16x128xf32>
    %414 = arith.negf %413 : vector<16x128xf32>
    %415 = math.exp %414 : vector<16x128xf32>
    %cst_218 = arith.constant 1.000000e+00 : f32
    %416 = vector.broadcast %cst_218 : f32 to vector<16x128xf32>
    %417 = arith.addf %416, %415 : vector<16x128xf32>
    %418 = arith.divf %416, %417 : vector<16x128xf32>
    %419 = vector.extract_strided_slice %406 {offsets = [0, 256], sizes = [16, 128], strides = [1, 1]} : vector<16x512xf32> to vector<16x128xf32>
    %420 = math.tanh %419 : vector<16x128xf32>
    %421 = vector.extract_strided_slice %406 {offsets = [0, 384], sizes = [16, 128], strides = [1, 1]} : vector<16x512xf32> to vector<16x128xf32>
    %422 = arith.negf %421 : vector<16x128xf32>
    %423 = math.exp %422 : vector<16x128xf32>
    %cst_219 = arith.constant 1.000000e+00 : f32
    %424 = vector.broadcast %cst_219 : f32 to vector<16x128xf32>
    %425 = arith.addf %424, %423 : vector<16x128xf32>
    %426 = arith.divf %424, %425 : vector<16x128xf32>
    %427 = arith.mulf %418, %396 : vector<16x128xf32>
    %428 = arith.mulf %412, %420 : vector<16x128xf32>
    %429 = arith.addf %427, %428 : vector<16x128xf32>
    %430 = math.tanh %429 : vector<16x128xf32>
    %431 = arith.mulf %426, %430 : vector<16x128xf32>
    %432 = arith.index_cast %c7_i32 : i32 to index
    %c0_220 = arith.constant 0 : index
    %c0_221 = arith.constant 0 : index
    %433 = vector.load %arg2[%432, %c0_220, %c0_221] : memref<8x16x1xf32, #tpu.memory_space<vmem>>, vector<1x16x1xf32>
    %434 = vector.shape_cast %433 : vector<1x16x1xf32> to vector<16x1xf32>
    %cst_222 = arith.constant 0.000000e+00 : f32
    %435 = vector.broadcast %cst_222 : f32 to vector<16x1xf32>
    %436 = arith.cmpf one, %434, %435 : vector<16x1xf32>
    %437 = vector.shape_cast %436 : vector<16x1xi1> to vector<16x1xi1>
    %438 = vector.broadcast %437 : vector<16x1xi1> to vector<16x128xi1>
    %439 = arith.select %438, %395, %431 : vector<16x128xi1>, vector<16x128xf32>
    %440 = vector.shape_cast %436 : vector<16x1xi1> to vector<16x1xi1>
    %441 = vector.broadcast %440 : vector<16x1xi1> to vector<16x128xi1>
    %442 = arith.select %441, %396, %429 : vector<16x128xi1>, vector<16x128xf32>
    %c0_223 = arith.constant 0 : index
    %c0_224 = arith.constant 0 : index
    %443 = vector.load %arg10[%c0_223, %c0_224] : memref<16x128xf32, #tpu.memory_space<vmem>>, vector<16x128xf32>
    tpu.vector_store %arg10[%c0_223, %c0_224], %439 {strides = array<i32>} : memref<16x128xf32, #tpu.memory_space<vmem>>, vector<16x128xf32>,
    %c0_225 = arith.constant 0 : index
    %c0_226 = arith.constant 0 : index
    %444 = vector.load %arg11[%c0_225, %c0_226] : memref<16x128xf32, #tpu.memory_space<vmem>>, vector<16x128xf32>
    tpu.vector_store %arg11[%c0_225, %c0_226], %442 {strides = array<i32>} : memref<16x128xf32, #tpu.memory_space<vmem>>, vector<16x128xf32>,
    %445 = arith.truncf %439 : vector<16x128xf32> to vector<16x128xbf16>
    %c0_227 = arith.constant 0 : index
    %c128_228 = arith.constant 128 : index
    %446 = vector.load %arg12[%c0_227, %c128_228] : memref<16x256xbf16, #tpu.memory_space<vmem>>, vector<16x128xbf16>
    tpu.vector_store %arg12[%c0_227, %c128_228], %445 {strides = array<i32>} : memref<16x256xbf16, #tpu.memory_space<vmem>>, vector<16x128xbf16>,
    %447 = arith.index_cast %c7_i32 : i32 to index
    %c0_229 = arith.constant 0 : index
    %c0_230 = arith.constant 0 : index
    %448 = vector.load %arg8[%447, %c0_229, %c0_230] : memref<8x16x128xf32, #tpu.memory_space<vmem>>, vector<1x16x128xf32>
    %449 = vector.shape_cast %448 : vector<1x16x128xf32> to vector<16x128xf32>
    %450 = vector.shape_cast %439 : vector<16x128xf32> to vector<1x16x128xf32>
    tpu.vector_store %arg8[%447, %c0_229, %c0_230], %450 {strides = array<i32>} : memref<8x16x128xf32, #tpu.memory_space<vmem>>, vector<1x16x128xf32>,
    %c8_i32 = arith.constant 8 : i32
    %c0_231 = arith.constant 0 : index
    %c0_232 = arith.constant 0 : index
    %451 = vector.load %arg11[%c0_231, %c0_232] : memref<16x128xf32, #tpu.memory_space<vmem>>, vector<16x128xf32>
    %c0_233 = arith.constant 0 : index
    %c0_234 = arith.constant 0 : index
    %452 = vector.load %arg9[%c0_233, %c0_234] : memref<16x128xf32, #tpu.memory_space<vmem>>, vector<16x128xf32>
    tpu.vector_store %arg9[%c0_233, %c0_234], %451 {strides = array<i32>} : memref<16x128xf32, #tpu.memory_space<vmem>>, vector<16x128xf32>,
    return
  }
  func.func @transform_0(%arg0: i32, %arg1: i32) -> (i32, i32, i32) {
    %c0_i32 = arith.constant 0 : i32
    %c0_i32_0 = arith.constant 0 : i32
    return %arg1, %arg0, %c0_i32 : i32, i32, i32
  }
  func.func @transform_1(%arg0: i32, %arg1: i32) -> (i32, i32, i32) {
    %c0_i32 = arith.constant 0 : i32
    %c0_i32_0 = arith.constant 0 : i32
    return %arg1, %arg0, %c0_i32 : i32, i32, i32
  }
  func.func @transform_2(%arg0: i32, %arg1: i32) -> (i32, i32) {
    %c0_i32 = arith.constant 0 : i32
    %c0_i32_0 = arith.constant 0 : i32
    return %arg0, %c0_i32 : i32, i32
  }
  func.func @transform_3(%arg0: i32, %arg1: i32) -> (i32, i32) {
    %c0_i32 = arith.constant 0 : i32
    %c0_i32_0 = arith.constant 0 : i32
    return %arg0, %c0_i32 : i32, i32
  }
  func.func @transform_4(%arg0: i32, %arg1: i32) -> (i32, i32) {
    %c0_i32 = arith.constant 0 : i32
    %c0_i32_0 = arith.constant 0 : i32
    %c0_i32_1 = arith.constant 0 : i32
    return %c0_i32, %c0_i32_0 : i32, i32
  }
  func.func @transform_5(%arg0: i32, %arg1: i32) -> (i32, i32) {
    %c0_i32 = arith.constant 0 : i32
    %c0_i32_0 = arith.constant 0 : i32
    %c0_i32_1 = arith.constant 0 : i32
    return %c0_i32, %c0_i32_0 : i32, i32
  }
  func.func @transform_6(%arg0: i32, %arg1: i32) -> (i32, i32, i32) {
    %c0_i32 = arith.constant 0 : i32
    %c0_i32_0 = arith.constant 0 : i32
    return %arg1, %arg0, %c0_i32 : i32, i32, i32
  }
  func.func @transform_7(%arg0: i32, %arg1: i32) -> (i32, i32) {
    %c0_i32 = arith.constant 0 : i32
    %c0_i32_0 = arith.constant 0 : i32
    return %arg0, %c0_i32 : i32, i32
  }
}

</mosaic_0001>

<llo_original>
// kernel: tpu_custom_call.1
$region0: #{tpu_custom_call.1}
  #allocation0 [shape = 'u32[]', space=smem, size = 0x4, offset = 0x4, fixed_abs, tag = 'smem constant byte address 0x4 - core index']
  #allocation1 [shape = 'u32[144,128]{1,0:T(1,128)}', space=vmem, size = 0x12000, scoped, tag = 'internal scratch']
  #allocation2 [shape = 'f32[16,128]{1,0:T(8,128)}', space=vmem, size = 0x2000, scoped, tag = 'scratch operand']
  #allocation3 [shape = 'f32[16,128]{1,0:T(8,128)}', space=vmem, size = 0x2000, scoped, tag = 'scratch operand']
  #allocation4 [shape = 'bf16[16,256]{1,0:T(8,128)(2,1)}', space=vmem, size = 0x2000, scoped, tag = 'scratch operand']
  #allocation12 [shape = 's32[]', space=sflag, size = 0x4, offset = 0, fixed_abs, tag = 'sflag constant byte address 0x0 - dummy sync flag']
  #allocation14 [shape = 's32[]', space=sflag, size = 0x4, offset = 0, fixed_abs, tag = 'sflag constant byte address 0x0 - dummy sync flag']
  %s0 = inlined_call_operand.vmem [shape: f32[24,32,1], index: 0, kind: input, shape index: {}]
  %s1 = inlined_call_operand.hbm [shape: bf16[24,32,128], index: 1, kind: input, shape index: {}]
  %s2 = inlined_call_operand.vmem [shape: f32[32,128], index: 2, kind: input, shape index: {}]
  %s3 = inlined_call_operand.vmem [shape: f32[32,128], index: 3, kind: input, shape index: {}]
  %s4 = inlined_call_operand.vmem [shape: bf16[256,512], index: 4, kind: input, shape index: {}]
  %s5 = inlined_call_operand.vmem [shape: f32[1,512], index: 5, kind: input, shape index: {}]
  %s6 = inlined_call_operand.hbm [shape: f32[24,32,128], index: 6, kind: output, shape index: {0}]
  %s7 = inlined_call_operand.hbm [shape: f32[32,128], index: 7, kind: output, shape index: {1}]
  %8 = xla_tuple %s6, %s7
  %s9 = sld [smem:[#allocation0]]
  $region111: #{tpu_custom_call.1} parent=0
    _
  %s11 = ssub.s32 1, %s9
  %s12 = scalar_select 0, %s11, %s9
  $region1: #{tpu_custom_call.1} parent=0
    #allocation5 [shape = 'u8[131072]{0}', space=vmem, size = 0x20000, scoped, tag = 'input window, operand 0']
    #allocation6 [shape = 'u8[65536]{0}', space=vmem, size = 0x10000, scoped, tag = 'input window, operand 1']
    #allocation7 [shape = 's32[2]{0}', space=sflag, size = 0x8, scoped, tag = 'scoped memory for tpu_custom_call.1']
    #allocation8 [shape = 's32[2]{0}', space=sflag, size = 0x8, scoped, tag = 'scoped memory for tpu_custom_call.1']
    #allocation9 [shape = 'u8[131072]{0}', space=vmem, size = 0x20000, scoped, tag = 'output window, operand 0']
    #allocation10 [shape = 'u8[16384]{0}', space=vmem, size = 0x4000, scoped, tag = 'output window, operand 1']
    #allocation11 [shape = 's32[2]{0}', space=sflag, size = 0x8, scoped, tag = 'scoped memory for tpu_custom_call.1']
    %13 = vsyncpa [#allocation7], 0
    %s14 = scalar_lea.sflag [#allocation7], 1
    %15 = vsyncpa %s14, 0
    %16 = vsyncpa [#allocation8], 0
    %s17 = scalar_lea.sflag [#allocation8], 1
    %18 = vsyncpa %s17, 0
    %19 = vsyncpa [#allocation11], 0
    %s20 = scalar_lea.sflag [#allocation11], 1
    %21 = vsyncpa %s20, 0
    loop: start=0, step=1, limit=8
    $region2: #{tpu_custom_call.1} parent=1 // loop_pre_header
      _
    $region3: #{tpu_custom_call.1} parent=1 // loop_header
      %s23 = sphi 0, %s27
      %p24 = scmp.ge.s32.totalorder %s23, 8
      %s30 = sphi 0, %s42
      %s31 = sphi 0, %s38
      %s32 = sphi 0, %s30
      %s33 = sphi 0, %s31
      %s34 = sphi 0, %s32
      %s35 = sphi 0, %s33
      %s47 = sphi 0, %s49
      %s50 = sphi 0, %s47
      %s51 = sphi 0, %s50
      %s67 = sphi 0, %s51
      %s75 = sphi 0, %s77
      %s78 = sphi 0, %s75
      %s79 = sphi 0, %s78
      %s95 = sphi 0, %s79
      %s101 = sphi 0, %s103
      %s104 = sphi 0, %s101
      %s105 = sphi 0, %s104
      %s121 = sphi 0, %s105
      %s127 = sphi 0, %s129
      %s130 = sphi 0, %s127
      %s131 = sphi 0, %s130
      %s147 = sphi 0, %s131
      %s151 = sphi 0, %s151
      %s153 = sphi 0, %s151
      %s154 = sphi 0, %s153
      %s168 = sphi 0, %s154
      %s172 = sphi 0, %s172
      %s174 = sphi 0, %s172
      %s175 = sphi 0, %s174
      %s189 = sphi 0, %s175
      %s197 = sphi 0, %s199
      %s200 = sphi 0, %s197
      %s201 = sphi 0, %s200
      %s217 = sphi 0, %s201
      %s223 = sphi 0, %s225
      %s226 = sphi 0, %s223
      %s227 = sphi 0, %s226
      %s243 = sphi 0, %s227
    $region4: #{tpu_custom_call.1} parent=1 // loop_header_branch
      %26 = sbr.rel (%p24) target = $region8
    $region5: #{tpu_custom_call.1} parent=1 // loop_body
      %s28 = ssub.s32 %s23, 1
      %s29 = ssub.s32 %s23, 2
      %s36 = sadd.s32 1, %s31
      %p37 = scmp.ge.s32.totalorder %s36, 3
      %s38 = scalar_select %p37, 0, %s36
      %s39 = sadd.s32 1, %s30
      %s40 = scalar_select %p37, %s39, %s30
      %p41 = scmp.ge.s32.totalorder %s40, 2
      %s42 = scalar_select %p41, 0, %s40
      %s43 = ssub.s32 %s31, %s38
      %s44 = ssub.s32 %s30, %s42
      %s45 = sor.u32 %s43, %s44
      %p46 = scmp.eq.s32.totalorder %s45, 0
      %s48 = sadd.s32 %s47, 1
      %s49 = scalar_select %p46, %s47, %s48
      %p52 = pneg %p46
      %p53 = scmp.eq.s32.totalorder %s23, 5
      %p54 = por %p52, %p53
      %p55 = scmp.ne.s32.totalorder %s47, %s50
      %p56 = scmp.eq.s32.totalorder %s23, 0
      %p57 = por %p55, %p56
      %p58 = scmp.ne.s32.totalorder %s47, %s50
      %p59 = scmp.eq.s32.totalorder %s28, 5
      %p60 = por %p58, %p59
      %p61 = scmp.ne.s32.totalorder %s50, %s51
      %p62 = scmp.eq.s32.totalorder %s28, 0
      %p63 = por %p61, %p62
      %p64 = scmp.ne.s32.totalorder %s50, %s51
      %p65 = scmp.eq.s32.totalorder %s29, 5
      %p66 = por %p64, %p65
      %p68 = scmp.ne.s32.totalorder %s51, %s67
      %p69 = scmp.eq.s32.totalorder %s29, 0
      %p70 = por %p68, %p69
      %s71 = ssub.s32 %s31, %s38
      %s72 = ssub.s32 %s30, %s42
      %s73 = sor.u32 %s71, %s72
      %p74 = scmp.eq.s32.totalorder %s73, 0
      %s76 = sadd.s32 %s75, 1
      %s77 = scalar_select %p74, %s75, %s76
      %p80 = pneg %p74
      %p81 = scmp.eq.s32.totalorder %s23, 5
      %p82 = por %p80, %p81
      %p83 = scmp.ne.s32.totalorder %s75, %s78
      %p84 = scmp.eq.s32.totalorder %s23, 0
      %p85 = por %p83, %p84
      %p86 = scmp.ne.s32.totalorder %s75, %s78
      %p87 = scmp.eq.s32.totalorder %s28, 5
      %p88 = por %p86, %p87
      %p89 = scmp.ne.s32.totalorder %s78, %s79
      %p90 = scmp.eq.s32.totalorder %s28, 0
      %p91 = por %p89, %p90
      %p92 = scmp.ne.s32.totalorder %s78, %s79
      %p93 = scmp.eq.s32.totalorder %s29, 5
      %p94 = por %p92, %p93
      %p96 = scmp.ne.s32.totalorder %s79, %s95
      %p97 = scmp.eq.s32.totalorder %s29, 0
      %p98 = por %p96, %p97
      %s99 = ssub.s32 %s30, %s42
      %p100 = scmp.eq.s32.totalorder %s99, 0
      %s102 = sadd.s32 %s101, 1
      %s103 = scalar_select %p100, %s101, %s102
      %p106 = pneg %p100
      %p107 = scmp.eq.s32.totalorder %s23, 5
      %p108 = por %p106, %p107
      %p109 = scmp.ne.s32.totalorder %s101, %s104
      %p110 = scmp.eq.s32.totalorder %s23, 0
      %p111 = por %p109, %p110
      %p112 = scmp.ne.s32.totalorder %s101, %s104
      %p113 = scmp.eq.s32.totalorder %s28, 5
      %p114 = por %p112, %p113
      %p115 = scmp.ne.s32.totalorder %s104, %s105
      %p116 = scmp.eq.s32.totalorder %s28, 0
      %p117 = por %p115, %p116
      %p118 = scmp.ne.s32.totalorder %s104, %s105
      %p119 = scmp.eq.s32.totalorder %s29, 5
      %p120 = por %p118, %p119
      %p122 = scmp.ne.s32.totalorder %s105, %s121
      %p123 = scmp.eq.s32.totalorder %s29, 0
      %p124 = por %p122, %p123
      %s125 = ssub.s32 %s30, %s42
      %p126 = scmp.eq.s32.totalorder %s125, 0
      %s128 = sadd.s32 %s127, 1
      %s129 = scalar_select %p126, %s127, %s128
      %p132 = pneg %p126
      %p133 = scmp.eq.s32.totalorder %s23, 5
      %p134 = por %p132, %p133
      %p135 = scmp.ne.s32.totalorder %s127, %s130
      %p136 = scmp.eq.s32.totalorder %s23, 0
      %p137 = por %p135, %p136
      %p138 = scmp.ne.s32.totalorder %s127, %s130
      %p139 = scmp.eq.s32.totalorder %s28, 5
      %p140 = por %p138, %p139
      %p141 = scmp.ne.s32.totalorder %s130, %s131
      %p142 = scmp.eq.s32.totalorder %s28, 0
      %p143 = por %p141, %p142
      %p144 = scmp.ne.s32.totalorder %s130, %s131
      %p145 = scmp.eq.s32.totalorder %s29, 5
      %p146 = por %p144, %p145
      %p148 = scmp.ne.s32.totalorder %s131, %s147
      %p149 = scmp.eq.s32.totalorder %s29, 0
      %p150 = por %p148, %p149
      %s152 = sadd.s32 %s151, 1
      %p155 = scmp.eq.s32.totalorder %s23, 5
      %p156 = scmp.ne.s32.totalorder %s151, %s153
      %p157 = scmp.eq.s32.totalorder %s23, 0
      %p158 = por %p156, %p157
      %p159 = scmp.ne.s32.totalorder %s151, %s153
      %p160 = scmp.eq.s32.totalorder %s28, 5
      %p161 = por %p159, %p160
      %p162 = scmp.ne.s32.totalorder %s153, %s154
      %p163 = scmp.eq.s32.totalorder %s28, 0
      %p164 = por %p162, %p163
      %p165 = scmp.ne.s32.totalorder %s153, %s154
      %p166 = scmp.eq.s32.totalorder %s29, 5
      %p167 = por %p165, %p166
      %p169 = scmp.ne.s32.totalorder %s154, %s168
      %p170 = scmp.eq.s32.totalorder %s29, 0
      %p171 = por %p169, %p170
      %s173 = sadd.s32 %s172, 1
      %p176 = scmp.eq.s32.totalorder %s23, 5
      %p177 = scmp.ne.s32.totalorder %s172, %s174
      %p178 = scmp.eq.s32.totalorder %s23, 0
      %p179 = por %p177, %p178
      %p180 = scmp.ne.s32.totalorder %s172, %s174
      %p181 = scmp.eq.s32.totalorder %s28, 5
      %p182 = por %p180, %p181
      %p183 = scmp.ne.s32.totalorder %s174, %s175
      %p184 = scmp.eq.s32.totalorder %s28, 0
      %p185 = por %p183, %p184
      %p186 = scmp.ne.s32.totalorder %s174, %s175
      %p187 = scmp.eq.s32.totalorder %s29, 5
      %p188 = por %p186, %p187
      %p190 = scmp.ne.s32.totalorder %s175, %s189
      %p191 = scmp.eq.s32.totalorder %s29, 0
      %p192 = por %p190, %p191
      %s193 = ssub.s32 %s31, %s38
      %s194 = ssub.s32 %s30, %s42
      %s195 = sor.u32 %s193, %s194
      %p196 = scmp.eq.s32.totalorder %s195, 0
      %s198 = sadd.s32 %s197, 1
      %s199 = scalar_select %p196, %s197, %s198
      %p202 = pneg %p196
      %p203 = scmp.eq.s32.totalorder %s23, 5
      %p204 = por %p202, %p203
      %p205 = scmp.ne.s32.totalorder %s197, %s200
      %p206 = scmp.eq.s32.totalorder %s23, 0
      %p207 = por %p205, %p206
      %p208 = scmp.ne.s32.totalorder %s197, %s200
      %p209 = scmp.eq.s32.totalorder %s28, 5
      %p210 = por %p208, %p209
      %p211 = scmp.ne.s32.totalorder %s200, %s201
      %p212 = scmp.eq.s32.totalorder %s28, 0
      %p213 = por %p211, %p212
      %p214 = scmp.ne.s32.totalorder %s200, %s201
      %p215 = scmp.eq.s32.totalorder %s29, 5
      %p216 = por %p214, %p215
      %p218 = scmp.ne.s32.totalorder %s201, %s217
      %p219 = scmp.eq.s32.totalorder %s29, 0
      %p220 = por %p218, %p219
      %s221 = ssub.s32 %s30, %s42
      %p222 = scmp.eq.s32.totalorder %s221, 0
      %s224 = sadd.s32 %s223, 1
      %s225 = scalar_select %p222, %s223, %s224
      %p228 = pneg %p222
      %p229 = scmp.eq.s32.totalorder %s23, 5
      %p230 = por %p228, %p229
      %p231 = scmp.ne.s32.totalorder %s223, %s226
      %p232 = scmp.eq.s32.totalorder %s23, 0
      %p233 = por %p231, %p232
      %p234 = scmp.ne.s32.totalorder %s223, %s226
      %p235 = scmp.eq.s32.totalorder %s28, 5
      %p236 = por %p234, %p235
      %p237 = scmp.ne.s32.totalorder %s226, %s227
      %p238 = scmp.eq.s32.totalorder %s28, 0
      %p239 = por %p237, %p238
      %p240 = scmp.ne.s32.totalorder %s226, %s227
      %p241 = scmp.eq.s32.totalorder %s29, 5
      %p242 = por %p240, %p241
      %p244 = scmp.ne.s32.totalorder %s227, %s243
      %p245 = scmp.eq.s32.totalorder %s29, 0
      %p246 = por %p244, %p245
      %p247 = scmp.le.s32.totalorder 1, %s23
      %p248 = scmp.lt.s32.totalorder %s23, 7
      %p249 = pnand %p247, %p248
      %p250 = pneg %p249
      // Predicated region
      $region9: #{tpu_custom_call.1} parent=5 // pred_check
        _
      $region10: #{tpu_custom_call.1} parent=5 // pred_check_branch
        %252 = sbr.rel (%p249) target = $region12
      $region11: #{tpu_custom_call.1} parent=5 // pred_region
        %s253 = ssub.s32 %s23, 1
        // Predicated region
        $region13: #{tpu_custom_call.1} parent=11 // pred_check
          %p254 = pneg %p164
        $region14: #{tpu_custom_call.1} parent=11 // pred_check_branch
          %256 = sbr.rel (%p254) target = $region16
        $region15: #{tpu_custom_call.1} parent=11 // pred_region
          _
        $region16: #{tpu_custom_call.1} parent=11 // pred_fallthru
          _
        // Predicated region
        $region17: #{tpu_custom_call.1} parent=11 // pred_check
          %p257 = pneg %p185
        $region18: #{tpu_custom_call.1} parent=11 // pred_check_branch
          %259 = sbr.rel (%p257) target = $region20
        $region19: #{tpu_custom_call.1} parent=11 // pred_region
          _
        $region20: #{tpu_custom_call.1} parent=11 // pred_fallthru
          _
      $region12: #{tpu_custom_call.1} parent=5 // pred_fallthru
        _
      %p260 = scmp.lt.s32.totalorder %s23, 6
      // Predicated region
      $region21: #{tpu_custom_call.1} parent=5 // pred_check
        %p261 = pneg %p260
      $region22: #{tpu_custom_call.1} parent=5 // pred_check_branch
        %263 = sbr.rel (%p261) target = $region24
      $region23: #{tpu_custom_call.1} parent=5 // pred_region
        // Predicated region
        $region25: #{tpu_custom_call.1} parent=23 // pred_check
          %p264 = pneg %p57
        $region26: #{tpu_custom_call.1} parent=23 // pred_check_branch
          %266 = sbr.rel (%p264) target = $region28
        $region27: #{tpu_custom_call.1} parent=23 // pred_region
          %s267 = sand.u32 %s47, 1
          %s268 = sand.u32 %s47, 1
          %s269 = smul.addr %s268, 128
          %s270 = scalar_lea.vmem [#allocation5], %s269
          %s271 = smul.u32 8, %s31
          %s272 = smul.u32 2, %s30
          %s273 = smul.addr %s271, 4
          %s274 = sadd.s32 %s272, %s273
          %s275 = smul.addr %s274, 8
          %s276 = scalar_lea.vmem %s0, %s275
          // Predicated region
          $region29: #{tpu_custom_call.1} parent=27 // pred_check
            _
          $region30: #{tpu_custom_call.1} parent=27 // pred_check_branch
            %278 = sbr.rel (0) target = $region32
          $region31: #{tpu_custom_call.1} parent=27 // pred_region
            // Predicated region
            $region33: #{tpu_custom_call.1} parent=31 // pred_check
              _
            $region34: #{tpu_custom_call.1} parent=31 // pred_check_branch
              %280 = sbr.rel (0) target = $region36
            $region35: #{tpu_custom_call.1} parent=31 // pred_region
              // Predicated region
              $region48: #{tpu_custom_call.1} parent=35 // pred_check
                _
              $region49: #{tpu_custom_call.1} parent=35 // pred_check_branch
                %326 = sbr.rel (0) target = $region51
              $region50: #{tpu_custom_call.1} parent=35 // pred_region
                loop: start=0, step=1, limit=1
                $region52: #{tpu_custom_call.1} parent=50 // loop_pre_header
                  _
                $region53: #{tpu_custom_call.1} parent=50 // loop_header
                  %s328 = sphi 0, %s332
                  %p329 = scmp.ge.s32.totalorder %s328, 1
                  %s333 = sphi %s276, %s276
                  %s334 = sphi %s270, %s270
                $region54: #{tpu_custom_call.1} parent=50 // loop_header_branch
                  %331 = sbr.rel (%p329) target = $region58
                $region55: #{tpu_custom_call.1} parent=50 // loop_body
                  %v335 = vld [vmem:[%s333] sm:$0xff]
                  %336 = vst [vmem:[%s334] sm:$0xff] %v335
                  %v337 = vld [vmem:[%s333 + $0x8] sm:$0xff]
                  %338 = vst [vmem:[%s334 + $0x8] sm:$0xff] %v337
                  %v339 = vld [vmem:[%s333 + $0x20] sm:$0xff]
                  %340 = vst [vmem:[%s334 + $0x10] sm:$0xff] %v339
                  %v341 = vld [vmem:[%s333 + $0x28] sm:$0xff]
                  %342 = vst [vmem:[%s334 + $0x18] sm:$0xff] %v341
                  %v343 = vld [vmem:[%s333 + $0x40] sm:$0xff]
                  %344 = vst [vmem:[%s334 + $0x20] sm:$0xff] %v343
                  %v345 = vld [vmem:[%s333 + $0x48] sm:$0xff]
                  %346 = vst [vmem:[%s334 + $0x28] sm:$0xff] %v345
                  %v347 = vld [vmem:[%s333 + $0x60] sm:$0xff]
                  %348 = vst [vmem:[%s334 + $0x30] sm:$0xff] %v347
                  %v349 = vld [vmem:[%s333 + $0x68] sm:$0xff]
                  %350 = vst [vmem:[%s334 + $0x38] sm:$0xff] %v349
                  %v351 = vld [vmem:[%s333 + $0x80] sm:$0xff]
                  %352 = vst [vmem:[%s334 + $0x40] sm:$0xff] %v351
                  %v353 = vld [vmem:[%s333 + $0x88] sm:$0xff]
                  %354 = vst [vmem:[%s334 + $0x48] sm:$0xff] %v353
                  %v355 = vld [vmem:[%s333 + $0xa0] sm:$0xff]
                  %356 = vst [vmem:[%s334 + $0x50] sm:$0xff] %v355
                  %v357 = vld [vmem:[%s333 + $0xa8] sm:$0xff]
                  %358 = vst [vmem:[%s334 + $0x58] sm:$0xff] %v357
                  %v359 = vld [vmem:[%s333 + $0xc0] sm:$0xff]
                  %360 = vst [vmem:[%s334 + $0x60] sm:$0xff] %v359
                  %v361 = vld [vmem:[%s333 + $0xc8] sm:$0xff]
                  %362 = vst [vmem:[%s334 + $0x68] sm:$0xff] %v361
                  %v363 = vld [vmem:[%s333 + $0xe0] sm:$0xff]
                  %364 = vst [vmem:[%s334 + $0x70] sm:$0xff] %v363
                  %v365 = vld [vmem:[%s333 + $0xe8] sm:$0xff]
                  %366 = vst [vmem:[%s334 + $0x78] sm:$0xff] %v365
                $region56: #{tpu_custom_call.1} parent=50 // loop_footer
                  %s332 = sadd.s32 1, %s328
                $region57: #{tpu_custom_call.1} parent=50 // loop_footer_branch
                  %327 = sbr.rel target = $region53
                $region58: #{tpu_custom_call.1} parent=50 // loop_exit
                  _
              $region51: #{tpu_custom_call.1} parent=35 // pred_fallthru
                _
              // Predicated region
              $region59: #{tpu_custom_call.1} parent=35 // pred_check
                _
              $region60: #{tpu_custom_call.1} parent=35 // pred_check_branch
                %368 = sbr.rel target = $region62
              $region61: #{tpu_custom_call.1} parent=35 // pred_region
                _
              $region62: #{tpu_custom_call.1} parent=35 // pred_fallthru
                _
            $region36: #{tpu_custom_call.1} parent=31 // pred_fallthru
              _
            // Predicated region
            $region37: #{tpu_custom_call.1} parent=31 // pred_check
              _
            $region38: #{tpu_custom_call.1} parent=31 // pred_check_branch
              %282 = sbr.rel target = $region40
            $region39: #{tpu_custom_call.1} parent=31 // pred_region
              %s284 = ssub.s32 256, 1
              loop: start=0, step=1, limit=1
              $region41: #{tpu_custom_call.1} parent=39 // loop_pre_header
                _
              $region42: #{tpu_custom_call.1} parent=39 // loop_header
                %s286 = sphi 0, %s290
                %p287 = scmp.ge.s32.totalorder %s286, 1
                %s291 = sphi %s276, %s276
                %s292 = sphi %s270, %s270
              $region43: #{tpu_custom_call.1} parent=39 // loop_header_branch
                %289 = sbr.rel (%p287) target = $region47
              $region44: #{tpu_custom_call.1} parent=39 // loop_body
                %v293 = vld [vmem:[%s291] sm:%s284]
                %294 = vst [vmem:[%s292] sm:%s284] %v293
                %v295 = vld [vmem:[%s291 + $0x8] sm:%s284]
                %296 = vst [vmem:[%s292 + $0x8] sm:%s284] %v295
                %v297 = vld [vmem:[%s291 + $0x20] sm:%s284]
                %298 = vst [vmem:[%s292 + $0x10] sm:%s284] %v297
                %v299 = vld [vmem:[%s291 + $0x28] sm:%s284]
                %300 = vst [vmem:[%s292 + $0x18] sm:%s284] %v299
                %v301 = vld [vmem:[%s291 + $0x40] sm:%s284]
                %302 = vst [vmem:[%s292 + $0x20] sm:%s284] %v301
                %v303 = vld [vmem:[%s291 + $0x48] sm:%s284]
                %304 = vst [vmem:[%s292 + $0x28] sm:%s284] %v303
                %v305 = vld [vmem:[%s291 + $0x60] sm:%s284]
                %306 = vst [vmem:[%s292 + $0x30] sm:%s284] %v305
                %v307 = vld [vmem:[%s291 + $0x68] sm:%s284]
                %308 = vst [vmem:[%s292 + $0x38] sm:%s284] %v307
                %v309 = vld [vmem:[%s291 + $0x80] sm:%s284]
                %310 = vst [vmem:[%s292 + $0x40] sm:%s284] %v309
                %v311 = vld [vmem:[%s291 + $0x88] sm:%s284]
                %312 = vst [vmem:[%s292 + $0x48] sm:%s284] %v311
                %v313 = vld [vmem:[%s291 + $0xa0] sm:%s284]
                %314 = vst [vmem:[%s292 + $0x50] sm:%s284] %v313
                %v315 = vld [vmem:[%s291 + $0xa8] sm:%s284]
                %316 = vst [vmem:[%s292 + $0x58] sm:%s284] %v315
                %v317 = vld [vmem:[%s291 + $0xc0] sm:%s284]
                %318 = vst [vmem:[%s292 + $0x60] sm:%s284] %v317
                %v319 = vld [vmem:[%s291 + $0xc8] sm:%s284]
                %320 = vst [vmem:[%s292 + $0x68] sm:%s284] %v319
                %v321 = vld [vmem:[%s291 + $0xe0] sm:%s284]
                %322 = vst [vmem:[%s292 + $0x70] sm:%s284] %v321
                %v323 = vld [vmem:[%s291 + $0xe8] sm:%s284]
                %324 = vst [vmem:[%s292 + $0x78] sm:%s284] %v323
              $region45: #{tpu_custom_call.1} parent=39 // loop_footer
                %s290 = sadd.s32 1, %s286
              $region46: #{tpu_custom_call.1} parent=39 // loop_footer_branch
                %285 = sbr.rel target = $region42
              $region47: #{tpu_custom_call.1} parent=39 // loop_exit
                _
            $region40: #{tpu_custom_call.1} parent=31 // pred_fallthru
              _
          $region32: #{tpu_custom_call.1} parent=27 // pred_fallthru
            _
          %369 = vnop
        $region28: #{tpu_custom_call.1} parent=23 // pred_fallthru
          _
        // Predicated region
        $region63: #{tpu_custom_call.1} parent=23 // pred_check
          %p370 = pneg %p85
        $region64: #{tpu_custom_call.1} parent=23 // pred_check_branch
          %372 = sbr.rel (%p370) target = $region66
        $region65: #{tpu_custom_call.1} parent=23 // pred_region
          #allocation13 [shape = 'u32[6]{0}', space=smem, size = 0x18, scoped, tag = 'DMA stride descriptor']
          %s373 = sand.u32 %s75, 1
          %s374 = scalar_lea.sflag [#allocation7], %s373
          %s375 = sand.u32 %s75, 1
          %s376 = smul.addr %s375, 64
          %s377 = scalar_lea.vmem [#allocation6], %s376
          %s378 = smul.u32 8, %s31
          %s379 = smul.u32 2, %s30
          %s381 = ssub.s32 1024, 1024
          %382 = vsyncadd %s374, %s381
          %s383 = smul.addr %s378, 4
          %s384 = sadd.s32 %s379, %s383
          %s385 = smul.addr %s384, 64
          %s386 = scalar_lea.hbm %s1, %s385
          %s388 = sshll.u32 1, 14
          %s389 = sxor.u32 4294967295, %s388
          %s391 = sld [smem:[#allocation0]]
          %s392 = sadd.s32 2, %s391
          %s394 = sshll.u32 7, 26
          %s395 = sxor.u32 4294967295, %s394
          %s396 = sand.u32 0, %s395
          %s397 = sshll.u32 %s392, 26
          %s398 = sor.u32 %s396, %s397
          %s399 = sshll.u32 %s377, 4
          %s400 = int_to_ptr.vmem [resolvable:$true] %s399
          %406 = sst [smem:[#allocation13]] 256
          %s407 = scalar_lea.smem [#allocation13], 1
          %408 = sst [smem:[%s407]] 128
          %s409 = scalar_lea.smem [#allocation13], 2
          %410 = sst [smem:[%s409]] 2
          %s411 = scalar_lea.smem [#allocation13], 3
          %412 = sst [smem:[%s411]] 64
          %s413 = scalar_lea.smem [#allocation13], 4
          %414 = sst [smem:[%s413]] 64
          %s415 = scalar_lea.smem [#allocation13], 5
          %416 = sst [smem:[%s415]] 4
          %418 = dma.general %s386, 1024, %s400, %s374, 131072, [#allocation13], %s398, 0
        $region66: #{tpu_custom_call.1} parent=23 // pred_fallthru
          _
        // Predicated region
        $region67: #{tpu_custom_call.1} parent=23 // pred_check
          %p419 = pneg %p111
        $region68: #{tpu_custom_call.1} parent=23 // pred_check_branch
          %421 = sbr.rel (%p419) target = $region70
        $region69: #{tpu_custom_call.1} parent=23 // pred_region
          %s422 = smul.u32 2, %s30
          %p423 = scmp.lt.s32.totalorder %s422, 3
          %s424 = scalar_select %p423, %s422, 3
          %s425 = smul.addr %s424, 8
          %s426 = scalar_lea.vmem %s2, %s425
          %s427 = smul.u32 2, %s30
        $region70: #{tpu_custom_call.1} parent=23 // pred_fallthru
          _
        // Predicated region
        $region71: #{tpu_custom_call.1} parent=23 // pred_check
          %p428 = pneg %p137
        $region72: #{tpu_custom_call.1} parent=23 // pred_check_branch
          %430 = sbr.rel (%p428) target = $region74
        $region73: #{tpu_custom_call.1} parent=23 // pred_region
          %s431 = smul.u32 2, %s30
          %p432 = scmp.lt.s32.totalorder %s431, 3
          %s433 = scalar_select %p432, %s431, 3
          %s434 = smul.addr %s433, 8
          %s435 = scalar_lea.vmem %s3, %s434
          %s436 = smul.u32 2, %s30
        $region74: #{tpu_custom_call.1} parent=23 // pred_fallthru
          _
      $region24: #{tpu_custom_call.1} parent=5 // pred_fallthru
        _
      %p437 = scmp.le.s32.totalorder 1, %s23
      %p438 = scmp.lt.s32.totalorder %s23, 7
      %p439 = pnand %p437, %p438
      %p440 = pneg %p439
      // Predicated region
      $region75: #{tpu_custom_call.1} parent=5 // pred_check
        _
      $region76: #{tpu_custom_call.1} parent=5 // pred_check_branch
        %442 = sbr.rel (%p439) target = $region78
      $region77: #{tpu_custom_call.1} parent=5 // pred_region
        %s443 = ssub.s32 %s23, 1
        %s444 = sand.u32 %s50, 1
        %s445 = sand.u32 %s50, 1
        %s446 = smul.addr %s445, 128
        %s447 = scalar_lea.vmem [#allocation5], %s446
        // Predicated region
        $region79: #{tpu_custom_call.1} parent=77 // pred_check
          %p448 = pneg %p63
        $region80: #{tpu_custom_call.1} parent=77 // pred_check_branch
          %450 = sbr.rel (%p448) target = $region82
        $region81: #{tpu_custom_call.1} parent=77 // pred_region
          _
        $region82: #{tpu_custom_call.1} parent=77 // pred_fallthru
          _
        %s451 = sand.u32 %s78, 1
        %s452 = scalar_lea.sflag [#allocation7], %s451
        %s453 = sand.u32 %s78, 1
        %s454 = smul.addr %s453, 64
        %s455 = scalar_lea.vmem [#allocation6], %s454
        // Predicated region
        $region83: #{tpu_custom_call.1} parent=77 // pred_check
          %p456 = pneg %p91
        $region84: #{tpu_custom_call.1} parent=77 // pred_check_branch
          %458 = sbr.rel (%p456) target = $region86
        $region85: #{tpu_custom_call.1} parent=77 // pred_region
          %459 = dma.done %s452, 1024
        $region86: #{tpu_custom_call.1} parent=77 // pred_fallthru
          _
        %s460 = sand.u32 %s50, 1
        %s461 = sand.u32 %s50, 1
        %s462 = smul.addr %s461, 128
        %s463 = scalar_lea.vmem [#allocation5], %s462
        %p464 = pneg %p63
        %p465 = pneg %p60
        %s466 = sand.u32 %s78, 1
        %s467 = scalar_lea.sflag [#allocation7], %s466
        %s468 = sand.u32 %s78, 1
        %s469 = smul.addr %s468, 64
        %s470 = scalar_lea.vmem [#allocation6], %s469
        %p471 = pneg %p91
        %p472 = pneg %p88
        %s473 = smul.u32 2, %s32
        %p474 = scmp.lt.s32.totalorder %s473, 3
        %s475 = scalar_select %p474, %s473, 3
        %s476 = smul.addr %s475, 8
        %s477 = scalar_lea.vmem %s2, %s476
        %p478 = pneg %p117
        %p479 = pneg %p114
        %s480 = smul.u32 2, %s32
        %p481 = scmp.lt.s32.totalorder %s480, 3
        %s482 = scalar_select %p481, %s480, 3
        %s483 = smul.addr %s482, 8
        %s484 = scalar_lea.vmem %s3, %s483
        %p485 = pneg %p143
        %p486 = pneg %p140
        %p487 = pneg %p164
        %p488 = pneg %p161
        %p489 = pneg %p185
        %p490 = pneg %p182
        %p491 = pneg %p213
        %p492 = pneg %p210
        %s493 = sand.u32 %s200, 1
        %s494 = scalar_lea.sflag [#allocation8], %s493
        %s495 = sand.u32 %s200, 1
        %s496 = smul.addr %s495, 128
        %s497 = scalar_lea.vmem [#allocation9], %s496
        %p498 = pneg %p239
        %p499 = pneg %p236
        %s500 = sand.u32 %s226, 1
        %s501 = scalar_lea.sflag [#allocation11], %s500
        %s502 = sand.u32 %s226, 1
        %s503 = smul.addr %s502, 16
        %s504 = scalar_lea.vmem [#allocation10], %s503
        %s505 = smul.u32 8, %s33
        %s506 = smul.u32 2, %s32
        %s507 = smul.u32 8, %s33
        %s508 = smul.u32 2, %s32
        %s509 = smul.u32 2, %s32
        %p510 = scmp.lt.s32.totalorder %s509, 3
        %s511 = scalar_select %p510, %s509, 3
        %s512 = smul.addr %s511, 8
        %s513 = scalar_lea.vmem %s2, %s512
        %s514 = smul.u32 2, %s32
        %s515 = smul.u32 2, %s32
        %p516 = scmp.lt.s32.totalorder %s515, 3
        %s517 = scalar_select %p516, %s515, 3
        %s518 = smul.addr %s517, 8
        %s519 = scalar_lea.vmem %s3, %s518
        %s520 = smul.u32 2, %s32
        %s521 = smul.u32 8, %s33
        %s522 = smul.u32 2, %s32
        %s523 = smul.u32 2, %s32
        %p524 = scmp.eq.s32.totalorder %s33, 0
        // Predicated region
        $region87: #{tpu_custom_call.1} parent=77 // pred_check
          %p525 = pneg %p524
        $region88: #{tpu_custom_call.1} parent=77 // pred_check_branch
          %527 = sbr.rel (%p525) target = $region90
        $region89: #{tpu_custom_call.1} parent=77 // pred_region
          %v528 = vld [vmem:[%s513] sm:$0xff]
          %v529 = vld [vmem:[%s513 + $0x8] sm:$0xff]
          %530 = vst [vmem:[#allocation2] sm:$0xff] %v528
          %531 = vst [vmem:[#allocation2 + $0x8] sm:$0xff] %v529
          %v532 = vld [vmem:[%s519] sm:$0xff]
          %v533 = vld [vmem:[%s519 + $0x8] sm:$0xff]
          %534 = vst [vmem:[#allocation3] sm:$0xff] %v532
          %535 = vst [vmem:[#allocation3 + $0x8] sm:$0xff] %v533
          %v536 = vld [vmem:[%s513] sm:$0xff]
          %v537 = vld [vmem:[%s513 + $0x8] sm:$0xff]
          %v538 = vpack.c.bf16 %v537, %v536
          %v540 = vunpack.c.l.b16 %v538
          %v541 = vunpack.c.h.b16 %v538
          %v542 = vpack.c.b16 %v540, %v540
          %v543 = vpack.c.b16 %v541, %v541
          %546 = vst [vmem:[#allocation4 + $0x4] sm:$0xf] %v542
          %547 = vst [vmem:[#allocation4 + $0xc] sm:$0xf] %v543
        $region90: #{tpu_custom_call.1} parent=77 // pred_fallthru
          _
        %v548 = vld [vmem:[#allocation2] sm:$0xff]
        %v549 = vld [vmem:[#allocation2 + $0x8] sm:$0xff]
        %v550 = vld [vmem:[#allocation3] sm:$0xff]
        %v551 = vld [vmem:[#allocation3 + $0x8] sm:$0xff]
        %v552 = vld [vmem:[%s455] sm:$0xf]
        %v553 = vld [vmem:[%s455 + $0x4] sm:$0xf]
        %554 = vst [vmem:[#allocation4] sm:$0xf] %v552
        %555 = vst [vmem:[#allocation4 + $0x8] sm:$0xf] %v553
        %v556 = vld [vmem:[#allocation4] sm:$0xff]
        %v557 = vld [vmem:[#allocation4 + $0x8] sm:$0xff]
        %v558 = vld [vmem:[%s4] sm:$0xff]
        %v559 = vld [vmem:[%s4 + $0x8] sm:$0xff]
        %v560 = vld [vmem:[%s4 + $0x10] sm:$0xff]
        %v561 = vld [vmem:[%s4 + $0x18] sm:$0xff]
        %v562 = vld [vmem:[%s4 + $0x20] sm:$0xff]
        %v563 = vld [vmem:[%s4 + $0x28] sm:$0xff]
        %v564 = vld [vmem:[%s4 + $0x30] sm:$0xff]
        %v565 = vld [vmem:[%s4 + $0x38] sm:$0xff]
        %v566 = vld [vmem:[%s4 + $0x40] sm:$0xff]
        %v567 = vld [vmem:[%s4 + $0x48] sm:$0xff]
        %v568 = vld [vmem:[%s4 + $0x50] sm:$0xff]
        %v569 = vld [vmem:[%s4 + $0x58] sm:$0xff]
        %v570 = vld [vmem:[%s4 + $0x60] sm:$0xff]
        %v571 = vld [vmem:[%s4 + $0x68] sm:$0xff]
        %v572 = vld [vmem:[%s4 + $0x70] sm:$0xff]
        %v573 = vld [vmem:[%s4 + $0x78] sm:$0xff]
        %v574 = vld [vmem:[%s4 + $0x80] sm:$0xff]
        %v575 = vld [vmem:[%s4 + $0x88] sm:$0xff]
        %v576 = vld [vmem:[%s4 + $0x90] sm:$0xff]
        %v577 = vld [vmem:[%s4 + $0x98] sm:$0xff]
        %v578 = vld [vmem:[%s4 + $0xa0] sm:$0xff]
        %v579 = vld [vmem:[%s4 + $0xa8] sm:$0xff]
        %v580 = vld [vmem:[%s4 + $0xb0] sm:$0xff]
        %v581 = vld [vmem:[%s4 + $0xb8] sm:$0xff]
        %v582 = vld [vmem:[%s4 + $0xc0] sm:$0xff]
        %v583 = vld [vmem:[%s4 + $0xc8] sm:$0xff]
        %v584 = vld [vmem:[%s4 + $0xd0] sm:$0xff]
        %v585 = vld [vmem:[%s4 + $0xd8] sm:$0xff]
        %v586 = vld [vmem:[%s4 + $0xe0] sm:$0xff]
        %v587 = vld [vmem:[%s4 + $0xe8] sm:$0xff]
        %v588 = vld [vmem:[%s4 + $0xf0] sm:$0xff]
        %v589 = vld [vmem:[%s4 + $0xf8] sm:$0xff]
        %v590 = vld [vmem:[%s4 + $0x100] sm:$0xff]
        %v591 = vld [vmem:[%s4 + $0x108] sm:$0xff]
        %v592 = vld [vmem:[%s4 + $0x110] sm:$0xff]
        %v593 = vld [vmem:[%s4 + $0x118] sm:$0xff]
        %v594 = vld [vmem:[%s4 + $0x120] sm:$0xff]
        %v595 = vld [vmem:[%s4 + $0x128] sm:$0xff]
        %v596 = vld [vmem:[%s4 + $0x130] sm:$0xff]
        %v597 = vld [vmem:[%s4 + $0x138] sm:$0xff]
        %v598 = vld [vmem:[%s4 + $0x140] sm:$0xff]
        %v599 = vld [vmem:[%s4 + $0x148] sm:$0xff]
        %v600 = vld [vmem:[%s4 + $0x150] sm:$0xff]
        %v601 = vld [vmem:[%s4 + $0x158] sm:$0xff]
        %v602 = vld [vmem:[%s4 + $0x160] sm:$0xff]
        %v603 = vld [vmem:[%s4 + $0x168] sm:$0xff]
        %v604 = vld [vmem:[%s4 + $0x170] sm:$0xff]
        %v605 = vld [vmem:[%s4 + $0x178] sm:$0xff]
        %v606 = vld [vmem:[%s4 + $0x180] sm:$0xff]
        %v607 = vld [vmem:[%s4 + $0x188] sm:$0xff]
        %v608 = vld [vmem:[%s4 + $0x190] sm:$0xff]
        %v609 = vld [vmem:[%s4 + $0x198] sm:$0xff]
        %v610 = vld [vmem:[%s4 + $0x1a0] sm:$0xff]
        %v611 = vld [vmem:[%s4 + $0x1a8] sm:$0xff]
        %v612 = vld [vmem:[%s4 + $0x1b0] sm:$0xff]
        %v613 = vld [vmem:[%s4 + $0x1b8] sm:$0xff]
        %v614 = vld [vmem:[%s4 + $0x1c0] sm:$0xff]
        %v615 = vld [vmem:[%s4 + $0x1c8] sm:$0xff]
        %v616 = vld [vmem:[%s4 + $0x1d0] sm:$0xff]
        %v617 = vld [vmem:[%s4 + $0x1d8] sm:$0xff]
        %v618 = vld [vmem:[%s4 + $0x1e0] sm:$0xff]
        %v619 = vld [vmem:[%s4 + $0x1e8] sm:$0xff]
        %v620 = vld [vmem:[%s4 + $0x1f0] sm:$0xff]
        %v621 = vld [vmem:[%s4 + $0x1f8] sm:$0xff]
        %v622 = vld [vmem:[%s5] sm:$0xf]
        %v624 = vlaneseq
        %v625 = vshrl.u32 %v624, 7
        %v626 = vsub.s32 0, %v625
        %v627 = vrot.slane %v622, %v626
        %v628 = vlaneseq
        %v629 = vshrl.u32 %v628, 7
        %v630 = vsub.s32 1, %v629
        %v631 = vrot.slane %v622, %v630
        %v632 = vlaneseq
        %v633 = vshrl.u32 %v632, 7
        %v634 = vsub.s32 2, %v633
        %v635 = vrot.slane %v622, %v634
        %v636 = vlaneseq
        %v637 = vshrl.u32 %v636, 7
        %v638 = vsub.s32 3, %v637
        %v639 = vrot.slane %v622, %v638
        %v646 = vunpack.c.l.b16 %v556
        %v647 = vunpack.c.h.b16 %v556
        %v648 = vunpack.c.l.b16 %v557
        %v649 = vunpack.c.h.b16 %v557
        %v650 = vpack.c.b16 %v648, %v646
        %v651 = vpack.c.b16 %v649, %v647
        %v718 = vunpack.c.l.b16 %v558
        %v719 = vunpack.c.h.b16 %v558
        %v720 = vunpack.c.l.b16 %v559
        %v721 = vunpack.c.h.b16 %v559
        %v722 = vunpack.c.l.b16 %v560
        %v723 = vunpack.c.h.b16 %v560
        %v724 = vunpack.c.l.b16 %v561
        %v725 = vunpack.c.h.b16 %v561
        %v726 = vunpack.c.l.b16 %v562
        %v727 = vunpack.c.h.b16 %v562
        %v728 = vunpack.c.l.b16 %v563
        %v729 = vunpack.c.h.b16 %v563
        %v730 = vunpack.c.l.b16 %v564
        %v731 = vunpack.c.h.b16 %v564
        %v732 = vunpack.c.l.b16 %v565
        %v733 = vunpack.c.h.b16 %v565
        %v734 = vunpack.c.l.b16 %v566
        %v735 = vunpack.c.h.b16 %v566
        %v736 = vunpack.c.l.b16 %v567
        %v737 = vunpack.c.h.b16 %v567
        %v738 = vunpack.c.l.b16 %v568
        %v739 = vunpack.c.h.b16 %v568
        %v740 = vunpack.c.l.b16 %v569
        %v741 = vunpack.c.h.b16 %v569
        %v742 = vunpack.c.l.b16 %v570
        %v743 = vunpack.c.h.b16 %v570
        %v744 = vunpack.c.l.b16 %v571
        %v745 = vunpack.c.h.b16 %v571
        %v746 = vunpack.c.l.b16 %v572
        %v747 = vunpack.c.h.b16 %v572
        %v748 = vunpack.c.l.b16 %v573
        %v749 = vunpack.c.h.b16 %v573
        %v750 = vunpack.c.l.b16 %v574
        %v751 = vunpack.c.h.b16 %v574
        %v752 = vunpack.c.l.b16 %v575
        %v753 = vunpack.c.h.b16 %v575
        %v754 = vunpack.c.l.b16 %v576
        %v755 = vunpack.c.h.b16 %v576
        %v756 = vunpack.c.l.b16 %v577
        %v757 = vunpack.c.h.b16 %v577
        %v758 = vunpack.c.l.b16 %v578
        %v759 = vunpack.c.h.b16 %v578
        %v760 = vunpack.c.l.b16 %v579
        %v761 = vunpack.c.h.b16 %v579
        %v762 = vunpack.c.l.b16 %v580
        %v763 = vunpack.c.h.b16 %v580
        %v764 = vunpack.c.l.b16 %v581
        %v765 = vunpack.c.h.b16 %v581
        %v766 = vunpack.c.l.b16 %v582
        %v767 = vunpack.c.h.b16 %v582
        %v768 = vunpack.c.l.b16 %v583
        %v769 = vunpack.c.h.b16 %v583
        %v770 = vunpack.c.l.b16 %v584
        %v771 = vunpack.c.h.b16 %v584
        %v772 = vunpack.c.l.b16 %v585
        %v773 = vunpack.c.h.b16 %v585
        %v774 = vunpack.c.l.b16 %v586
        %v775 = vunpack.c.h.b16 %v586
        %v776 = vunpack.c.l.b16 %v587
        %v777 = vunpack.c.h.b16 %v587
        %v778 = vunpack.c.l.b16 %v588
        %v779 = vunpack.c.h.b16 %v588
        %v780 = vunpack.c.l.b16 %v589
        %v781 = vunpack.c.h.b16 %v589
        %v782 = vunpack.c.l.b16 %v590
        %v783 = vunpack.c.h.b16 %v590
        %v784 = vunpack.c.l.b16 %v591
        %v785 = vunpack.c.h.b16 %v591
        %v786 = vunpack.c.l.b16 %v592
        %v787 = vunpack.c.h.b16 %v592
        %v788 = vunpack.c.l.b16 %v593
        %v789 = vunpack.c.h.b16 %v593
        %v790 = vunpack.c.l.b16 %v594
        %v791 = vunpack.c.h.b16 %v594
        %v792 = vunpack.c.l.b16 %v595
        %v793 = vunpack.c.h.b16 %v595
        %v794 = vunpack.c.l.b16 %v596
        %v795 = vunpack.c.h.b16 %v596
        %v796 = vunpack.c.l.b16 %v597
        %v797 = vunpack.c.h.b16 %v597
        %v798 = vunpack.c.l.b16 %v598
        %v799 = vunpack.c.h.b16 %v598
        %v800 = vunpack.c.l.b16 %v599
        %v801 = vunpack.c.h.b16 %v599
        %v802 = vunpack.c.l.b16 %v600
        %v803 = vunpack.c.h.b16 %v600
        %v804 = vunpack.c.l.b16 %v601
        %v805 = vunpack.c.h.b16 %v601
        %v806 = vunpack.c.l.b16 %v602
        %v807 = vunpack.c.h.b16 %v602
        %v808 = vunpack.c.l.b16 %v603
        %v809 = vunpack.c.h.b16 %v603
        %v810 = vunpack.c.l.b16 %v604
        %v811 = vunpack.c.h.b16 %v604
        %v812 = vunpack.c.l.b16 %v605
        %v813 = vunpack.c.h.b16 %v605
        %v814 = vunpack.c.l.b16 %v606
        %v815 = vunpack.c.h.b16 %v606
        %v816 = vunpack.c.l.b16 %v607
        %v817 = vunpack.c.h.b16 %v607
        %v818 = vunpack.c.l.b16 %v608
        %v819 = vunpack.c.h.b16 %v608
        %v820 = vunpack.c.l.b16 %v609
        %v821 = vunpack.c.h.b16 %v609
        %v822 = vunpack.c.l.b16 %v610
        %v823 = vunpack.c.h.b16 %v610
        %v824 = vunpack.c.l.b16 %v611
        %v825 = vunpack.c.h.b16 %v611
        %v826 = vunpack.c.l.b16 %v612
        %v827 = vunpack.c.h.b16 %v612
        %v828 = vunpack.c.l.b16 %v613
        %v829 = vunpack.c.h.b16 %v613
        %v830 = vunpack.c.l.b16 %v614
        %v831 = vunpack.c.h.b16 %v614
        %v832 = vunpack.c.l.b16 %v615
        %v833 = vunpack.c.h.b16 %v615
        %v834 = vunpack.c.l.b16 %v616
        %v835 = vunpack.c.h.b16 %v616
        %v836 = vunpack.c.l.b16 %v617
        %v837 = vunpack.c.h.b16 %v617
        %v838 = vunpack.c.l.b16 %v618
        %v839 = vunpack.c.h.b16 %v618
        %v840 = vunpack.c.l.b16 %v619
        %v841 = vunpack.c.h.b16 %v619
        %v842 = vunpack.c.l.b16 %v620
        %v843 = vunpack.c.h.b16 %v620
        %v844 = vunpack.c.l.b16 %v621
        %v845 = vunpack.c.h.b16 %v621
        %v846 = vpack.c.b16 %v722, %v718
        %v847 = vpack.c.b16 %v723, %v719
        %v848 = vpack.c.b16 %v724, %v720
        %v849 = vpack.c.b16 %v725, %v721
        %v850 = vpack.c.b16 %v730, %v726
        %v851 = vpack.c.b16 %v731, %v727
        %v852 = vpack.c.b16 %v732, %v728
        %v853 = vpack.c.b16 %v733, %v729
        %v854 = vpack.c.b16 %v738, %v734
        %v855 = vpack.c.b16 %v739, %v735
        %v856 = vpack.c.b16 %v740, %v736
        %v857 = vpack.c.b16 %v741, %v737
        %v858 = vpack.c.b16 %v746, %v742
        %v859 = vpack.c.b16 %v747, %v743
        %v860 = vpack.c.b16 %v748, %v744
        %v861 = vpack.c.b16 %v749, %v745
        %v862 = vpack.c.b16 %v754, %v750
        %v863 = vpack.c.b16 %v755, %v751
        %v864 = vpack.c.b16 %v756, %v752
        %v865 = vpack.c.b16 %v757, %v753
        %v866 = vpack.c.b16 %v762, %v758
        %v867 = vpack.c.b16 %v763, %v759
        %v868 = vpack.c.b16 %v764, %v760
        %v869 = vpack.c.b16 %v765, %v761
        %v870 = vpack.c.b16 %v770, %v766
        %v871 = vpack.c.b16 %v771, %v767
        %v872 = vpack.c.b16 %v772, %v768
        %v873 = vpack.c.b16 %v773, %v769
        %v874 = vpack.c.b16 %v778, %v774
        %v875 = vpack.c.b16 %v779, %v775
        %v876 = vpack.c.b16 %v780, %v776
        %v877 = vpack.c.b16 %v781, %v777
        %v878 = vpack.c.b16 %v786, %v782
        %v879 = vpack.c.b16 %v787, %v783
        %v880 = vpack.c.b16 %v788, %v784
        %v881 = vpack.c.b16 %v789, %v785
        %v882 = vpack.c.b16 %v794, %v790
        %v883 = vpack.c.b16 %v795, %v791
        %v884 = vpack.c.b16 %v796, %v792
        %v885 = vpack.c.b16 %v797, %v793
        %v886 = vpack.c.b16 %v802, %v798
        %v887 = vpack.c.b16 %v803, %v799
        %v888 = vpack.c.b16 %v804, %v800
        %v889 = vpack.c.b16 %v805, %v801
        %v890 = vpack.c.b16 %v810, %v806
        %v891 = vpack.c.b16 %v811, %v807
        %v892 = vpack.c.b16 %v812, %v808
        %v893 = vpack.c.b16 %v813, %v809
        %v894 = vpack.c.b16 %v818, %v814
        %v895 = vpack.c.b16 %v819, %v815
        %v896 = vpack.c.b16 %v820, %v816
        %v897 = vpack.c.b16 %v821, %v817
        %v898 = vpack.c.b16 %v826, %v822
        %v899 = vpack.c.b16 %v827, %v823
        %v900 = vpack.c.b16 %v828, %v824
        %v901 = vpack.c.b16 %v829, %v825
        %v902 = vpack.c.b16 %v834, %v830
        %v903 = vpack.c.b16 %v835, %v831
        %v904 = vpack.c.b16 %v836, %v832
        %v905 = vpack.c.b16 %v837, %v833
        %v906 = vpack.c.b16 %v842, %v838
        %v907 = vpack.c.b16 %v843, %v839
        %v908 = vpack.c.b16 %v844, %v840
        %v909 = vpack.c.b16 %v845, %v841
        %974 = vmatprep.subr.bf16.mxu0 %v875
        %975 = vmatpush1.bf16.msra.mxu0 %v874
        %976 = vmatprep.subr.bf16.mxu0 %v871
        %977 = vmatpush1.bf16.msra.mxu0 %v870
        %978 = vmatprep.subr.bf16.mxu0 %v867
        %979 = vmatpush1.bf16.msra.mxu0 %v866
        %980 = vmatprep.subr.bf16.mxu0 %v863
        %981 = vmatpush1.bf16.msra.mxu0 %v862
        %982 = vmatprep.subr.bf16.mxu0 %v859
        %983 = vmatpush1.bf16.msra.mxu0 %v858
        %984 = vmatprep.subr.bf16.mxu0 %v855
        %985 = vmatpush1.bf16.msra.mxu0 %v854
        %986 = vmatprep.subr.bf16.mxu0 %v851
        %987 = vmatpush1.bf16.msra.mxu0 %v850
        %988 = vmatprep.subr.bf16.mxu0 %v847
        %989 = vmatpush1.bf16.msra.mxu0 %v846
        %990 = vmatprep.subr.bf16.mxu0 %v907
        %991 = vmatpush2.bf16.msra.mxu0 %v906
        %992 = vmatprep.subr.bf16.mxu0 %v903
        %993 = vmatpush2.bf16.msra.mxu0 %v902
        %994 = vmatprep.subr.bf16.mxu0 %v899
        %995 = vmatpush2.bf16.msra.mxu0 %v898
        %996 = vmatprep.subr.bf16.mxu0 %v895
        %997 = vmatpush2.bf16.msra.mxu0 %v894
        %998 = vmatprep.subr.bf16.mxu0 %v891
        %999 = vmatpush2.bf16.msra.mxu0 %v890
        %1000 = vmatprep.subr.bf16.mxu0 %v887
        %1001 = vmatpush2.bf16.msra.mxu0 %v886
        %1002 = vmatprep.subr.bf16.mxu0 %v883
        %1003 = vmatpush2.bf16.msra.mxu0 %v882
        %1004 = vmatprep.subr.bf16.mxu0 %v879
        %1005 = vmatpush2.bf16.msra.mxu0 %v878
        %1006 = vmatprep.mubr.bf16.mxu0 %v651
        %1007 = vmatmul.mubr.bf16.gmra.mxu0 %v650
        %v1008 = vpop.f32.mrf.mxu0
        %v1009 = vadd.f32 %v627, %v1008
        %v1010 = vpop.f32.mrf.mxu0
        %v1011 = vadd.f32 %v631, %v1010
        %v1012 = vpop.f32.mrf.mxu0
        %v1013 = vadd.f32 %v627, %v1012
        %v1014 = vpop.f32.mrf.mxu0
        %v1015 = vadd.f32 %v631, %v1014
        %1016 = vdwg.mxu0
        %1017 = vmatprep.subr.bf16.mxu0 %v877
        %1018 = vmatpush1.bf16.msra.mxu0 %v876
        %1019 = vmatprep.subr.bf16.mxu0 %v873
        %1020 = vmatpush1.bf16.msra.mxu0 %v872
        %1021 = vmatprep.subr.bf16.mxu0 %v869
        %1022 = vmatpush1.bf16.msra.mxu0 %v868
        %1023 = vmatprep.subr.bf16.mxu0 %v865
        %1024 = vmatpush1.bf16.msra.mxu0 %v864
        %1025 = vmatprep.subr.bf16.mxu0 %v861
        %1026 = vmatpush1.bf16.msra.mxu0 %v860
        %1027 = vmatprep.subr.bf16.mxu0 %v857
        %1028 = vmatpush1.bf16.msra.mxu0 %v856
        %1029 = vmatprep.subr.bf16.mxu0 %v853
        %1030 = vmatpush1.bf16.msra.mxu0 %v852
        %1031 = vmatprep.subr.bf16.mxu0 %v849
        %1032 = vmatpush1.bf16.msra.mxu0 %v848
        %1033 = vmatprep.subr.bf16.mxu0 %v909
        %1034 = vmatpush2.bf16.msra.mxu0 %v908
        %1035 = vmatprep.subr.bf16.mxu0 %v905
        %1036 = vmatpush2.bf16.msra.mxu0 %v904
        %1037 = vmatprep.subr.bf16.mxu0 %v901
        %1038 = vmatpush2.bf16.msra.mxu0 %v900
        %1039 = vmatprep.subr.bf16.mxu0 %v897
        %1040 = vmatpush2.bf16.msra.mxu0 %v896
        %1041 = vmatprep.subr.bf16.mxu0 %v893
        %1042 = vmatpush2.bf16.msra.mxu0 %v892
        %1043 = vmatprep.subr.bf16.mxu0 %v889
        %1044 = vmatpush2.bf16.msra.mxu0 %v888
        %1045 = vmatprep.subr.bf16.mxu0 %v885
        %1046 = vmatpush2.bf16.msra.mxu0 %v884
        %1047 = vmatprep.subr.bf16.mxu0 %v881
        %1048 = vmatpush2.bf16.msra.mxu0 %v880
        %1049 = vmatprep.mubr.bf16.mxu0 %v651
        %1050 = vmatmul.mubr.bf16.gmra.mxu0 %v650
        %v1051 = vpop.f32.mrf.mxu0
        %v1052 = vadd.f32 %v635, %v1051
        %v1053 = vpop.f32.mrf.mxu0
        %v1054 = vadd.f32 %v639, %v1053
        %v1055 = vpop.f32.mrf.mxu0
        %v1056 = vadd.f32 %v635, %v1055
        %v1057 = vpop.f32.mrf.mxu0
        %v1058 = vadd.f32 %v639, %v1057
        %1059 = vdwg.mxu0
        %v1060 = vxor.u32 %v1009, 2147483648
        %v1061 = vxor.u32 %v1013, 2147483648
        %v1062 = vmul.f32 %v1060, 1.442695
        %v1063 = vpow.pop %v1062
        %v1064 = vmul.f32 %v1061, 1.442695
        %v1065 = vpow.pop %v1064
        %v1066 = vadd.f32 %v1063, 1.0
        %v1067 = vadd.f32 %v1065, 1.0
        %v1068 = vrcp.pop %v1066
        %v1069 = vmul.f32 1.0, %v1068
        %v1070 = vrcp.pop %v1067
        %v1071 = vmul.f32 1.0, %v1070
        %v1072 = vxor.u32 %v1011, 2147483648
        %v1073 = vxor.u32 %v1015, 2147483648
        %v1074 = vmul.f32 %v1072, 1.442695
        %v1075 = vpow.pop %v1074
        %v1076 = vmul.f32 %v1073, 1.442695
        %v1077 = vpow.pop %v1076
        %v1078 = vadd.f32 %v1075, 1.0
        %v1079 = vadd.f32 %v1077, 1.0
        %v1080 = vrcp.pop %v1078
        %v1081 = vmul.f32 1.0, %v1080
        %v1082 = vrcp.pop %v1079
        %v1083 = vmul.f32 1.0, %v1082
        %v1084 = vtanh.pop %v1052
        %v1085 = vtanh.pop %v1056
        %v1086 = vxor.u32 %v1054, 2147483648
        %v1087 = vxor.u32 %v1058, 2147483648
        %v1088 = vmul.f32 %v1086, 1.442695
        %v1089 = vpow.pop %v1088
        %v1090 = vmul.f32 %v1087, 1.442695
        %v1091 = vpow.pop %v1090
        %v1092 = vadd.f32 %v1089, 1.0
        %v1093 = vadd.f32 %v1091, 1.0
        %v1094 = vrcp.pop %v1092
        %v1095 = vmul.f32 1.0, %v1094
        %v1096 = vrcp.pop %v1093
        %v1097 = vmul.f32 1.0, %v1096
        %v1098 = vmul.f32 %v1081, %v550
        %v1099 = vmul.f32 %v1083, %v551
        %v1100 = vmul.f32 %v1069, %v1084
        %v1101 = vmul.f32 %v1071, %v1085
        %v1102 = vadd.f32 %v1098, %v1100
        %v1103 = vadd.f32 %v1099, %v1101
        %v1104 = vtanh.pop %v1102
        %v1105 = vtanh.pop %v1103
        %v1106 = vmul.f32 %v1095, %v1104
        %v1107 = vmul.f32 %v1097, %v1105
        %v1108 = vld [vmem:[%s447] sm:$0xff]
        %v1109 = vld [vmem:[%s447 + $0x8] sm:$0xff]
        %vm1110 = vcmp.ne.f32.partialorder %v1108, 0.0
        %vm1111 = vcmp.ne.f32.partialorder %v1109, 0.0
        %v1112 = vsel %vm1110, 1, 0
        %v1113 = vsel %vm1111, 1, 0
        %1114 = vset.pattern.permute.xlu0 0
        %1115 = vperm.xlu0 %1114, %v1112
        %v1116 = vpop.permute.xlu0 %1115
        %1117 = vset.pattern.permute.xlu0 0
        %1118 = vperm.xlu0 %1117, %v1113
        %v1119 = vpop.permute.xlu0 %1118
        %vm1120 = vcmp.eq.s32.totalorder %v1116, 1
        %vm1121 = vcmp.eq.s32.totalorder %v1119, 1
        %v1122 = vsel %vm1120, %v548, %v1106
        %v1123 = vsel %vm1121, %v549, %v1107
        %v1124 = vsel %vm1120, %v550, %v1102
        %v1125 = vsel %vm1121, %v551, %v1103
        %1126 = vst [vmem:[#allocation2] sm:$0xff] %v1122
        %1127 = vst [vmem:[#allocation2 + $0x8] sm:$0xff] %v1123
        %1128 = vst [vmem:[#allocation3] sm:$0xff] %v1124
        %1129 = vst [vmem:[#allocation3 + $0x8] sm:$0xff] %v1125
        %v1130 = vpack.c.bf16 %v1123, %v1122
        %v1132 = vunpack.c.l.b16 %v1130
        %v1133 = vunpack.c.h.b16 %v1130
        %v1134 = vpack.c.b16 %v1132, %v1132
        %v1135 = vpack.c.b16 %v1133, %v1133
        %1138 = vst [vmem:[#allocation4 + $0x4] sm:$0xf] %v1134
        %1139 = vst [vmem:[#allocation4 + $0xc] sm:$0xf] %v1135
        %1140 = vst [vmem:[%s497] sm:$0xff] %v1122
        %1141 = vst [vmem:[%s497 + $0x8] sm:$0xff] %v1123
        %v1142 = vld [vmem:[#allocation2] sm:$0xff]
        %v1143 = vld [vmem:[#allocation2 + $0x8] sm:$0xff]
        %v1144 = vld [vmem:[#allocation3] sm:$0xff]
        %v1145 = vld [vmem:[#allocation3 + $0x8] sm:$0xff]
        %s1146 = scalar_lea.vmem %s455, 8 [#allocation6]
        %v1147 = vld [vmem:[%s1146] sm:$0xf]
        %v1148 = vld [vmem:[%s1146 + $0x4] sm:$0xf]
        %1149 = vst [vmem:[#allocation4] sm:$0xf] %v1147
        %1150 = vst [vmem:[#allocation4 + $0x8] sm:$0xf] %v1148
        %v1151 = vld [vmem:[#allocation4] sm:$0xff]
        %v1152 = vld [vmem:[#allocation4 + $0x8] sm:$0xff]
        %v1153 = vld [vmem:[%s4] sm:$0xff]
        %v1154 = vld [vmem:[%s4 + $0x8] sm:$0xff]
        %v1155 = vld [vmem:[%s4 + $0x10] sm:$0xff]
        %v1156 = vld [vmem:[%s4 + $0x18] sm:$0xff]
        %v1157 = vld [vmem:[%s4 + $0x20] sm:$0xff]
        %v1158 = vld [vmem:[%s4 + $0x28] sm:$0xff]
        %v1159 = vld [vmem:[%s4 + $0x30] sm:$0xff]
        %v1160 = vld [vmem:[%s4 + $0x38] sm:$0xff]
        %v1161 = vld [vmem:[%s4 + $0x40] sm:$0xff]
        %v1162 = vld [vmem:[%s4 + $0x48] sm:$0xff]
        %v1163 = vld [vmem:[%s4 + $0x50] sm:$0xff]
        %v1164 = vld [vmem:[%s4 + $0x58] sm:$0xff]
        %v1165 = vld [vmem:[%s4 + $0x60] sm:$0xff]
        %v1166 = vld [vmem:[%s4 + $0x68] sm:$0xff]
        %v1167 = vld [vmem:[%s4 + $0x70] sm:$0xff]
        %v1168 = vld [vmem:[%s4 + $0x78] sm:$0xff]
        %v1169 = vld [vmem:[%s4 + $0x80] sm:$0xff]
        %v1170 = vld [vmem:[%s4 + $0x88] sm:$0xff]
        %v1171 = vld [vmem:[%s4 + $0x90] sm:$0xff]
        %v1172 = vld [vmem:[%s4 + $0x98] sm:$0xff]
        %v1173 = vld [vmem:[%s4 + $0xa0] sm:$0xff]
        %v1174 = vld [vmem:[%s4 + $0xa8] sm:$0xff]
        %v1175 = vld [vmem:[%s4 + $0xb0] sm:$0xff]
        %v1176 = vld [vmem:[%s4 + $0xb8] sm:$0xff]
        %v1177 = vld [vmem:[%s4 + $0xc0] sm:$0xff]
        %v1178 = vld [vmem:[%s4 + $0xc8] sm:$0xff]
        %v1179 = vld [vmem:[%s4 + $0xd0] sm:$0xff]
        %v1180 = vld [vmem:[%s4 + $0xd8] sm:$0xff]
        %v1181 = vld [vmem:[%s4 + $0xe0] sm:$0xff]
        %v1182 = vld [vmem:[%s4 + $0xe8] sm:$0xff]
        %v1183 = vld [vmem:[%s4 + $0xf0] sm:$0xff]
        %v1184 = vld [vmem:[%s4 + $0xf8] sm:$0xff]
        %v1185 = vld [vmem:[%s4 + $0x100] sm:$0xff]
        %v1186 = vld [vmem:[%s4 + $0x108] sm:$0xff]
        %v1187 = vld [vmem:[%s4 + $0x110] sm:$0xff]
        %v1188 = vld [vmem:[%s4 + $0x118] sm:$0xff]
        %v1189 = vld [vmem:[%s4 + $0x120] sm:$0xff]
        %v1190 = vld [vmem:[%s4 + $0x128] sm:$0xff]
        %v1191 = vld [vmem:[%s4 + $0x130] sm:$0xff]
        %v1192 = vld [vmem:[%s4 + $0x138] sm:$0xff]
        %v1193 = vld [vmem:[%s4 + $0x140] sm:$0xff]
        %v1194 = vld [vmem:[%s4 + $0x148] sm:$0xff]
        %v1195 = vld [vmem:[%s4 + $0x150] sm:$0xff]
        %v1196 = vld [vmem:[%s4 + $0x158] sm:$0xff]
        %v1197 = vld [vmem:[%s4 + $0x160] sm:$0xff]
        %v1198 = vld [vmem:[%s4 + $0x168] sm:$0xff]
        %v1199 = vld [vmem:[%s4 + $0x170] sm:$0xff]
        %v1200 = vld [vmem:[%s4 + $0x178] sm:$0xff]
        %v1201 = vld [vmem:[%s4 + $0x180] sm:$0xff]
        %v1202 = vld [vmem:[%s4 + $0x188] sm:$0xff]
        %v1203 = vld [vmem:[%s4 + $0x190] sm:$0xff]
        %v1204 = vld [vmem:[%s4 + $0x198] sm:$0xff]
        %v1205 = vld [vmem:[%s4 + $0x1a0] sm:$0xff]
        %v1206 = vld [vmem:[%s4 + $0x1a8] sm:$0xff]
        %v1207 = vld [vmem:[%s4 + $0x1b0] sm:$0xff]
        %v1208 = vld [vmem:[%s4 + $0x1b8] sm:$0xff]
        %v1209 = vld [vmem:[%s4 + $0x1c0] sm:$0xff]
        %v1210 = vld [vmem:[%s4 + $0x1c8] sm:$0xff]
        %v1211 = vld [vmem:[%s4 + $0x1d0] sm:$0xff]
        %v1212 = vld [vmem:[%s4 + $0x1d8] sm:$0xff]
        %v1213 = vld [vmem:[%s4 + $0x1e0] sm:$0xff]
        %v1214 = vld [vmem:[%s4 + $0x1e8] sm:$0xff]
        %v1215 = vld [vmem:[%s4 + $0x1f0] sm:$0xff]
        %v1216 = vld [vmem:[%s4 + $0x1f8] sm:$0xff]
        %v1217 = vld [vmem:[%s5] sm:$0xf]
        %v1219 = vlaneseq
        %v1220 = vshrl.u32 %v1219, 7
        %v1221 = vsub.s32 0, %v1220
        %v1222 = vrot.slane %v1217, %v1221
        %v1223 = vlaneseq
        %v1224 = vshrl.u32 %v1223, 7
        %v1225 = vsub.s32 1, %v1224
        %v1226 = vrot.slane %v1217, %v1225
        %v1227 = vlaneseq
        %v1228 = vshrl.u32 %v1227, 7
        %v1229 = vsub.s32 2, %v1228
        %v1230 = vrot.slane %v1217, %v1229
        %v1231 = vlaneseq
        %v1232 = vshrl.u32 %v1231, 7
        %v1233 = vsub.s32 3, %v1232
        %v1234 = vrot.slane %v1217, %v1233
        %v1241 = vunpack.c.l.b16 %v1151
        %v1242 = vunpack.c.h.b16 %v1151
        %v1243 = vunpack.c.l.b16 %v1152
        %v1244 = vunpack.c.h.b16 %v1152
        %v1245 = vpack.c.b16 %v1243, %v1241
        %v1246 = vpack.c.b16 %v1244, %v1242
        %v1313 = vunpack.c.l.b16 %v1153
        %v1314 = vunpack.c.h.b16 %v1153
        %v1315 = vunpack.c.l.b16 %v1154
        %v1316 = vunpack.c.h.b16 %v1154
        %v1317 = vunpack.c.l.b16 %v1155
        %v1318 = vunpack.c.h.b16 %v1155
        %v1319 = vunpack.c.l.b16 %v1156
        %v1320 = vunpack.c.h.b16 %v1156
        %v1321 = vunpack.c.l.b16 %v1157
        %v1322 = vunpack.c.h.b16 %v1157
        %v1323 = vunpack.c.l.b16 %v1158
        %v1324 = vunpack.c.h.b16 %v1158
        %v1325 = vunpack.c.l.b16 %v1159
        %v1326 = vunpack.c.h.b16 %v1159
        %v1327 = vunpack.c.l.b16 %v1160
        %v1328 = vunpack.c.h.b16 %v1160
        %v1329 = vunpack.c.l.b16 %v1161
        %v1330 = vunpack.c.h.b16 %v1161
        %v1331 = vunpack.c.l.b16 %v1162
        %v1332 = vunpack.c.h.b16 %v1162
        %v1333 = vunpack.c.l.b16 %v1163
        %v1334 = vunpack.c.h.b16 %v1163
        %v1335 = vunpack.c.l.b16 %v1164
        %v1336 = vunpack.c.h.b16 %v1164
        %v1337 = vunpack.c.l.b16 %v1165
        %v1338 = vunpack.c.h.b16 %v1165
        %v1339 = vunpack.c.l.b16 %v1166
        %v1340 = vunpack.c.h.b16 %v1166
        %v1341 = vunpack.c.l.b16 %v1167
        %v1342 = vunpack.c.h.b16 %v1167
        %v1343 = vunpack.c.l.b16 %v1168
        %v1344 = vunpack.c.h.b16 %v1168
        %v1345 = vunpack.c.l.b16 %v1169
        %v1346 = vunpack.c.h.b16 %v1169
        %v1347 = vunpack.c.l.b16 %v1170
        %v1348 = vunpack.c.h.b16 %v1170
        %v1349 = vunpack.c.l.b16 %v1171
        %v1350 = vunpack.c.h.b16 %v1171
        %v1351 = vunpack.c.l.b16 %v1172
        %v1352 = vunpack.c.h.b16 %v1172
        %v1353 = vunpack.c.l.b16 %v1173
        %v1354 = vunpack.c.h.b16 %v1173
        %v1355 = vunpack.c.l.b16 %v1174
        %v1356 = vunpack.c.h.b16 %v1174
        %v1357 = vunpack.c.l.b16 %v1175
        %v1358 = vunpack.c.h.b16 %v1175
        %v1359 = vunpack.c.l.b16 %v1176
        %v1360 = vunpack.c.h.b16 %v1176
        %v1361 = vunpack.c.l.b16 %v1177
        %v1362 = vunpack.c.h.b16 %v1177
        %v1363 = vunpack.c.l.b16 %v1178
        %v1364 = vunpack.c.h.b16 %v1178
        %v1365 = vunpack.c.l.b16 %v1179
        %v1366 = vunpack.c.h.b16 %v1179
        %v1367 = vunpack.c.l.b16 %v1180
        %v1368 = vunpack.c.h.b16 %v1180
        %v1369 = vunpack.c.l.b16 %v1181
        %v1370 = vunpack.c.h.b16 %v1181
        %v1371 = vunpack.c.l.b16 %v1182
        %v1372 = vunpack.c.h.b16 %v1182
        %v1373 = vunpack.c.l.b16 %v1183
        %v1374 = vunpack.c.h.b16 %v1183
        %v1375 = vunpack.c.l.b16 %v1184
        %v1376 = vunpack.c.h.b16 %v1184
        %v1377 = vunpack.c.l.b16 %v1185
        %v1378 = vunpack.c.h.b16 %v1185
        %v1379 = vunpack.c.l.b16 %v1186
        %v1380 = vunpack.c.h.b16 %v1186
        %v1381 = vunpack.c.l.b16 %v1187
        %v1382 = vunpack.c.h.b16 %v1187
        %v1383 = vunpack.c.l.b16 %v1188
        %v1384 = vunpack.c.h.b16 %v1188
        %v1385 = vunpack.c.l.b16 %v1189
        %v1386 = vunpack.c.h.b16 %v1189
        %v1387 = vunpack.c.l.b16 %v1190
        %v1388 = vunpack.c.h.b16 %v1190
        %v1389 = vunpack.c.l.b16 %v1191
        %v1390 = vunpack.c.h.b16 %v1191
        %v1391 = vunpack.c.l.b16 %v1192
        %v1392 = vunpack.c.h.b16 %v1192
        %v1393 = vunpack.c.l.b16 %v1193
        %v1394 = vunpack.c.h.b16 %v1193
        %v1395 = vunpack.c.l.b16 %v1194
        %v1396 = vunpack.c.h.b16 %v1194
        %v1397 = vunpack.c.l.b16 %v1195
        %v1398 = vunpack.c.h.b16 %v1195
        %v1399 = vunpack.c.l.b16 %v1196
        %v1400 = vunpack.c.h.b16 %v1196
        %v1401 = vunpack.c.l.b16 %v1197
        %v1402 = vunpack.c.h.b16 %v1197
        %v1403 = vunpack.c.l.b16 %v1198
        %v1404 = vunpack.c.h.b16 %v1198
        %v1405 = vunpack.c.l.b16 %v1199
        %v1406 = vunpack.c.h.b16 %v1199
        %v1407 = vunpack.c.l.b16 %v1200
        %v1408 = vunpack.c.h.b16 %v1200
        %v1409 = vunpack.c.l.b16 %v1201
        %v1410 = vunpack.c.h.b16 %v1201
        %v1411 = vunpack.c.l.b16 %v1202
        %v1412 = vunpack.c.h.b16 %v1202
        %v1413 = vunpack.c.l.b16 %v1203
        %v1414 = vunpack.c.h.b16 %v1203
        %v1415 = vunpack.c.l.b16 %v1204
        %v1416 = vunpack.c.h.b16 %v1204
        %v1417 = vunpack.c.l.b16 %v1205
        %v1418 = vunpack.c.h.b16 %v1205
        %v1419 = vunpack.c.l.b16 %v1206
        %v1420 = vunpack.c.h.b16 %v1206
        %v1421 = vunpack.c.l.b16 %v1207
        %v1422 = vunpack.c.h.b16 %v1207
        %v1423 = vunpack.c.l.b16 %v1208
        %v1424 = vunpack.c.h.b16 %v1208
        %v1425 = vunpack.c.l.b16 %v1209
        %v1426 = vunpack.c.h.b16 %v1209
        %v1427 = vunpack.c.l.b16 %v1210
        %v1428 = vunpack.c.h.b16 %v1210
        %v1429 = vunpack.c.l.b16 %v1211
        %v1430 = vunpack.c.h.b16 %v1211
        %v1431 = vunpack.c.l.b16 %v1212
        %v1432 = vunpack.c.h.b16 %v1212
        %v1433 = vunpack.c.l.b16 %v1213
        %v1434 = vunpack.c.h.b16 %v1213
        %v1435 = vunpack.c.l.b16 %v1214
        %v1436 = vunpack.c.h.b16 %v1214
        %v1437 = vunpack.c.l.b16 %v1215
        %v1438 = vunpack.c.h.b16 %v1215
        %v1439 = vunpack.c.l.b16 %v1216
        %v1440 = vunpack.c.h.b16 %v1216
        %v1441 = vpack.c.b16 %v1317, %v1313
        %v1442 = vpack.c.b16 %v1318, %v1314
        %v1443 = vpack.c.b16 %v1319, %v1315
        %v1444 = vpack.c.b16 %v1320, %v1316
        %v1445 = vpack.c.b16 %v1325, %v1321
        %v1446 = vpack.c.b16 %v1326, %v1322
        %v1447 = vpack.c.b16 %v1327, %v1323
        %v1448 = vpack.c.b16 %v1328, %v1324
        %v1449 = vpack.c.b16 %v1333, %v1329
        %v1450 = vpack.c.b16 %v1334, %v1330
        %v1451 = vpack.c.b16 %v1335, %v1331
        %v1452 = vpack.c.b16 %v1336, %v1332
        %v1453 = vpack.c.b16 %v1341, %v1337
        %v1454 = vpack.c.b16 %v1342, %v1338
        %v1455 = vpack.c.b16 %v1343, %v1339
        %v1456 = vpack.c.b16 %v1344, %v1340
        %v1457 = vpack.c.b16 %v1349, %v1345
        %v1458 = vpack.c.b16 %v1350, %v1346
        %v1459 = vpack.c.b16 %v1351, %v1347
        %v1460 = vpack.c.b16 %v1352, %v1348
        %v1461 = vpack.c.b16 %v1357, %v1353
        %v1462 = vpack.c.b16 %v1358, %v1354
        %v1463 = vpack.c.b16 %v1359, %v1355
        %v1464 = vpack.c.b16 %v1360, %v1356
        %v1465 = vpack.c.b16 %v1365, %v1361
        %v1466 = vpack.c.b16 %v1366, %v1362
        %v1467 = vpack.c.b16 %v1367, %v1363
        %v1468 = vpack.c.b16 %v1368, %v1364
        %v1469 = vpack.c.b16 %v1373, %v1369
        %v1470 = vpack.c.b16 %v1374, %v1370
        %v1471 = vpack.c.b16 %v1375, %v1371
        %v1472 = vpack.c.b16 %v1376, %v1372
        %v1473 = vpack.c.b16 %v1381, %v1377
        %v1474 = vpack.c.b16 %v1382, %v1378
        %v1475 = vpack.c.b16 %v1383, %v1379
        %v1476 = vpack.c.b16 %v1384, %v1380
        %v1477 = vpack.c.b16 %v1389, %v1385
        %v1478 = vpack.c.b16 %v1390, %v1386
        %v1479 = vpack.c.b16 %v1391, %v1387
        %v1480 = vpack.c.b16 %v1392, %v1388
        %v1481 = vpack.c.b16 %v1397, %v1393
        %v1482 = vpack.c.b16 %v1398, %v1394
        %v1483 = vpack.c.b16 %v1399, %v1395
        %v1484 = vpack.c.b16 %v1400, %v1396
        %v1485 = vpack.c.b16 %v1405, %v1401
        %v1486 = vpack.c.b16 %v1406, %v1402
        %v1487 = vpack.c.b16 %v1407, %v1403
        %v1488 = vpack.c.b16 %v1408, %v1404
        %v1489 = vpack.c.b16 %v1413, %v1409
        %v1490 = vpack.c.b16 %v1414, %v1410
        %v1491 = vpack.c.b16 %v1415, %v1411
        %v1492 = vpack.c.b16 %v1416, %v1412
        %v1493 = vpack.c.b16 %v1421, %v1417
        %v1494 = vpack.c.b16 %v1422, %v1418
        %v1495 = vpack.c.b16 %v1423, %v1419
        %v1496 = vpack.c.b16 %v1424, %v1420
        %v1497 = vpack.c.b16 %v1429, %v1425
        %v1498 = vpack.c.b16 %v1430, %v1426
        %v1499 = vpack.c.b16 %v1431, %v1427
        %v1500 = vpack.c.b16 %v1432, %v1428
        %v1501 = vpack.c.b16 %v1437, %v1433
        %v1502 = vpack.c.b16 %v1438, %v1434
        %v1503 = vpack.c.b16 %v1439, %v1435
        %v1504 = vpack.c.b16 %v1440, %v1436
        %1569 = vmatprep.subr.bf16.mxu0 %v1470
        %1570 = vmatpush1.bf16.msra.mxu0 %v1469
        %1571 = vmatprep.subr.bf16.mxu0 %v1466
        %1572 = vmatpush1.bf16.msra.mxu0 %v1465
        %1573 = vmatprep.subr.bf16.mxu0 %v1462
        %1574 = vmatpush1.bf16.msra.mxu0 %v1461
        %1575 = vmatprep.subr.bf16.mxu0 %v1458
        %1576 = vmatpush1.bf16.msra.mxu0 %v1457
        %1577 = vmatprep.subr.bf16.mxu0 %v1454
        %1578 = vmatpush1.bf16.msra.mxu0 %v1453
        %1579 = vmatprep.subr.bf16.mxu0 %v1450
        %1580 = vmatpush1.bf16.msra.mxu0 %v1449
        %1581 = vmatprep.subr.bf16.mxu0 %v1446
        %1582 = vmatpush1.bf16.msra.mxu0 %v1445
        %1583 = vmatprep.subr.bf16.mxu0 %v1442
        %1584 = vmatpush1.bf16.msra.mxu0 %v1441
        %1585 = vmatprep.subr.bf16.mxu0 %v1502
        %1586 = vmatpush2.bf16.msra.mxu0 %v1501
        %1587 = vmatprep.subr.bf16.mxu0 %v1498
        %1588 = vmatpush2.bf16.msra.mxu0 %v1497
        %1589 = vmatprep.subr.bf16.mxu0 %v1494
        %1590 = vmatpush2.bf16.msra.mxu0 %v1493
        %1591 = vmatprep.subr.bf16.mxu0 %v1490
        %1592 = vmatpush2.bf16.msra.mxu0 %v1489
        %1593 = vmatprep.subr.bf16.mxu0 %v1486
        %1594 = vmatpush2.bf16.msra.mxu0 %v1485
        %1595 = vmatprep.subr.bf16.mxu0 %v1482
        %1596 = vmatpush2.bf16.msra.mxu0 %v1481
        %1597 = vmatprep.subr.bf16.mxu0 %v1478
        %1598 = vmatpush2.bf16.msra.mxu0 %v1477
        %1599 = vmatprep.subr.bf16.mxu0 %v1474
        %1600 = vmatpush2.bf16.msra.mxu0 %v1473
        %1601 = vmatprep.mubr.bf16.mxu0 %v1246
        %1602 = vmatmul.mubr.bf16.gmra.mxu0 %v1245
        %v1603 = vpop.f32.mrf.mxu0
        %v1604 = vadd.f32 %v1222, %v1603
        %v1605 = vpop.f32.mrf.mxu0
        %v1606 = vadd.f32 %v1226, %v1605
        %v1607 = vpop.f32.mrf.mxu0
        %v1608 = vadd.f32 %v1222, %v1607
        %v1609 = vpop.f32.mrf.mxu0
        %v1610 = vadd.f32 %v1226, %v1609
        %1611 = vdwg.mxu0
        %1612 = vmatprep.subr.bf16.mxu0 %v1472
        %1613 = vmatpush1.bf16.msra.mxu0 %v1471
        %1614 = vmatprep.subr.bf16.mxu0 %v1468
        %1615 = vmatpush1.bf16.msra.mxu0 %v1467
        %1616 = vmatprep.subr.bf16.mxu0 %v1464
        %1617 = vmatpush1.bf16.msra.mxu0 %v1463
        %1618 = vmatprep.subr.bf16.mxu0 %v1460
        %1619 = vmatpush1.bf16.msra.mxu0 %v1459
        %1620 = vmatprep.subr.bf16.mxu0 %v1456
        %1621 = vmatpush1.bf16.msra.mxu0 %v1455
        %1622 = vmatprep.subr.bf16.mxu0 %v1452
        %1623 = vmatpush1.bf16.msra.mxu0 %v1451
        %1624 = vmatprep.subr.bf16.mxu0 %v1448
        %1625 = vmatpush1.bf16.msra.mxu0 %v1447
        %1626 = vmatprep.subr.bf16.mxu0 %v1444
        %1627 = vmatpush1.bf16.msra.mxu0 %v1443
        %1628 = vmatprep.subr.bf16.mxu0 %v1504
        %1629 = vmatpush2.bf16.msra.mxu0 %v1503
        %1630 = vmatprep.subr.bf16.mxu0 %v1500
        %1631 = vmatpush2.bf16.msra.mxu0 %v1499
        %1632 = vmatprep.subr.bf16.mxu0 %v1496
        %1633 = vmatpush2.bf16.msra.mxu0 %v1495
        %1634 = vmatprep.subr.bf16.mxu0 %v1492
        %1635 = vmatpush2.bf16.msra.mxu0 %v1491
        %1636 = vmatprep.subr.bf16.mxu0 %v1488
        %1637 = vmatpush2.bf16.msra.mxu0 %v1487
        %1638 = vmatprep.subr.bf16.mxu0 %v1484
        %1639 = vmatpush2.bf16.msra.mxu0 %v1483
        %1640 = vmatprep.subr.bf16.mxu0 %v1480
        %1641 = vmatpush2.bf16.msra.mxu0 %v1479
        %1642 = vmatprep.subr.bf16.mxu0 %v1476
        %1643 = vmatpush2.bf16.msra.mxu0 %v1475
        %1644 = vmatprep.mubr.bf16.mxu0 %v1246
        %1645 = vmatmul.mubr.bf16.gmra.mxu0 %v1245
        %v1646 = vpop.f32.mrf.mxu0
        %v1647 = vadd.f32 %v1230, %v1646
        %v1648 = vpop.f32.mrf.mxu0
        %v1649 = vadd.f32 %v1234, %v1648
        %v1650 = vpop.f32.mrf.mxu0
        %v1651 = vadd.f32 %v1230, %v1650
        %v1652 = vpop.f32.mrf.mxu0
        %v1653 = vadd.f32 %v1234, %v1652
        %1654 = vdwg.mxu0
        %v1655 = vxor.u32 %v1604, 2147483648
        %v1656 = vxor.u32 %v1608, 2147483648
        %v1657 = vmul.f32 %v1655, 1.442695
        %v1658 = vpow.pop %v1657
        %v1659 = vmul.f32 %v1656, 1.442695
        %v1660 = vpow.pop %v1659
        %v1661 = vadd.f32 %v1658, 1.0
        %v1662 = vadd.f32 %v1660, 1.0
        %v1663 = vrcp.pop %v1661
        %v1664 = vmul.f32 1.0, %v1663
        %v1665 = vrcp.pop %v1662
        %v1666 = vmul.f32 1.0, %v1665
        %v1667 = vxor.u32 %v1606, 2147483648
        %v1668 = vxor.u32 %v1610, 2147483648
        %v1669 = vmul.f32 %v1667, 1.442695
        %v1670 = vpow.pop %v1669
        %v1671 = vmul.f32 %v1668, 1.442695
        %v1672 = vpow.pop %v1671
        %v1673 = vadd.f32 %v1670, 1.0
        %v1674 = vadd.f32 %v1672, 1.0
        %v1675 = vrcp.pop %v1673
        %v1676 = vmul.f32 1.0, %v1675
        %v1677 = vrcp.pop %v1674
        %v1678 = vmul.f32 1.0, %v1677
        %v1679 = vtanh.pop %v1647
        %v1680 = vtanh.pop %v1651
        %v1681 = vxor.u32 %v1649, 2147483648
        %v1682 = vxor.u32 %v1653, 2147483648
        %v1683 = vmul.f32 %v1681, 1.442695
        %v1684 = vpow.pop %v1683
        %v1685 = vmul.f32 %v1682, 1.442695
        %v1686 = vpow.pop %v1685
        %v1687 = vadd.f32 %v1684, 1.0
        %v1688 = vadd.f32 %v1686, 1.0
        %v1689 = vrcp.pop %v1687
        %v1690 = vmul.f32 1.0, %v1689
        %v1691 = vrcp.pop %v1688
        %v1692 = vmul.f32 1.0, %v1691
        %v1693 = vmul.f32 %v1676, %v1144
        %v1694 = vmul.f32 %v1678, %v1145
        %v1695 = vmul.f32 %v1664, %v1679
        %v1696 = vmul.f32 %v1666, %v1680
        %v1697 = vadd.f32 %v1693, %v1695
        %v1698 = vadd.f32 %v1694, %v1696
        %v1699 = vtanh.pop %v1697
        %v1700 = vtanh.pop %v1698
        %v1701 = vmul.f32 %v1690, %v1699
        %v1702 = vmul.f32 %v1692, %v1700
        %s1703 = scalar_lea.vmem %s447, 16 [#allocation5]
        %v1704 = vld [vmem:[%s1703] sm:$0xff]
        %v1705 = vld [vmem:[%s1703 + $0x8] sm:$0xff]
        %vm1706 = vcmp.ne.f32.partialorder %v1704, 0.0
        %vm1707 = vcmp.ne.f32.partialorder %v1705, 0.0
        %v1708 = vsel %vm1706, 1, 0
        %v1709 = vsel %vm1707, 1, 0
        %1710 = vset.pattern.permute.xlu0 0
        %1711 = vperm.xlu0 %1710, %v1708
        %v1712 = vpop.permute.xlu0 %1711
        %1713 = vset.pattern.permute.xlu0 0
        %1714 = vperm.xlu0 %1713, %v1709
        %v1715 = vpop.permute.xlu0 %1714
        %vm1716 = vcmp.eq.s32.totalorder %v1712, 1
        %vm1717 = vcmp.eq.s32.totalorder %v1715, 1
        %v1718 = vsel %vm1716, %v1142, %v1701
        %v1719 = vsel %vm1717, %v1143, %v1702
        %v1720 = vsel %vm1716, %v1144, %v1697
        %v1721 = vsel %vm1717, %v1145, %v1698
        %1722 = vst [vmem:[#allocation2] sm:$0xff] %v1718
        %1723 = vst [vmem:[#allocation2 + $0x8] sm:$0xff] %v1719
        %1724 = vst [vmem:[#allocation3] sm:$0xff] %v1720
        %1725 = vst [vmem:[#allocation3 + $0x8] sm:$0xff] %v1721
        %v1726 = vpack.c.bf16 %v1719, %v1718
        %v1728 = vunpack.c.l.b16 %v1726
        %v1729 = vunpack.c.h.b16 %v1726
        %v1730 = vpack.c.b16 %v1728, %v1728
        %v1731 = vpack.c.b16 %v1729, %v1729
        %1734 = vst [vmem:[#allocation4 + $0x4] sm:$0xf] %v1730
        %1735 = vst [vmem:[#allocation4 + $0xc] sm:$0xf] %v1731
        %s1736 = scalar_lea.vmem %s497, 16 [#allocation9]
        %1737 = vst [vmem:[%s1736] sm:$0xff] %v1718
        %1738 = vst [vmem:[%s1736 + $0x8] sm:$0xff] %v1719
        %v1739 = vld [vmem:[#allocation2] sm:$0xff]
        %v1740 = vld [vmem:[#allocation2 + $0x8] sm:$0xff]
        %v1741 = vld [vmem:[#allocation3] sm:$0xff]
        %v1742 = vld [vmem:[#allocation3 + $0x8] sm:$0xff]
        %s1743 = scalar_lea.vmem %s455, 16 [#allocation6]
        %v1744 = vld [vmem:[%s1743] sm:$0xf]
        %v1745 = vld [vmem:[%s1743 + $0x4] sm:$0xf]
        %1746 = vst [vmem:[#allocation4] sm:$0xf] %v1744
        %1747 = vst [vmem:[#allocation4 + $0x8] sm:$0xf] %v1745
        %v1748 = vld [vmem:[#allocation4] sm:$0xff]
        %v1749 = vld [vmem:[#allocation4 + $0x8] sm:$0xff]
        %v1750 = vld [vmem:[%s4] sm:$0xff]
        %v1751 = vld [vmem:[%s4 + $0x8] sm:$0xff]
        %v1752 = vld [vmem:[%s4 + $0x10] sm:$0xff]
        %v1753 = vld [vmem:[%s4 + $0x18] sm:$0xff]
        %v1754 = vld [vmem:[%s4 + $0x20] sm:$0xff]
        %v1755 = vld [vmem:[%s4 + $0x28] sm:$0xff]
        %v1756 = vld [vmem:[%s4 + $0x30] sm:$0xff]
        %v1757 = vld [vmem:[%s4 + $0x38] sm:$0xff]
        %v1758 = vld [vmem:[%s4 + $0x40] sm:$0xff]
        %v1759 = vld [vmem:[%s4 + $0x48] sm:$0xff]
        %v1760 = vld [vmem:[%s4 + $0x50] sm:$0xff]
        %v1761 = vld [vmem:[%s4 + $0x58] sm:$0xff]
        %v1762 = vld [vmem:[%s4 + $0x60] sm:$0xff]
        %v1763 = vld [vmem:[%s4 + $0x68] sm:$0xff]
        %v1764 = vld [vmem:[%s4 + $0x70] sm:$0xff]
        %v1765 = vld [vmem:[%s4 + $0x78] sm:$0xff]
        %v1766 = vld [vmem:[%s4 + $0x80] sm:$0xff]
        %v1767 = vld [vmem:[%s4 + $0x88] sm:$0xff]
        %v1768 = vld [vmem:[%s4 + $0x90] sm:$0xff]
        %v1769 = vld [vmem:[%s4 + $0x98] sm:$0xff]
        %v1770 = vld [vmem:[%s4 + $0xa0] sm:$0xff]
        %v1771 = vld [vmem:[%s4 + $0xa8] sm:$0xff]
        %v1772 = vld [vmem:[%s4 + $0xb0] sm:$0xff]
        %v1773 = vld [vmem:[%s4 + $0xb8] sm:$0xff]
        %v1774 = vld [vmem:[%s4 + $0xc0] sm:$0xff]
        %v1775 = vld [vmem:[%s4 + $0xc8] sm:$0xff]
        %v1776 = vld [vmem:[%s4 + $0xd0] sm:$0xff]
        %v1777 = vld [vmem:[%s4 + $0xd8] sm:$0xff]
        %v1778 = vld [vmem:[%s4 + $0xe0] sm:$0xff]
        %v1779 = vld [vmem:[%s4 + $0xe8] sm:$0xff]
        %v1780 = vld [vmem:[%s4 + $0xf0] sm:$0xff]
        %v1781 = vld [vmem:[%s4 + $0xf8] sm:$0xff]
        %v1782 = vld [vmem:[%s4 + $0x100] sm:$0xff]
        %v1783 = vld [vmem:[%s4 + $0x108] sm:$0xff]
        %v1784 = vld [vmem:[%s4 + $0x110] sm:$0xff]
        %v1785 = vld [vmem:[%s4 + $0x118] sm:$0xff]
        %v1786 = vld [vmem:[%s4 + $0x120] sm:$0xff]
        %v1787 = vld [vmem:[%s4 + $0x128] sm:$0xff]
        %v1788 = vld [vmem:[%s4 + $0x130] sm:$0xff]
        %v1789 = vld [vmem:[%s4 + $0x138] sm:$0xff]
        %v1790 = vld [vmem:[%s4 + $0x140] sm:$0xff]
        %v1791 = vld [vmem:[%s4 + $0x148] sm:$0xff]
        %v1792 = vld [vmem:[%s4 + $0x150] sm:$0xff]
        %v1793 = vld [vmem:[%s4 + $0x158] sm:$0xff]
        %v1794 = vld [vmem:[%s4 + $0x160] sm:$0xff]
        %v1795 = vld [vmem:[%s4 + $0x168] sm:$0xff]
        %v1796 = vld [vmem:[%s4 + $0x170] sm:$0xff]
        %v1797 = vld [vmem:[%s4 + $0x178] sm:$0xff]
        %v1798 = vld [vmem:[%s4 + $0x180] sm:$0xff]
        %v1799 = vld [vmem:[%s4 + $0x188] sm:$0xff]
        %v1800 = vld [vmem:[%s4 + $0x190] sm:$0xff]
        %v1801 = vld [vmem:[%s4 + $0x198] sm:$0xff]
        %v1802 = vld [vmem:[%s4 + $0x1a0] sm:$0xff]
        %v1803 = vld [vmem:[%s4 + $0x1a8] sm:$0xff]
        %v1804 = vld [vmem:[%s4 + $0x1b0] sm:$0xff]
        %v1805 = vld [vmem:[%s4 + $0x1b8] sm:$0xff]
        %v1806 = vld [vmem:[%s4 + $0x1c0] sm:$0xff]
        %v1807 = vld [vmem:[%s4 + $0x1c8] sm:$0xff]
        %v1808 = vld [vmem:[%s4 + $0x1d0] sm:$0xff]
        %v1809 = vld [vmem:[%s4 + $0x1d8] sm:$0xff]
        %v1810 = vld [vmem:[%s4 + $0x1e0] sm:$0xff]
        %v1811 = vld [vmem:[%s4 + $0x1e8] sm:$0xff]
        %v1812 = vld [vmem:[%s4 + $0x1f0] sm:$0xff]
        %v1813 = vld [vmem:[%s4 + $0x1f8] sm:$0xff]
        %v1814 = vld [vmem:[%s5] sm:$0xf]
        %v1816 = vlaneseq
        %v1817 = vshrl.u32 %v1816, 7
        %v1818 = vsub.s32 0, %v1817
        %v1819 = vrot.slane %v1814, %v1818
        %v1820 = vlaneseq
        %v1821 = vshrl.u32 %v1820, 7
        %v1822 = vsub.s32 1, %v1821
        %v1823 = vrot.slane %v1814, %v1822
        %v1824 = vlaneseq
        %v1825 = vshrl.u32 %v1824, 7
        %v1826 = vsub.s32 2, %v1825
        %v1827 = vrot.slane %v1814, %v1826
        %v1828 = vlaneseq
        %v1829 = vshrl.u32 %v1828, 7
        %v1830 = vsub.s32 3, %v1829
        %v1831 = vrot.slane %v1814, %v1830
        %v1838 = vunpack.c.l.b16 %v1748
        %v1839 = vunpack.c.h.b16 %v1748
        %v1840 = vunpack.c.l.b16 %v1749
        %v1841 = vunpack.c.h.b16 %v1749
        %v1842 = vpack.c.b16 %v1840, %v1838
        %v1843 = vpack.c.b16 %v1841, %v1839
        %v1910 = vunpack.c.l.b16 %v1750
        %v1911 = vunpack.c.h.b16 %v1750
        %v1912 = vunpack.c.l.b16 %v1751
        %v1913 = vunpack.c.h.b16 %v1751
        %v1914 = vunpack.c.l.b16 %v1752
        %v1915 = vunpack.c.h.b16 %v1752
        %v1916 = vunpack.c.l.b16 %v1753
        %v1917 = vunpack.c.h.b16 %v1753
        %v1918 = vunpack.c.l.b16 %v1754
        %v1919 = vunpack.c.h.b16 %v1754
        %v1920 = vunpack.c.l.b16 %v1755
        %v1921 = vunpack.c.h.b16 %v1755
        %v1922 = vunpack.c.l.b16 %v1756
        %v1923 = vunpack.c.h.b16 %v1756
        %v1924 = vunpack.c.l.b16 %v1757
        %v1925 = vunpack.c.h.b16 %v1757
        %v1926 = vunpack.c.l.b16 %v1758
        %v1927 = vunpack.c.h.b16 %v1758
        %v1928 = vunpack.c.l.b16 %v1759
        %v1929 = vunpack.c.h.b16 %v1759
        %v1930 = vunpack.c.l.b16 %v1760
        %v1931 = vunpack.c.h.b16 %v1760
        %v1932 = vunpack.c.l.b16 %v1761
        %v1933 = vunpack.c.h.b16 %v1761
        %v1934 = vunpack.c.l.b16 %v1762
        %v1935 = vunpack.c.h.b16 %v1762
        %v1936 = vunpack.c.l.b16 %v1763
        %v1937 = vunpack.c.h.b16 %v1763
        %v1938 = vunpack.c.l.b16 %v1764
        %v1939 = vunpack.c.h.b16 %v1764
        %v1940 = vunpack.c.l.b16 %v1765
        %v1941 = vunpack.c.h.b16 %v1765
        %v1942 = vunpack.c.l.b16 %v1766
        %v1943 = vunpack.c.h.b16 %v1766
        %v1944 = vunpack.c.l.b16 %v1767
        %v1945 = vunpack.c.h.b16 %v1767
        %v1946 = vunpack.c.l.b16 %v1768
        %v1947 = vunpack.c.h.b16 %v1768
        %v1948 = vunpack.c.l.b16 %v1769
        %v1949 = vunpack.c.h.b16 %v1769
        %v1950 = vunpack.c.l.b16 %v1770
        %v1951 = vunpack.c.h.b16 %v1770
        %v1952 = vunpack.c.l.b16 %v1771
        %v1953 = vunpack.c.h.b16 %v1771
        %v1954 = vunpack.c.l.b16 %v1772
        %v1955 = vunpack.c.h.b16 %v1772
        %v1956 = vunpack.c.l.b16 %v1773
        %v1957 = vunpack.c.h.b16 %v1773
        %v1958 = vunpack.c.l.b16 %v1774
        %v1959 = vunpack.c.h.b16 %v1774
        %v1960 = vunpack.c.l.b16 %v1775
        %v1961 = vunpack.c.h.b16 %v1775
        %v1962 = vunpack.c.l.b16 %v1776
        %v1963 = vunpack.c.h.b16 %v1776
        %v1964 = vunpack.c.l.b16 %v1777
        %v1965 = vunpack.c.h.b16 %v1777
        %v1966 = vunpack.c.l.b16 %v1778
        %v1967 = vunpack.c.h.b16 %v1778
        %v1968 = vunpack.c.l.b16 %v1779
        %v1969 = vunpack.c.h.b16 %v1779
        %v1970 = vunpack.c.l.b16 %v1780
        %v1971 = vunpack.c.h.b16 %v1780
        %v1972 = vunpack.c.l.b16 %v1781
        %v1973 = vunpack.c.h.b16 %v1781
        %v1974 = vunpack.c.l.b16 %v1782
        %v1975 = vunpack.c.h.b16 %v1782
        %v1976 = vunpack.c.l.b16 %v1783
        %v1977 = vunpack.c.h.b16 %v1783
        %v1978 = vunpack.c.l.b16 %v1784
        %v1979 = vunpack.c.h.b16 %v1784
        %v1980 = vunpack.c.l.b16 %v1785
        %v1981 = vunpack.c.h.b16 %v1785
        %v1982 = vunpack.c.l.b16 %v1786
        %v1983 = vunpack.c.h.b16 %v1786
        %v1984 = vunpack.c.l.b16 %v1787
        %v1985 = vunpack.c.h.b16 %v1787
        %v1986 = vunpack.c.l.b16 %v1788
        %v1987 = vunpack.c.h.b16 %v1788
        %v1988 = vunpack.c.l.b16 %v1789
        %v1989 = vunpack.c.h.b16 %v1789
        %v1990 = vunpack.c.l.b16 %v1790
        %v1991 = vunpack.c.h.b16 %v1790
        %v1992 = vunpack.c.l.b16 %v1791
        %v1993 = vunpack.c.h.b16 %v1791
        %v1994 = vunpack.c.l.b16 %v1792
        %v1995 = vunpack.c.h.b16 %v1792
        %v1996 = vunpack.c.l.b16 %v1793
        %v1997 = vunpack.c.h.b16 %v1793
        %v1998 = vunpack.c.l.b16 %v1794
        %v1999 = vunpack.c.h.b16 %v1794
        %v2000 = vunpack.c.l.b16 %v1795
        %v2001 = vunpack.c.h.b16 %v1795
        %v2002 = vunpack.c.l.b16 %v1796
        %v2003 = vunpack.c.h.b16 %v1796
        %v2004 = vunpack.c.l.b16 %v1797
        %v2005 = vunpack.c.h.b16 %v1797
        %v2006 = vunpack.c.l.b16 %v1798
        %v2007 = vunpack.c.h.b16 %v1798
        %v2008 = vunpack.c.l.b16 %v1799
        %v2009 = vunpack.c.h.b16 %v1799
        %v2010 = vunpack.c.l.b16 %v1800
        %v2011 = vunpack.c.h.b16 %v1800
        %v2012 = vunpack.c.l.b16 %v1801
        %v2013 = vunpack.c.h.b16 %v1801
        %v2014 = vunpack.c.l.b16 %v1802
        %v2015 = vunpack.c.h.b16 %v1802
        %v2016 = vunpack.c.l.b16 %v1803
        %v2017 = vunpack.c.h.b16 %v1803
        %v2018 = vunpack.c.l.b16 %v1804
        %v2019 = vunpack.c.h.b16 %v1804
        %v2020 = vunpack.c.l.b16 %v1805
        %v2021 = vunpack.c.h.b16 %v1805
        %v2022 = vunpack.c.l.b16 %v1806
        %v2023 = vunpack.c.h.b16 %v1806
        %v2024 = vunpack.c.l.b16 %v1807
        %v2025 = vunpack.c.h.b16 %v1807
        %v2026 = vunpack.c.l.b16 %v1808
        %v2027 = vunpack.c.h.b16 %v1808
        %v2028 = vunpack.c.l.b16 %v1809
        %v2029 = vunpack.c.h.b16 %v1809
        %v2030 = vunpack.c.l.b16 %v1810
        %v2031 = vunpack.c.h.b16 %v1810
        %v2032 = vunpack.c.l.b16 %v1811
        %v2033 = vunpack.c.h.b16 %v1811
        %v2034 = vunpack.c.l.b16 %v1812
        %v2035 = vunpack.c.h.b16 %v1812
        %v2036 = vunpack.c.l.b16 %v1813
        %v2037 = vunpack.c.h.b16 %v1813
        %v2038 = vpack.c.b16 %v1914, %v1910
        %v2039 = vpack.c.b16 %v1915, %v1911
        %v2040 = vpack.c.b16 %v1916, %v1912
        %v2041 = vpack.c.b16 %v1917, %v1913
        %v2042 = vpack.c.b16 %v1922, %v1918
        %v2043 = vpack.c.b16 %v1923, %v1919
        %v2044 = vpack.c.b16 %v1924, %v1920
        %v2045 = vpack.c.b16 %v1925, %v1921
        %v2046 = vpack.c.b16 %v1930, %v1926
        %v2047 = vpack.c.b16 %v1931, %v1927
        %v2048 = vpack.c.b16 %v1932, %v1928
        %v2049 = vpack.c.b16 %v1933, %v1929
        %v2050 = vpack.c.b16 %v1938, %v1934
        %v2051 = vpack.c.b16 %v1939, %v1935
        %v2052 = vpack.c.b16 %v1940, %v1936
        %v2053 = vpack.c.b16 %v1941, %v1937
        %v2054 = vpack.c.b16 %v1946, %v1942
        %v2055 = vpack.c.b16 %v1947, %v1943
        %v2056 = vpack.c.b16 %v1948, %v1944
        %v2057 = vpack.c.b16 %v1949, %v1945
        %v2058 = vpack.c.b16 %v1954, %v1950
        %v2059 = vpack.c.b16 %v1955, %v1951
        %v2060 = vpack.c.b16 %v1956, %v1952
        %v2061 = vpack.c.b16 %v1957, %v1953
        %v2062 = vpack.c.b16 %v1962, %v1958
        %v2063 = vpack.c.b16 %v1963, %v1959
        %v2064 = vpack.c.b16 %v1964, %v1960
        %v2065 = vpack.c.b16 %v1965, %v1961
        %v2066 = vpack.c.b16 %v1970, %v1966
        %v2067 = vpack.c.b16 %v1971, %v1967
        %v2068 = vpack.c.b16 %v1972, %v1968
        %v2069 = vpack.c.b16 %v1973, %v1969
        %v2070 = vpack.c.b16 %v1978, %v1974
        %v2071 = vpack.c.b16 %v1979, %v1975
        %v2072 = vpack.c.b16 %v1980, %v1976
        %v2073 = vpack.c.b16 %v1981, %v1977
        %v2074 = vpack.c.b16 %v1986, %v1982
        %v2075 = vpack.c.b16 %v1987, %v1983
        %v2076 = vpack.c.b16 %v1988, %v1984
        %v2077 = vpack.c.b16 %v1989, %v1985
        %v2078 = vpack.c.b16 %v1994, %v1990
        %v2079 = vpack.c.b16 %v1995, %v1991
        %v2080 = vpack.c.b16 %v1996, %v1992
        %v2081 = vpack.c.b16 %v1997, %v1993
        %v2082 = vpack.c.b16 %v2002, %v1998
        %v2083 = vpack.c.b16 %v2003, %v1999
        %v2084 = vpack.c.b16 %v2004, %v2000
        %v2085 = vpack.c.b16 %v2005, %v2001
        %v2086 = vpack.c.b16 %v2010, %v2006
        %v2087 = vpack.c.b16 %v2011, %v2007
        %v2088 = vpack.c.b16 %v2012, %v2008
        %v2089 = vpack.c.b16 %v2013, %v2009
        %v2090 = vpack.c.b16 %v2018, %v2014
        %v2091 = vpack.c.b16 %v2019, %v2015
        %v2092 = vpack.c.b16 %v2020, %v2016
        %v2093 = vpack.c.b16 %v2021, %v2017
        %v2094 = vpack.c.b16 %v2026, %v2022
        %v2095 = vpack.c.b16 %v2027, %v2023
        %v2096 = vpack.c.b16 %v2028, %v2024
        %v2097 = vpack.c.b16 %v2029, %v2025
        %v2098 = vpack.c.b16 %v2034, %v2030
        %v2099 = vpack.c.b16 %v2035, %v2031
        %v2100 = vpack.c.b16 %v2036, %v2032
        %v2101 = vpack.c.b16 %v2037, %v2033
        %2166 = vmatprep.subr.bf16.mxu0 %v2067
        %2167 = vmatpush1.bf16.msra.mxu0 %v2066
        %2168 = vmatprep.subr.bf16.mxu0 %v2063
        %2169 = vmatpush1.bf16.msra.mxu0 %v2062
        %2170 = vmatprep.subr.bf16.mxu0 %v2059
        %2171 = vmatpush1.bf16.msra.mxu0 %v2058
        %2172 = vmatprep.subr.bf16.mxu0 %v2055
        %2173 = vmatpush1.bf16.msra.mxu0 %v2054
        %2174 = vmatprep.subr.bf16.mxu0 %v2051
        %2175 = vmatpush1.bf16.msra.mxu0 %v2050
        %2176 = vmatprep.subr.bf16.mxu0 %v2047
        %2177 = vmatpush1.bf16.msra.mxu0 %v2046
        %2178 = vmatprep.subr.bf16.mxu0 %v2043
        %2179 = vmatpush1.bf16.msra.mxu0 %v2042
        %2180 = vmatprep.subr.bf16.mxu0 %v2039
        %2181 = vmatpush1.bf16.msra.mxu0 %v2038
        %2182 = vmatprep.subr.bf16.mxu0 %v2099
        %2183 = vmatpush2.bf16.msra.mxu0 %v2098
        %2184 = vmatprep.subr.bf16.mxu0 %v2095
        %2185 = vmatpush2.bf16.msra.mxu0 %v2094
        %2186 = vmatprep.subr.bf16.mxu0 %v2091
        %2187 = vmatpush2.bf16.msra.mxu0 %v2090
        %2188 = vmatprep.subr.bf16.mxu0 %v2087
        %2189 = vmatpush2.bf16.msra.mxu0 %v2086
        %2190 = vmatprep.subr.bf16.mxu0 %v2083
        %2191 = vmatpush2.bf16.msra.mxu0 %v2082
        %2192 = vmatprep.subr.bf16.mxu0 %v2079
        %2193 = vmatpush2.bf16.msra.mxu0 %v2078
        %2194 = vmatprep.subr.bf16.mxu0 %v2075
        %2195 = vmatpush2.bf16.msra.mxu0 %v2074
        %2196 = vmatprep.subr.bf16.mxu0 %v2071
        %2197 = vmatpush2.bf16.msra.mxu0 %v2070
        %2198 = vmatprep.mubr.bf16.mxu0 %v1843
        %2199 = vmatmul.mubr.bf16.gmra.mxu0 %v1842
        %v2200 = vpop.f32.mrf.mxu0
        %v2201 = vadd.f32 %v1819, %v2200
        %v2202 = vpop.f32.mrf.mxu0
        %v2203 = vadd.f32 %v1823, %v2202
        %v2204 = vpop.f32.mrf.mxu0
        %v2205 = vadd.f32 %v1819, %v2204
        %v2206 = vpop.f32.mrf.mxu0
        %v2207 = vadd.f32 %v1823, %v2206
        %2208 = vdwg.mxu0
        %2209 = vmatprep.subr.bf16.mxu0 %v2069
        %2210 = vmatpush1.bf16.msra.mxu0 %v2068
        %2211 = vmatprep.subr.bf16.mxu0 %v2065
        %2212 = vmatpush1.bf16.msra.mxu0 %v2064
        %2213 = vmatprep.subr.bf16.mxu0 %v2061
        %2214 = vmatpush1.bf16.msra.mxu0 %v2060
        %2215 = vmatprep.subr.bf16.mxu0 %v2057
        %2216 = vmatpush1.bf16.msra.mxu0 %v2056
        %2217 = vmatprep.subr.bf16.mxu0 %v2053
        %2218 = vmatpush1.bf16.msra.mxu0 %v2052
        %2219 = vmatprep.subr.bf16.mxu0 %v2049
        %2220 = vmatpush1.bf16.msra.mxu0 %v2048
        %2221 = vmatprep.subr.bf16.mxu0 %v2045
        %2222 = vmatpush1.bf16.msra.mxu0 %v2044
        %2223 = vmatprep.subr.bf16.mxu0 %v2041
        %2224 = vmatpush1.bf16.msra.mxu0 %v2040
        %2225 = vmatprep.subr.bf16.mxu0 %v2101
        %2226 = vmatpush2.bf16.msra.mxu0 %v2100
        %2227 = vmatprep.subr.bf16.mxu0 %v2097
        %2228 = vmatpush2.bf16.msra.mxu0 %v2096
        %2229 = vmatprep.subr.bf16.mxu0 %v2093
        %2230 = vmatpush2.bf16.msra.mxu0 %v2092
        %2231 = vmatprep.subr.bf16.mxu0 %v2089
        %2232 = vmatpush2.bf16.msra.mxu0 %v2088
        %2233 = vmatprep.subr.bf16.mxu0 %v2085
        %2234 = vmatpush2.bf16.msra.mxu0 %v2084
        %2235 = vmatprep.subr.bf16.mxu0 %v2081
        %2236 = vmatpush2.bf16.msra.mxu0 %v2080
        %2237 = vmatprep.subr.bf16.mxu0 %v2077
        %2238 = vmatpush2.bf16.msra.mxu0 %v2076
        %2239 = vmatprep.subr.bf16.mxu0 %v2073
        %2240 = vmatpush2.bf16.msra.mxu0 %v2072
        %2241 = vmatprep.mubr.bf16.mxu0 %v1843
        %2242 = vmatmul.mubr.bf16.gmra.mxu0 %v1842
        %v2243 = vpop.f32.mrf.mxu0
        %v2244 = vadd.f32 %v1827, %v2243
        %v2245 = vpop.f32.mrf.mxu0
        %v2246 = vadd.f32 %v1831, %v2245
        %v2247 = vpop.f32.mrf.mxu0
        %v2248 = vadd.f32 %v1827, %v2247
        %v2249 = vpop.f32.mrf.mxu0
        %v2250 = vadd.f32 %v1831, %v2249
        %2251 = vdwg.mxu0
        %v2252 = vxor.u32 %v2201, 2147483648
        %v2253 = vxor.u32 %v2205, 2147483648
        %v2254 = vmul.f32 %v2252, 1.442695
        %v2255 = vpow.pop %v2254
        %v2256 = vmul.f32 %v2253, 1.442695
        %v2257 = vpow.pop %v2256
        %v2258 = vadd.f32 %v2255, 1.0
        %v2259 = vadd.f32 %v2257, 1.0
        %v2260 = vrcp.pop %v2258
        %v2261 = vmul.f32 1.0, %v2260
        %v2262 = vrcp.pop %v2259
        %v2263 = vmul.f32 1.0, %v2262
        %v2264 = vxor.u32 %v2203, 2147483648
        %v2265 = vxor.u32 %v2207, 2147483648
        %v2266 = vmul.f32 %v2264, 1.442695
        %v2267 = vpow.pop %v2266
        %v2268 = vmul.f32 %v2265, 1.442695
        %v2269 = vpow.pop %v2268
        %v2270 = vadd.f32 %v2267, 1.0
        %v2271 = vadd.f32 %v2269, 1.0
        %v2272 = vrcp.pop %v2270
        %v2273 = vmul.f32 1.0, %v2272
        %v2274 = vrcp.pop %v2271
        %v2275 = vmul.f32 1.0, %v2274
        %v2276 = vtanh.pop %v2244
        %v2277 = vtanh.pop %v2248
        %v2278 = vxor.u32 %v2246, 2147483648
        %v2279 = vxor.u32 %v2250, 2147483648
        %v2280 = vmul.f32 %v2278, 1.442695
        %v2281 = vpow.pop %v2280
        %v2282 = vmul.f32 %v2279, 1.442695
        %v2283 = vpow.pop %v2282
        %v2284 = vadd.f32 %v2281, 1.0
        %v2285 = vadd.f32 %v2283, 1.0
        %v2286 = vrcp.pop %v2284
        %v2287 = vmul.f32 1.0, %v2286
        %v2288 = vrcp.pop %v2285
        %v2289 = vmul.f32 1.0, %v2288
        %v2290 = vmul.f32 %v2273, %v1741
        %v2291 = vmul.f32 %v2275, %v1742
        %v2292 = vmul.f32 %v2261, %v2276
        %v2293 = vmul.f32 %v2263, %v2277
        %v2294 = vadd.f32 %v2290, %v2292
        %v2295 = vadd.f32 %v2291, %v2293
        %v2296 = vtanh.pop %v2294
        %v2297 = vtanh.pop %v2295
        %v2298 = vmul.f32 %v2287, %v2296
        %v2299 = vmul.f32 %v2289, %v2297
        %s2300 = scalar_lea.vmem %s447, 32 [#allocation5]
        %v2301 = vld [vmem:[%s2300] sm:$0xff]
        %v2302 = vld [vmem:[%s2300 + $0x8] sm:$0xff]
        %vm2303 = vcmp.ne.f32.partialorder %v2301, 0.0
        %vm2304 = vcmp.ne.f32.partialorder %v2302, 0.0
        %v2305 = vsel %vm2303, 1, 0
        %v2306 = vsel %vm2304, 1, 0
        %2307 = vset.pattern.permute.xlu0 0
        %2308 = vperm.xlu0 %2307, %v2305
        %v2309 = vpop.permute.xlu0 %2308
        %2310 = vset.pattern.permute.xlu0 0
        %2311 = vperm.xlu0 %2310, %v2306
        %v2312 = vpop.permute.xlu0 %2311
        %vm2313 = vcmp.eq.s32.totalorder %v2309, 1
        %vm2314 = vcmp.eq.s32.totalorder %v2312, 1
        %v2315 = vsel %vm2313, %v1739, %v2298
        %v2316 = vsel %vm2314, %v1740, %v2299
        %v2317 = vsel %vm2313, %v1741, %v2294
        %v2318 = vsel %vm2314, %v1742, %v2295
        %2319 = vst [vmem:[#allocation2] sm:$0xff] %v2315
        %2320 = vst [vmem:[#allocation2 + $0x8] sm:$0xff] %v2316
        %2321 = vst [vmem:[#allocation3] sm:$0xff] %v2317
        %2322 = vst [vmem:[#allocation3 + $0x8] sm:$0xff] %v2318
        %v2323 = vpack.c.bf16 %v2316, %v2315
        %v2325 = vunpack.c.l.b16 %v2323
        %v2326 = vunpack.c.h.b16 %v2323
        %v2327 = vpack.c.b16 %v2325, %v2325
        %v2328 = vpack.c.b16 %v2326, %v2326
        %2331 = vst [vmem:[#allocation4 + $0x4] sm:$0xf] %v2327
        %2332 = vst [vmem:[#allocation4 + $0xc] sm:$0xf] %v2328
        %s2333 = scalar_lea.vmem %s497, 32 [#allocation9]
        %2334 = vst [vmem:[%s2333] sm:$0xff] %v2315
        %2335 = vst [vmem:[%s2333 + $0x8] sm:$0xff] %v2316
        %v2336 = vld [vmem:[#allocation2] sm:$0xff]
        %v2337 = vld [vmem:[#allocation2 + $0x8] sm:$0xff]
        %v2338 = vld [vmem:[#allocation3] sm:$0xff]
        %v2339 = vld [vmem:[#allocation3 + $0x8] sm:$0xff]
        %s2340 = scalar_lea.vmem %s455, 24 [#allocation6]
        %v2341 = vld [vmem:[%s2340] sm:$0xf]
        %v2342 = vld [vmem:[%s2340 + $0x4] sm:$0xf]
        %2343 = vst [vmem:[#allocation4] sm:$0xf] %v2341
        %2344 = vst [vmem:[#allocation4 + $0x8] sm:$0xf] %v2342
        %v2345 = vld [vmem:[#allocation4] sm:$0xff]
        %v2346 = vld [vmem:[#allocation4 + $0x8] sm:$0xff]
        %v2347 = vld [vmem:[%s4] sm:$0xff]
        %v2348 = vld [vmem:[%s4 + $0x8] sm:$0xff]
        %v2349 = vld [vmem:[%s4 + $0x10] sm:$0xff]
        %v2350 = vld [vmem:[%s4 + $0x18] sm:$0xff]
        %v2351 = vld [vmem:[%s4 + $0x20] sm:$0xff]
        %v2352 = vld [vmem:[%s4 + $0x28] sm:$0xff]
        %v2353 = vld [vmem:[%s4 + $0x30] sm:$0xff]
        %v2354 = vld [vmem:[%s4 + $0x38] sm:$0xff]
        %v2355 = vld [vmem:[%s4 + $0x40] sm:$0xff]
        %v2356 = vld [vmem:[%s4 + $0x48] sm:$0xff]
        %v2357 = vld [vmem:[%s4 + $0x50] sm:$0xff]
        %v2358 = vld [vmem:[%s4 + $0x58] sm:$0xff]
        %v2359 = vld [vmem:[%s4 + $0x60] sm:$0xff]
        %v2360 = vld [vmem:[%s4 + $0x68] sm:$0xff]
        %v2361 = vld [vmem:[%s4 + $0x70] sm:$0xff]
        %v2362 = vld [vmem:[%s4 + $0x78] sm:$0xff]
        %v2363 = vld [vmem:[%s4 + $0x80] sm:$0xff]
        %v2364 = vld [vmem:[%s4 + $0x88] sm:$0xff]
        %v2365 = vld [vmem:[%s4 + $0x90] sm:$0xff]
        %v2366 = vld [vmem:[%s4 + $0x98] sm:$0xff]
        %v2367 = vld [vmem:[%s4 + $0xa0] sm:$0xff]
        %v2368 = vld [vmem:[%s4 + $0xa8] sm:$0xff]
        %v2369 = vld [vmem:[%s4 + $0xb0] sm:$0xff]
        %v2370 = vld [vmem:[%s4 + $0xb8] sm:$0xff]
        %v2371 = vld [vmem:[%s4 + $0xc0] sm:$0xff]
        %v2372 = vld [vmem:[%s4 + $0xc8] sm:$0xff]
        %v2373 = vld [vmem:[%s4 + $0xd0] sm:$0xff]
        %v2374 = vld [vmem:[%s4 + $0xd8] sm:$0xff]
        %v2375 = vld [vmem:[%s4 + $0xe0] sm:$0xff]
        %v2376 = vld [vmem:[%s4 + $0xe8] sm:$0xff]
        %v2377 = vld [vmem:[%s4 + $0xf0] sm:$0xff]
        %v2378 = vld [vmem:[%s4 + $0xf8] sm:$0xff]
        %v2379 = vld [vmem:[%s4 + $0x100] sm:$0xff]
        %v2380 = vld [vmem:[%s4 + $0x108] sm:$0xff]
        %v2381 = vld [vmem:[%s4 + $0x110] sm:$0xff]
        %v2382 = vld [vmem:[%s4 + $0x118] sm:$0xff]
        %v2383 = vld [vmem:[%s4 + $0x120] sm:$0xff]
        %v2384 = vld [vmem:[%s4 + $0x128] sm:$0xff]
        %v2385 = vld [vmem:[%s4 + $0x130] sm:$0xff]
        %v2386 = vld [vmem:[%s4 + $0x138] sm:$0xff]
        %v2387 = vld [vmem:[%s4 + $0x140] sm:$0xff]
        %v2388 = vld [vmem:[%s4 + $0x148] sm:$0xff]
        %v2389 = vld [vmem:[%s4 + $0x150] sm:$0xff]
        %v2390 = vld [vmem:[%s4 + $0x158] sm:$0xff]
        %v2391 = vld [vmem:[%s4 + $0x160] sm:$0xff]
        %v2392 = vld [vmem:[%s4 + $0x168] sm:$0xff]
        %v2393 = vld [vmem:[%s4 + $0x170] sm:$0xff]
        %v2394 = vld [vmem:[%s4 + $0x178] sm:$0xff]
        %v2395 = vld [vmem:[%s4 + $0x180] sm:$0xff]
        %v2396 = vld [vmem:[%s4 + $0x188] sm:$0xff]
        %v2397 = vld [vmem:[%s4 + $0x190] sm:$0xff]
        %v2398 = vld [vmem:[%s4 + $0x198] sm:$0xff]
        %v2399 = vld [vmem:[%s4 + $0x1a0] sm:$0xff]
        %v2400 = vld [vmem:[%s4 + $0x1a8] sm:$0xff]
        %v2401 = vld [vmem:[%s4 + $0x1b0] sm:$0xff]
        %v2402 = vld [vmem:[%s4 + $0x1b8] sm:$0xff]
        %v2403 = vld [vmem:[%s4 + $0x1c0] sm:$0xff]
        %v2404 = vld [vmem:[%s4 + $0x1c8] sm:$0xff]
        %v2405 = vld [vmem:[%s4 + $0x1d0] sm:$0xff]
        %v2406 = vld [vmem:[%s4 + $0x1d8] sm:$0xff]
        %v2407 = vld [vmem:[%s4 + $0x1e0] sm:$0xff]
        %v2408 = vld [vmem:[%s4 + $0x1e8] sm:$0xff]
        %v2409 = vld [vmem:[%s4 + $0x1f0] sm:$0xff]
        %v2410 = vld [vmem:[%s4 + $0x1f8] sm:$0xff]
        %v2411 = vld [vmem:[%s5] sm:$0xf]
        %v2413 = vlaneseq
        %v2414 = vshrl.u32 %v2413, 7
        %v2415 = vsub.s32 0, %v2414
        %v2416 = vrot.slane %v2411, %v2415
        %v2417 = vlaneseq
        %v2418 = vshrl.u32 %v2417, 7
        %v2419 = vsub.s32 1, %v2418
        %v2420 = vrot.slane %v2411, %v2419
        %v2421 = vlaneseq
        %v2422 = vshrl.u32 %v2421, 7
        %v2423 = vsub.s32 2, %v2422
        %v2424 = vrot.slane %v2411, %v2423
        %v2425 = vlaneseq
        %v2426 = vshrl.u32 %v2425, 7
        %v2427 = vsub.s32 3, %v2426
        %v2428 = vrot.slane %v2411, %v2427
        %v2435 = vunpack.c.l.b16 %v2345
        %v2436 = vunpack.c.h.b16 %v2345
        %v2437 = vunpack.c.l.b16 %v2346
        %v2438 = vunpack.c.h.b16 %v2346
        %v2439 = vpack.c.b16 %v2437, %v2435
        %v2440 = vpack.c.b16 %v2438, %v2436
        %v2507 = vunpack.c.l.b16 %v2347
        %v2508 = vunpack.c.h.b16 %v2347
        %v2509 = vunpack.c.l.b16 %v2348
        %v2510 = vunpack.c.h.b16 %v2348
        %v2511 = vunpack.c.l.b16 %v2349
        %v2512 = vunpack.c.h.b16 %v2349
        %v2513 = vunpack.c.l.b16 %v2350
        %v2514 = vunpack.c.h.b16 %v2350
        %v2515 = vunpack.c.l.b16 %v2351
        %v2516 = vunpack.c.h.b16 %v2351
        %v2517 = vunpack.c.l.b16 %v2352
        %v2518 = vunpack.c.h.b16 %v2352
        %v2519 = vunpack.c.l.b16 %v2353
        %v2520 = vunpack.c.h.b16 %v2353
        %v2521 = vunpack.c.l.b16 %v2354
        %v2522 = vunpack.c.h.b16 %v2354
        %v2523 = vunpack.c.l.b16 %v2355
        %v2524 = vunpack.c.h.b16 %v2355
        %v2525 = vunpack.c.l.b16 %v2356
        %v2526 = vunpack.c.h.b16 %v2356
        %v2527 = vunpack.c.l.b16 %v2357
        %v2528 = vunpack.c.h.b16 %v2357
        %v2529 = vunpack.c.l.b16 %v2358
        %v2530 = vunpack.c.h.b16 %v2358
        %v2531 = vunpack.c.l.b16 %v2359
        %v2532 = vunpack.c.h.b16 %v2359
        %v2533 = vunpack.c.l.b16 %v2360
        %v2534 = vunpack.c.h.b16 %v2360
        %v2535 = vunpack.c.l.b16 %v2361
        %v2536 = vunpack.c.h.b16 %v2361
        %v2537 = vunpack.c.l.b16 %v2362
        %v2538 = vunpack.c.h.b16 %v2362
        %v2539 = vunpack.c.l.b16 %v2363
        %v2540 = vunpack.c.h.b16 %v2363
        %v2541 = vunpack.c.l.b16 %v2364
        %v2542 = vunpack.c.h.b16 %v2364
        %v2543 = vunpack.c.l.b16 %v2365
        %v2544 = vunpack.c.h.b16 %v2365
        %v2545 = vunpack.c.l.b16 %v2366
        %v2546 = vunpack.c.h.b16 %v2366
        %v2547 = vunpack.c.l.b16 %v2367
        %v2548 = vunpack.c.h.b16 %v2367
        %v2549 = vunpack.c.l.b16 %v2368
        %v2550 = vunpack.c.h.b16 %v2368
        %v2551 = vunpack.c.l.b16 %v2369
        %v2552 = vunpack.c.h.b16 %v2369
        %v2553 = vunpack.c.l.b16 %v2370
        %v2554 = vunpack.c.h.b16 %v2370
        %v2555 = vunpack.c.l.b16 %v2371
        %v2556 = vunpack.c.h.b16 %v2371
        %v2557 = vunpack.c.l.b16 %v2372
        %v2558 = vunpack.c.h.b16 %v2372
        %v2559 = vunpack.c.l.b16 %v2373
        %v2560 = vunpack.c.h.b16 %v2373
        %v2561 = vunpack.c.l.b16 %v2374
        %v2562 = vunpack.c.h.b16 %v2374
        %v2563 = vunpack.c.l.b16 %v2375
        %v2564 = vunpack.c.h.b16 %v2375
        %v2565 = vunpack.c.l.b16 %v2376
        %v2566 = vunpack.c.h.b16 %v2376
        %v2567 = vunpack.c.l.b16 %v2377
        %v2568 = vunpack.c.h.b16 %v2377
        %v2569 = vunpack.c.l.b16 %v2378
        %v2570 = vunpack.c.h.b16 %v2378
        %v2571 = vunpack.c.l.b16 %v2379
        %v2572 = vunpack.c.h.b16 %v2379
        %v2573 = vunpack.c.l.b16 %v2380
        %v2574 = vunpack.c.h.b16 %v2380
        %v2575 = vunpack.c.l.b16 %v2381
        %v2576 = vunpack.c.h.b16 %v2381
        %v2577 = vunpack.c.l.b16 %v2382
        %v2578 = vunpack.c.h.b16 %v2382
        %v2579 = vunpack.c.l.b16 %v2383
        %v2580 = vunpack.c.h.b16 %v2383
        %v2581 = vunpack.c.l.b16 %v2384
        %v2582 = vunpack.c.h.b16 %v2384
        %v2583 = vunpack.c.l.b16 %v2385
        %v2584 = vunpack.c.h.b16 %v2385
        %v2585 = vunpack.c.l.b16 %v2386
        %v2586 = vunpack.c.h.b16 %v2386
        %v2587 = vunpack.c.l.b16 %v2387
        %v2588 = vunpack.c.h.b16 %v2387
        %v2589 = vunpack.c.l.b16 %v2388
        %v2590 = vunpack.c.h.b16 %v2388
        %v2591 = vunpack.c.l.b16 %v2389
        %v2592 = vunpack.c.h.b16 %v2389
        %v2593 = vunpack.c.l.b16 %v2390
        %v2594 = vunpack.c.h.b16 %v2390
        %v2595 = vunpack.c.l.b16 %v2391
        %v2596 = vunpack.c.h.b16 %v2391
        %v2597 = vunpack.c.l.b16 %v2392
        %v2598 = vunpack.c.h.b16 %v2392
        %v2599 = vunpack.c.l.b16 %v2393
        %v2600 = vunpack.c.h.b16 %v2393
        %v2601 = vunpack.c.l.b16 %v2394
        %v2602 = vunpack.c.h.b16 %v2394
        %v2603 = vunpack.c.l.b16 %v2395
        %v2604 = vunpack.c.h.b16 %v2395
        %v2605 = vunpack.c.l.b16 %v2396
        %v2606 = vunpack.c.h.b16 %v2396
        %v2607 = vunpack.c.l.b16 %v2397
        %v2608 = vunpack.c.h.b16 %v2397
        %v2609 = vunpack.c.l.b16 %v2398
        %v2610 = vunpack.c.h.b16 %v2398
        %v2611 = vunpack.c.l.b16 %v2399
        %v2612 = vunpack.c.h.b16 %v2399
        %v2613 = vunpack.c.l.b16 %v2400
        %v2614 = vunpack.c.h.b16 %v2400
        %v2615 = vunpack.c.l.b16 %v2401
        %v2616 = vunpack.c.h.b16 %v2401
        %v2617 = vunpack.c.l.b16 %v2402
        %v2618 = vunpack.c.h.b16 %v2402
        %v2619 = vunpack.c.l.b16 %v2403
        %v2620 = vunpack.c.h.b16 %v2403
        %v2621 = vunpack.c.l.b16 %v2404
        %v2622 = vunpack.c.h.b16 %v2404
        %v2623 = vunpack.c.l.b16 %v2405
        %v2624 = vunpack.c.h.b16 %v2405
        %v2625 = vunpack.c.l.b16 %v2406
        %v2626 = vunpack.c.h.b16 %v2406
        %v2627 = vunpack.c.l.b16 %v2407
        %v2628 = vunpack.c.h.b16 %v2407
        %v2629 = vunpack.c.l.b16 %v2408
        %v2630 = vunpack.c.h.b16 %v2408
        %v2631 = vunpack.c.l.b16 %v2409
        %v2632 = vunpack.c.h.b16 %v2409
        %v2633 = vunpack.c.l.b16 %v2410
        %v2634 = vunpack.c.h.b16 %v2410
        %v2635 = vpack.c.b16 %v2511, %v2507
        %v2636 = vpack.c.b16 %v2512, %v2508
        %v2637 = vpack.c.b16 %v2513, %v2509
        %v2638 = vpack.c.b16 %v2514, %v2510
        %v2639 = vpack.c.b16 %v2519, %v2515
        %v2640 = vpack.c.b16 %v2520, %v2516
        %v2641 = vpack.c.b16 %v2521, %v2517
        %v2642 = vpack.c.b16 %v2522, %v2518
        %v2643 = vpack.c.b16 %v2527, %v2523
        %v2644 = vpack.c.b16 %v2528, %v2524
        %v2645 = vpack.c.b16 %v2529, %v2525
        %v2646 = vpack.c.b16 %v2530, %v2526
        %v2647 = vpack.c.b16 %v2535, %v2531
        %v2648 = vpack.c.b16 %v2536, %v2532
        %v2649 = vpack.c.b16 %v2537, %v2533
        %v2650 = vpack.c.b16 %v2538, %v2534
        %v2651 = vpack.c.b16 %v2543, %v2539
        %v2652 = vpack.c.b16 %v2544, %v2540
        %v2653 = vpack.c.b16 %v2545, %v2541
        %v2654 = vpack.c.b16 %v2546, %v2542
        %v2655 = vpack.c.b16 %v2551, %v2547
        %v2656 = vpack.c.b16 %v2552, %v2548
        %v2657 = vpack.c.b16 %v2553, %v2549
        %v2658 = vpack.c.b16 %v2554, %v2550
        %v2659 = vpack.c.b16 %v2559, %v2555
        %v2660 = vpack.c.b16 %v2560, %v2556
        %v2661 = vpack.c.b16 %v2561, %v2557
        %v2662 = vpack.c.b16 %v2562, %v2558
        %v2663 = vpack.c.b16 %v2567, %v2563
        %v2664 = vpack.c.b16 %v2568, %v2564
        %v2665 = vpack.c.b16 %v2569, %v2565
        %v2666 = vpack.c.b16 %v2570, %v2566
        %v2667 = vpack.c.b16 %v2575, %v2571
        %v2668 = vpack.c.b16 %v2576, %v2572
        %v2669 = vpack.c.b16 %v2577, %v2573
        %v2670 = vpack.c.b16 %v2578, %v2574
        %v2671 = vpack.c.b16 %v2583, %v2579
        %v2672 = vpack.c.b16 %v2584, %v2580
        %v2673 = vpack.c.b16 %v2585, %v2581
        %v2674 = vpack.c.b16 %v2586, %v2582
        %v2675 = vpack.c.b16 %v2591, %v2587
        %v2676 = vpack.c.b16 %v2592, %v2588
        %v2677 = vpack.c.b16 %v2593, %v2589
        %v2678 = vpack.c.b16 %v2594, %v2590
        %v2679 = vpack.c.b16 %v2599, %v2595
        %v2680 = vpack.c.b16 %v2600, %v2596
        %v2681 = vpack.c.b16 %v2601, %v2597
        %v2682 = vpack.c.b16 %v2602, %v2598
        %v2683 = vpack.c.b16 %v2607, %v2603
        %v2684 = vpack.c.b16 %v2608, %v2604
        %v2685 = vpack.c.b16 %v2609, %v2605
        %v2686 = vpack.c.b16 %v2610, %v2606
        %v2687 = vpack.c.b16 %v2615, %v2611
        %v2688 = vpack.c.b16 %v2616, %v2612
        %v2689 = vpack.c.b16 %v2617, %v2613
        %v2690 = vpack.c.b16 %v2618, %v2614
        %v2691 = vpack.c.b16 %v2623, %v2619
        %v2692 = vpack.c.b16 %v2624, %v2620
        %v2693 = vpack.c.b16 %v2625, %v2621
        %v2694 = vpack.c.b16 %v2626, %v2622
        %v2695 = vpack.c.b16 %v2631, %v2627
        %v2696 = vpack.c.b16 %v2632, %v2628
        %v2697 = vpack.c.b16 %v2633, %v2629
        %v2698 = vpack.c.b16 %v2634, %v2630
        %2763 = vmatprep.subr.bf16.mxu0 %v2664
        %2764 = vmatpush1.bf16.msra.mxu0 %v2663
        %2765 = vmatprep.subr.bf16.mxu0 %v2660
        %2766 = vmatpush1.bf16.msra.mxu0 %v2659
        %2767 = vmatprep.subr.bf16.mxu0 %v2656
        %2768 = vmatpush1.bf16.msra.mxu0 %v2655
        %2769 = vmatprep.subr.bf16.mxu0 %v2652
        %2770 = vmatpush1.bf16.msra.mxu0 %v2651
        %2771 = vmatprep.subr.bf16.mxu0 %v2648
        %2772 = vmatpush1.bf16.msra.mxu0 %v2647
        %2773 = vmatprep.subr.bf16.mxu0 %v2644
        %2774 = vmatpush1.bf16.msra.mxu0 %v2643
        %2775 = vmatprep.subr.bf16.mxu0 %v2640
        %2776 = vmatpush1.bf16.msra.mxu0 %v2639
        %2777 = vmatprep.subr.bf16.mxu0 %v2636
        %2778 = vmatpush1.bf16.msra.mxu0 %v2635
        %2779 = vmatprep.subr.bf16.mxu0 %v2696
        %2780 = vmatpush2.bf16.msra.mxu0 %v2695
        %2781 = vmatprep.subr.bf16.mxu0 %v2692
        %2782 = vmatpush2.bf16.msra.mxu0 %v2691
        %2783 = vmatprep.subr.bf16.mxu0 %v2688
        %2784 = vmatpush2.bf16.msra.mxu0 %v2687
        %2785 = vmatprep.subr.bf16.mxu0 %v2684
        %2786 = vmatpush2.bf16.msra.mxu0 %v2683
        %2787 = vmatprep.subr.bf16.mxu0 %v2680
        %2788 = vmatpush2.bf16.msra.mxu0 %v2679
        %2789 = vmatprep.subr.bf16.mxu0 %v2676
        %2790 = vmatpush2.bf16.msra.mxu0 %v2675
        %2791 = vmatprep.subr.bf16.mxu0 %v2672
        %2792 = vmatpush2.bf16.msra.mxu0 %v2671
        %2793 = vmatprep.subr.bf16.mxu0 %v2668
        %2794 = vmatpush2.bf16.msra.mxu0 %v2667
        %2795 = vmatprep.mubr.bf16.mxu0 %v2440
        %2796 = vmatmul.mubr.bf16.gmra.mxu0 %v2439
        %v2797 = vpop.f32.mrf.mxu0
        %v2798 = vadd.f32 %v2416, %v2797
        %v2799 = vpop.f32.mrf.mxu0
        %v2800 = vadd.f32 %v2420, %v2799
        %v2801 = vpop.f32.mrf.mxu0
        %v2802 = vadd.f32 %v2416, %v2801
        %v2803 = vpop.f32.mrf.mxu0
        %v2804 = vadd.f32 %v2420, %v2803
        %2805 = vdwg.mxu0
        %2806 = vmatprep.subr.bf16.mxu0 %v2666
        %2807 = vmatpush1.bf16.msra.mxu0 %v2665
        %2808 = vmatprep.subr.bf16.mxu0 %v2662
        %2809 = vmatpush1.bf16.msra.mxu0 %v2661
        %2810 = vmatprep.subr.bf16.mxu0 %v2658
        %2811 = vmatpush1.bf16.msra.mxu0 %v2657
        %2812 = vmatprep.subr.bf16.mxu0 %v2654
        %2813 = vmatpush1.bf16.msra.mxu0 %v2653
        %2814 = vmatprep.subr.bf16.mxu0 %v2650
        %2815 = vmatpush1.bf16.msra.mxu0 %v2649
        %2816 = vmatprep.subr.bf16.mxu0 %v2646
        %2817 = vmatpush1.bf16.msra.mxu0 %v2645
        %2818 = vmatprep.subr.bf16.mxu0 %v2642
        %2819 = vmatpush1.bf16.msra.mxu0 %v2641
        %2820 = vmatprep.subr.bf16.mxu0 %v2638
        %2821 = vmatpush1.bf16.msra.mxu0 %v2637
        %2822 = vmatprep.subr.bf16.mxu0 %v2698
        %2823 = vmatpush2.bf16.msra.mxu0 %v2697
        %2824 = vmatprep.subr.bf16.mxu0 %v2694
        %2825 = vmatpush2.bf16.msra.mxu0 %v2693
        %2826 = vmatprep.subr.bf16.mxu0 %v2690
        %2827 = vmatpush2.bf16.msra.mxu0 %v2689
        %2828 = vmatprep.subr.bf16.mxu0 %v2686
        %2829 = vmatpush2.bf16.msra.mxu0 %v2685
        %2830 = vmatprep.subr.bf16.mxu0 %v2682
        %2831 = vmatpush2.bf16.msra.mxu0 %v2681
        %2832 = vmatprep.subr.bf16.mxu0 %v2678
        %2833 = vmatpush2.bf16.msra.mxu0 %v2677
        %2834 = vmatprep.subr.bf16.mxu0 %v2674
        %2835 = vmatpush2.bf16.msra.mxu0 %v2673
        %2836 = vmatprep.subr.bf16.mxu0 %v2670
        %2837 = vmatpush2.bf16.msra.mxu0 %v2669
        %2838 = vmatprep.mubr.bf16.mxu0 %v2440
        %2839 = vmatmul.mubr.bf16.gmra.mxu0 %v2439
        %v2840 = vpop.f32.mrf.mxu0
        %v2841 = vadd.f32 %v2424, %v2840
        %v2842 = vpop.f32.mrf.mxu0
        %v2843 = vadd.f32 %v2428, %v2842
        %v2844 = vpop.f32.mrf.mxu0
        %v2845 = vadd.f32 %v2424, %v2844
        %v2846 = vpop.f32.mrf.mxu0
        %v2847 = vadd.f32 %v2428, %v2846
        %2848 = vdwg.mxu0
        %v2849 = vxor.u32 %v2798, 2147483648
        %v2850 = vxor.u32 %v2802, 2147483648
        %v2851 = vmul.f32 %v2849, 1.442695
        %v2852 = vpow.pop %v2851
        %v2853 = vmul.f32 %v2850, 1.442695
        %v2854 = vpow.pop %v2853
        %v2855 = vadd.f32 %v2852, 1.0
        %v2856 = vadd.f32 %v2854, 1.0
        %v2857 = vrcp.pop %v2855
        %v2858 = vmul.f32 1.0, %v2857
        %v2859 = vrcp.pop %v2856
        %v2860 = vmul.f32 1.0, %v2859
        %v2861 = vxor.u32 %v2800, 2147483648
        %v2862 = vxor.u32 %v2804, 2147483648
        %v2863 = vmul.f32 %v2861, 1.442695
        %v2864 = vpow.pop %v2863
        %v2865 = vmul.f32 %v2862, 1.442695
        %v2866 = vpow.pop %v2865
        %v2867 = vadd.f32 %v2864, 1.0
        %v2868 = vadd.f32 %v2866, 1.0
        %v2869 = vrcp.pop %v2867
        %v2870 = vmul.f32 1.0, %v2869
        %v2871 = vrcp.pop %v2868
        %v2872 = vmul.f32 1.0, %v2871
        %v2873 = vtanh.pop %v2841
        %v2874 = vtanh.pop %v2845
        %v2875 = vxor.u32 %v2843, 2147483648
        %v2876 = vxor.u32 %v2847, 2147483648
        %v2877 = vmul.f32 %v2875, 1.442695
        %v2878 = vpow.pop %v2877
        %v2879 = vmul.f32 %v2876, 1.442695
        %v2880 = vpow.pop %v2879
        %v2881 = vadd.f32 %v2878, 1.0
        %v2882 = vadd.f32 %v2880, 1.0
        %v2883 = vrcp.pop %v2881
        %v2884 = vmul.f32 1.0, %v2883
        %v2885 = vrcp.pop %v2882
        %v2886 = vmul.f32 1.0, %v2885
        %v2887 = vmul.f32 %v2870, %v2338
        %v2888 = vmul.f32 %v2872, %v2339
        %v2889 = vmul.f32 %v2858, %v2873
        %v2890 = vmul.f32 %v2860, %v2874
        %v2891 = vadd.f32 %v2887, %v2889
        %v2892 = vadd.f32 %v2888, %v2890
        %v2893 = vtanh.pop %v2891
        %v2894 = vtanh.pop %v2892
        %v2895 = vmul.f32 %v2884, %v2893
        %v2896 = vmul.f32 %v2886, %v2894
        %s2897 = scalar_lea.vmem %s447, 48 [#allocation5]
        %v2898 = vld [vmem:[%s2897] sm:$0xff]
        %v2899 = vld [vmem:[%s2897 + $0x8] sm:$0xff]
        %vm2900 = vcmp.ne.f32.partialorder %v2898, 0.0
        %vm2901 = vcmp.ne.f32.partialorder %v2899, 0.0
        %v2902 = vsel %vm2900, 1, 0
        %v2903 = vsel %vm2901, 1, 0
        %2904 = vset.pattern.permute.xlu0 0
        %2905 = vperm.xlu0 %2904, %v2902
        %v2906 = vpop.permute.xlu0 %2905
        %2907 = vset.pattern.permute.xlu0 0
        %2908 = vperm.xlu0 %2907, %v2903
        %v2909 = vpop.permute.xlu0 %2908
        %vm2910 = vcmp.eq.s32.totalorder %v2906, 1
        %vm2911 = vcmp.eq.s32.totalorder %v2909, 1
        %v2912 = vsel %vm2910, %v2336, %v2895
        %v2913 = vsel %vm2911, %v2337, %v2896
        %v2914 = vsel %vm2910, %v2338, %v2891
        %v2915 = vsel %vm2911, %v2339, %v2892
        %2916 = vst [vmem:[#allocation2] sm:$0xff] %v2912
        %2917 = vst [vmem:[#allocation2 + $0x8] sm:$0xff] %v2913
        %2918 = vst [vmem:[#allocation3] sm:$0xff] %v2914
        %2919 = vst [vmem:[#allocation3 + $0x8] sm:$0xff] %v2915
        %v2920 = vpack.c.bf16 %v2913, %v2912
        %v2922 = vunpack.c.l.b16 %v2920
        %v2923 = vunpack.c.h.b16 %v2920
        %v2924 = vpack.c.b16 %v2922, %v2922
        %v2925 = vpack.c.b16 %v2923, %v2923
        %2928 = vst [vmem:[#allocation4 + $0x4] sm:$0xf] %v2924
        %2929 = vst [vmem:[#allocation4 + $0xc] sm:$0xf] %v2925
        %s2930 = scalar_lea.vmem %s497, 48 [#allocation9]
        %2931 = vst [vmem:[%s2930] sm:$0xff] %v2912
        %2932 = vst [vmem:[%s2930 + $0x8] sm:$0xff] %v2913
        %v2933 = vld [vmem:[#allocation2] sm:$0xff]
        %v2934 = vld [vmem:[#allocation2 + $0x8] sm:$0xff]
        %v2935 = vld [vmem:[#allocation3] sm:$0xff]
        %v2936 = vld [vmem:[#allocation3 + $0x8] sm:$0xff]
        %s2937 = scalar_lea.vmem %s455, 32 [#allocation6]
        %v2938 = vld [vmem:[%s2937] sm:$0xf]
        %v2939 = vld [vmem:[%s2937 + $0x4] sm:$0xf]
        %2940 = vst [vmem:[#allocation4] sm:$0xf] %v2938
        %2941 = vst [vmem:[#allocation4 + $0x8] sm:$0xf] %v2939
        %v2942 = vld [vmem:[#allocation4] sm:$0xff]
        %v2943 = vld [vmem:[#allocation4 + $0x8] sm:$0xff]
        %v2944 = vld [vmem:[%s4] sm:$0xff]
        %v2945 = vld [vmem:[%s4 + $0x8] sm:$0xff]
        %v2946 = vld [vmem:[%s4 + $0x10] sm:$0xff]
        %v2947 = vld [vmem:[%s4 + $0x18] sm:$0xff]
        %v2948 = vld [vmem:[%s4 + $0x20] sm:$0xff]
        %v2949 = vld [vmem:[%s4 + $0x28] sm:$0xff]
        %v2950 = vld [vmem:[%s4 + $0x30] sm:$0xff]
        %v2951 = vld [vmem:[%s4 + $0x38] sm:$0xff]
        %v2952 = vld [vmem:[%s4 + $0x40] sm:$0xff]
        %v2953 = vld [vmem:[%s4 + $0x48] sm:$0xff]
        %v2954 = vld [vmem:[%s4 + $0x50] sm:$0xff]
        %v2955 = vld [vmem:[%s4 + $0x58] sm:$0xff]
        %v2956 = vld [vmem:[%s4 + $0x60] sm:$0xff]
        %v2957 = vld [vmem:[%s4 + $0x68] sm:$0xff]
        %v2958 = vld [vmem:[%s4 + $0x70] sm:$0xff]
        %v2959 = vld [vmem:[%s4 + $0x78] sm:$0xff]
        %v2960 = vld [vmem:[%s4 + $0x80] sm:$0xff]
        %v2961 = vld [vmem:[%s4 + $0x88] sm:$0xff]
        %v2962 = vld [vmem:[%s4 + $0x90] sm:$0xff]
        %v2963 = vld [vmem:[%s4 + $0x98] sm:$0xff]
        %v2964 = vld [vmem:[%s4 + $0xa0] sm:$0xff]
        %v2965 = vld [vmem:[%s4 + $0xa8] sm:$0xff]
        %v2966 = vld [vmem:[%s4 + $0xb0] sm:$0xff]
        %v2967 = vld [vmem:[%s4 + $0xb8] sm:$0xff]
        %v2968 = vld [vmem:[%s4 + $0xc0] sm:$0xff]
        %v2969 = vld [vmem:[%s4 + $0xc8] sm:$0xff]
        %v2970 = vld [vmem:[%s4 + $0xd0] sm:$0xff]
        %v2971 = vld [vmem:[%s4 + $0xd8] sm:$0xff]
        %v2972 = vld [vmem:[%s4 + $0xe0] sm:$0xff]
        %v2973 = vld [vmem:[%s4 + $0xe8] sm:$0xff]
        %v2974 = vld [vmem:[%s4 + $0xf0] sm:$0xff]
        %v2975 = vld [vmem:[%s4 + $0xf8] sm:$0xff]
        %v2976 = vld [vmem:[%s4 + $0x100] sm:$0xff]
        %v2977 = vld [vmem:[%s4 + $0x108] sm:$0xff]
        %v2978 = vld [vmem:[%s4 + $0x110] sm:$0xff]
        %v2979 = vld [vmem:[%s4 + $0x118] sm:$0xff]
        %v2980 = vld [vmem:[%s4 + $0x120] sm:$0xff]
        %v2981 = vld [vmem:[%s4 + $0x128] sm:$0xff]
        %v2982 = vld [vmem:[%s4 + $0x130] sm:$0xff]
        %v2983 = vld [vmem:[%s4 + $0x138] sm:$0xff]
        %v2984 = vld [vmem:[%s4 + $0x140] sm:$0xff]
        %v2985 = vld [vmem:[%s4 + $0x148] sm:$0xff]
        %v2986 = vld [vmem:[%s4 + $0x150] sm:$0xff]
        %v2987 = vld [vmem:[%s4 + $0x158] sm:$0xff]
        %v2988 = vld [vmem:[%s4 + $0x160] sm:$0xff]
        %v2989 = vld [vmem:[%s4 + $0x168] sm:$0xff]
        %v2990 = vld [vmem:[%s4 + $0x170] sm:$0xff]
        %v2991 = vld [vmem:[%s4 + $0x178] sm:$0xff]
        %v2992 = vld [vmem:[%s4 + $0x180] sm:$0xff]
        %v2993 = vld [vmem:[%s4 + $0x188] sm:$0xff]
        %v2994 = vld [vmem:[%s4 + $0x190] sm:$0xff]
        %v2995 = vld [vmem:[%s4 + $0x198] sm:$0xff]
        %v2996 = vld [vmem:[%s4 + $0x1a0] sm:$0xff]
        %v2997 = vld [vmem:[%s4 + $0x1a8] sm:$0xff]
        %v2998 = vld [vmem:[%s4 + $0x1b0] sm:$0xff]
        %v2999 = vld [vmem:[%s4 + $0x1b8] sm:$0xff]
        %v3000 = vld [vmem:[%s4 + $0x1c0] sm:$0xff]
        %v3001 = vld [vmem:[%s4 + $0x1c8] sm:$0xff]
        %v3002 = vld [vmem:[%s4 + $0x1d0] sm:$0xff]
        %v3003 = vld [vmem:[%s4 + $0x1d8] sm:$0xff]
        %v3004 = vld [vmem:[%s4 + $0x1e0] sm:$0xff]
        %v3005 = vld [vmem:[%s4 + $0x1e8] sm:$0xff]
        %v3006 = vld [vmem:[%s4 + $0x1f0] sm:$0xff]
        %v3007 = vld [vmem:[%s4 + $0x1f8] sm:$0xff]
        %v3008 = vld [vmem:[%s5] sm:$0xf]
        %v3010 = vlaneseq
        %v3011 = vshrl.u32 %v3010, 7
        %v3012 = vsub.s32 0, %v3011
        %v3013 = vrot.slane %v3008, %v3012
        %v3014 = vlaneseq
        %v3015 = vshrl.u32 %v3014, 7
        %v3016 = vsub.s32 1, %v3015
        %v3017 = vrot.slane %v3008, %v3016
        %v3018 = vlaneseq
        %v3019 = vshrl.u32 %v3018, 7
        %v3020 = vsub.s32 2, %v3019
        %v3021 = vrot.slane %v3008, %v3020
        %v3022 = vlaneseq
        %v3023 = vshrl.u32 %v3022, 7
        %v3024 = vsub.s32 3, %v3023
        %v3025 = vrot.slane %v3008, %v3024
        %v3032 = vunpack.c.l.b16 %v2942
        %v3033 = vunpack.c.h.b16 %v2942
        %v3034 = vunpack.c.l.b16 %v2943
        %v3035 = vunpack.c.h.b16 %v2943
        %v3036 = vpack.c.b16 %v3034, %v3032
        %v3037 = vpack.c.b16 %v3035, %v3033
        %v3104 = vunpack.c.l.b16 %v2944
        %v3105 = vunpack.c.h.b16 %v2944
        %v3106 = vunpack.c.l.b16 %v2945
        %v3107 = vunpack.c.h.b16 %v2945
        %v3108 = vunpack.c.l.b16 %v2946
        %v3109 = vunpack.c.h.b16 %v2946
        %v3110 = vunpack.c.l.b16 %v2947
        %v3111 = vunpack.c.h.b16 %v2947
        %v3112 = vunpack.c.l.b16 %v2948
        %v3113 = vunpack.c.h.b16 %v2948
        %v3114 = vunpack.c.l.b16 %v2949
        %v3115 = vunpack.c.h.b16 %v2949
        %v3116 = vunpack.c.l.b16 %v2950
        %v3117 = vunpack.c.h.b16 %v2950
        %v3118 = vunpack.c.l.b16 %v2951
        %v3119 = vunpack.c.h.b16 %v2951
        %v3120 = vunpack.c.l.b16 %v2952
        %v3121 = vunpack.c.h.b16 %v2952
        %v3122 = vunpack.c.l.b16 %v2953
        %v3123 = vunpack.c.h.b16 %v2953
        %v3124 = vunpack.c.l.b16 %v2954
        %v3125 = vunpack.c.h.b16 %v2954
        %v3126 = vunpack.c.l.b16 %v2955
        %v3127 = vunpack.c.h.b16 %v2955
        %v3128 = vunpack.c.l.b16 %v2956
        %v3129 = vunpack.c.h.b16 %v2956
        %v3130 = vunpack.c.l.b16 %v2957
        %v3131 = vunpack.c.h.b16 %v2957
        %v3132 = vunpack.c.l.b16 %v2958
        %v3133 = vunpack.c.h.b16 %v2958
        %v3134 = vunpack.c.l.b16 %v2959
        %v3135 = vunpack.c.h.b16 %v2959
        %v3136 = vunpack.c.l.b16 %v2960
        %v3137 = vunpack.c.h.b16 %v2960
        %v3138 = vunpack.c.l.b16 %v2961
        %v3139 = vunpack.c.h.b16 %v2961
        %v3140 = vunpack.c.l.b16 %v2962
        %v3141 = vunpack.c.h.b16 %v2962
        %v3142 = vunpack.c.l.b16 %v2963
        %v3143 = vunpack.c.h.b16 %v2963
        %v3144 = vunpack.c.l.b16 %v2964
        %v3145 = vunpack.c.h.b16 %v2964
        %v3146 = vunpack.c.l.b16 %v2965
        %v3147 = vunpack.c.h.b16 %v2965
        %v3148 = vunpack.c.l.b16 %v2966
        %v3149 = vunpack.c.h.b16 %v2966
        %v3150 = vunpack.c.l.b16 %v2967
        %v3151 = vunpack.c.h.b16 %v2967
        %v3152 = vunpack.c.l.b16 %v2968
        %v3153 = vunpack.c.h.b16 %v2968
        %v3154 = vunpack.c.l.b16 %v2969
        %v3155 = vunpack.c.h.b16 %v2969
        %v3156 = vunpack.c.l.b16 %v2970
        %v3157 = vunpack.c.h.b16 %v2970
        %v3158 = vunpack.c.l.b16 %v2971
        %v3159 = vunpack.c.h.b16 %v2971
        %v3160 = vunpack.c.l.b16 %v2972
        %v3161 = vunpack.c.h.b16 %v2972
        %v3162 = vunpack.c.l.b16 %v2973
        %v3163 = vunpack.c.h.b16 %v2973
        %v3164 = vunpack.c.l.b16 %v2974
        %v3165 = vunpack.c.h.b16 %v2974
        %v3166 = vunpack.c.l.b16 %v2975
        %v3167 = vunpack.c.h.b16 %v2975
        %v3168 = vunpack.c.l.b16 %v2976
        %v3169 = vunpack.c.h.b16 %v2976
        %v3170 = vunpack.c.l.b16 %v2977
        %v3171 = vunpack.c.h.b16 %v2977
        %v3172 = vunpack.c.l.b16 %v2978
        %v3173 = vunpack.c.h.b16 %v2978
        %v3174 = vunpack.c.l.b16 %v2979
        %v3175 = vunpack.c.h.b16 %v2979
        %v3176 = vunpack.c.l.b16 %v2980
        %v3177 = vunpack.c.h.b16 %v2980
        %v3178 = vunpack.c.l.b16 %v2981
        %v3179 = vunpack.c.h.b16 %v2981
        %v3180 = vunpack.c.l.b16 %v2982
        %v3181 = vunpack.c.h.b16 %v2982
        %v3182 = vunpack.c.l.b16 %v2983
        %v3183 = vunpack.c.h.b16 %v2983
        %v3184 = vunpack.c.l.b16 %v2984
        %v3185 = vunpack.c.h.b16 %v2984
        %v3186 = vunpack.c.l.b16 %v2985
        %v3187 = vunpack.c.h.b16 %v2985
        %v3188 = vunpack.c.l.b16 %v2986
        %v3189 = vunpack.c.h.b16 %v2986
        %v3190 = vunpack.c.l.b16 %v2987
        %v3191 = vunpack.c.h.b16 %v2987
        %v3192 = vunpack.c.l.b16 %v2988
        %v3193 = vunpack.c.h.b16 %v2988
        %v3194 = vunpack.c.l.b16 %v2989
        %v3195 = vunpack.c.h.b16 %v2989
        %v3196 = vunpack.c.l.b16 %v2990
        %v3197 = vunpack.c.h.b16 %v2990
        %v3198 = vunpack.c.l.b16 %v2991
        %v3199 = vunpack.c.h.b16 %v2991
        %v3200 = vunpack.c.l.b16 %v2992
        %v3201 = vunpack.c.h.b16 %v2992
        %v3202 = vunpack.c.l.b16 %v2993
        %v3203 = vunpack.c.h.b16 %v2993
        %v3204 = vunpack.c.l.b16 %v2994
        %v3205 = vunpack.c.h.b16 %v2994
        %v3206 = vunpack.c.l.b16 %v2995
        %v3207 = vunpack.c.h.b16 %v2995
        %v3208 = vunpack.c.l.b16 %v2996
        %v3209 = vunpack.c.h.b16 %v2996
        %v3210 = vunpack.c.l.b16 %v2997
        %v3211 = vunpack.c.h.b16 %v2997
        %v3212 = vunpack.c.l.b16 %v2998
        %v3213 = vunpack.c.h.b16 %v2998
        %v3214 = vunpack.c.l.b16 %v2999
        %v3215 = vunpack.c.h.b16 %v2999
        %v3216 = vunpack.c.l.b16 %v3000
        %v3217 = vunpack.c.h.b16 %v3000
        %v3218 = vunpack.c.l.b16 %v3001
        %v3219 = vunpack.c.h.b16 %v3001
        %v3220 = vunpack.c.l.b16 %v3002
        %v3221 = vunpack.c.h.b16 %v3002
        %v3222 = vunpack.c.l.b16 %v3003
        %v3223 = vunpack.c.h.b16 %v3003
        %v3224 = vunpack.c.l.b16 %v3004
        %v3225 = vunpack.c.h.b16 %v3004
        %v3226 = vunpack.c.l.b16 %v3005
        %v3227 = vunpack.c.h.b16 %v3005
        %v3228 = vunpack.c.l.b16 %v3006
        %v3229 = vunpack.c.h.b16 %v3006
        %v3230 = vunpack.c.l.b16 %v3007
        %v3231 = vunpack.c.h.b16 %v3007
        %v3232 = vpack.c.b16 %v3108, %v3104
        %v3233 = vpack.c.b16 %v3109, %v3105
        %v3234 = vpack.c.b16 %v3110, %v3106
        %v3235 = vpack.c.b16 %v3111, %v3107
        %v3236 = vpack.c.b16 %v3116, %v3112
        %v3237 = vpack.c.b16 %v3117, %v3113
        %v3238 = vpack.c.b16 %v3118, %v3114
        %v3239 = vpack.c.b16 %v3119, %v3115
        %v3240 = vpack.c.b16 %v3124, %v3120
        %v3241 = vpack.c.b16 %v3125, %v3121
        %v3242 = vpack.c.b16 %v3126, %v3122
        %v3243 = vpack.c.b16 %v3127, %v3123
        %v3244 = vpack.c.b16 %v3132, %v3128
        %v3245 = vpack.c.b16 %v3133, %v3129
        %v3246 = vpack.c.b16 %v3134, %v3130
        %v3247 = vpack.c.b16 %v3135, %v3131
        %v3248 = vpack.c.b16 %v3140, %v3136
        %v3249 = vpack.c.b16 %v3141, %v3137
        %v3250 = vpack.c.b16 %v3142, %v3138
        %v3251 = vpack.c.b16 %v3143, %v3139
        %v3252 = vpack.c.b16 %v3148, %v3144
        %v3253 = vpack.c.b16 %v3149, %v3145
        %v3254 = vpack.c.b16 %v3150, %v3146
        %v3255 = vpack.c.b16 %v3151, %v3147
        %v3256 = vpack.c.b16 %v3156, %v3152
        %v3257 = vpack.c.b16 %v3157, %v3153
        %v3258 = vpack.c.b16 %v3158, %v3154
        %v3259 = vpack.c.b16 %v3159, %v3155
        %v3260 = vpack.c.b16 %v3164, %v3160
        %v3261 = vpack.c.b16 %v3165, %v3161
        %v3262 = vpack.c.b16 %v3166, %v3162
        %v3263 = vpack.c.b16 %v3167, %v3163
        %v3264 = vpack.c.b16 %v3172, %v3168
        %v3265 = vpack.c.b16 %v3173, %v3169
        %v3266 = vpack.c.b16 %v3174, %v3170
        %v3267 = vpack.c.b16 %v3175, %v3171
        %v3268 = vpack.c.b16 %v3180, %v3176
        %v3269 = vpack.c.b16 %v3181, %v3177
        %v3270 = vpack.c.b16 %v3182, %v3178
        %v3271 = vpack.c.b16 %v3183, %v3179
        %v3272 = vpack.c.b16 %v3188, %v3184
        %v3273 = vpack.c.b16 %v3189, %v3185
        %v3274 = vpack.c.b16 %v3190, %v3186
        %v3275 = vpack.c.b16 %v3191, %v3187
        %v3276 = vpack.c.b16 %v3196, %v3192
        %v3277 = vpack.c.b16 %v3197, %v3193
        %v3278 = vpack.c.b16 %v3198, %v3194
        %v3279 = vpack.c.b16 %v3199, %v3195
        %v3280 = vpack.c.b16 %v3204, %v3200
        %v3281 = vpack.c.b16 %v3205, %v3201
        %v3282 = vpack.c.b16 %v3206, %v3202
        %v3283 = vpack.c.b16 %v3207, %v3203
        %v3284 = vpack.c.b16 %v3212, %v3208
        %v3285 = vpack.c.b16 %v3213, %v3209
        %v3286 = vpack.c.b16 %v3214, %v3210
        %v3287 = vpack.c.b16 %v3215, %v3211
        %v3288 = vpack.c.b16 %v3220, %v3216
        %v3289 = vpack.c.b16 %v3221, %v3217
        %v3290 = vpack.c.b16 %v3222, %v3218
        %v3291 = vpack.c.b16 %v3223, %v3219
        %v3292 = vpack.c.b16 %v3228, %v3224
        %v3293 = vpack.c.b16 %v3229, %v3225
        %v3294 = vpack.c.b16 %v3230, %v3226
        %v3295 = vpack.c.b16 %v3231, %v3227
        %3360 = vmatprep.subr.bf16.mxu0 %v3261
        %3361 = vmatpush1.bf16.msra.mxu0 %v3260
        %3362 = vmatprep.subr.bf16.mxu0 %v3257
        %3363 = vmatpush1.bf16.msra.mxu0 %v3256
        %3364 = vmatprep.subr.bf16.mxu0 %v3253
        %3365 = vmatpush1.bf16.msra.mxu0 %v3252
        %3366 = vmatprep.subr.bf16.mxu0 %v3249
        %3367 = vmatpush1.bf16.msra.mxu0 %v3248
        %3368 = vmatprep.subr.bf16.mxu0 %v3245
        %3369 = vmatpush1.bf16.msra.mxu0 %v3244
        %3370 = vmatprep.subr.bf16.mxu0 %v3241
        %3371 = vmatpush1.bf16.msra.mxu0 %v3240
        %3372 = vmatprep.subr.bf16.mxu0 %v3237
        %3373 = vmatpush1.bf16.msra.mxu0 %v3236
        %3374 = vmatprep.subr.bf16.mxu0 %v3233
        %3375 = vmatpush1.bf16.msra.mxu0 %v3232
        %3376 = vmatprep.subr.bf16.mxu0 %v3293
        %3377 = vmatpush2.bf16.msra.mxu0 %v3292
        %3378 = vmatprep.subr.bf16.mxu0 %v3289
        %3379 = vmatpush2.bf16.msra.mxu0 %v3288
        %3380 = vmatprep.subr.bf16.mxu0 %v3285
        %3381 = vmatpush2.bf16.msra.mxu0 %v3284
        %3382 = vmatprep.subr.bf16.mxu0 %v3281
        %3383 = vmatpush2.bf16.msra.mxu0 %v3280
        %3384 = vmatprep.subr.bf16.mxu0 %v3277
        %3385 = vmatpush2.bf16.msra.mxu0 %v3276
        %3386 = vmatprep.subr.bf16.mxu0 %v3273
        %3387 = vmatpush2.bf16.msra.mxu0 %v3272
        %3388 = vmatprep.subr.bf16.mxu0 %v3269
        %3389 = vmatpush2.bf16.msra.mxu0 %v3268
        %3390 = vmatprep.subr.bf16.mxu0 %v3265
        %3391 = vmatpush2.bf16.msra.mxu0 %v3264
        %3392 = vmatprep.mubr.bf16.mxu0 %v3037
        %3393 = vmatmul.mubr.bf16.gmra.mxu0 %v3036
        %v3394 = vpop.f32.mrf.mxu0
        %v3395 = vadd.f32 %v3013, %v3394
        %v3396 = vpop.f32.mrf.mxu0
        %v3397 = vadd.f32 %v3017, %v3396
        %v3398 = vpop.f32.mrf.mxu0
        %v3399 = vadd.f32 %v3013, %v3398
        %v3400 = vpop.f32.mrf.mxu0
        %v3401 = vadd.f32 %v3017, %v3400
        %3402 = vdwg.mxu0
        %3403 = vmatprep.subr.bf16.mxu0 %v3263
        %3404 = vmatpush1.bf16.msra.mxu0 %v3262
        %3405 = vmatprep.subr.bf16.mxu0 %v3259
        %3406 = vmatpush1.bf16.msra.mxu0 %v3258
        %3407 = vmatprep.subr.bf16.mxu0 %v3255
        %3408 = vmatpush1.bf16.msra.mxu0 %v3254
        %3409 = vmatprep.subr.bf16.mxu0 %v3251
        %3410 = vmatpush1.bf16.msra.mxu0 %v3250
        %3411 = vmatprep.subr.bf16.mxu0 %v3247
        %3412 = vmatpush1.bf16.msra.mxu0 %v3246
        %3413 = vmatprep.subr.bf16.mxu0 %v3243
        %3414 = vmatpush1.bf16.msra.mxu0 %v3242
        %3415 = vmatprep.subr.bf16.mxu0 %v3239
        %3416 = vmatpush1.bf16.msra.mxu0 %v3238
        %3417 = vmatprep.subr.bf16.mxu0 %v3235
        %3418 = vmatpush1.bf16.msra.mxu0 %v3234
        %3419 = vmatprep.subr.bf16.mxu0 %v3295
        %3420 = vmatpush2.bf16.msra.mxu0 %v3294
        %3421 = vmatprep.subr.bf16.mxu0 %v3291
        %3422 = vmatpush2.bf16.msra.mxu0 %v3290
        %3423 = vmatprep.subr.bf16.mxu0 %v3287
        %3424 = vmatpush2.bf16.msra.mxu0 %v3286
        %3425 = vmatprep.subr.bf16.mxu0 %v3283
        %3426 = vmatpush2.bf16.msra.mxu0 %v3282
        %3427 = vmatprep.subr.bf16.mxu0 %v3279
        %3428 = vmatpush2.bf16.msra.mxu0 %v3278
        %3429 = vmatprep.subr.bf16.mxu0 %v3275
        %3430 = vmatpush2.bf16.msra.mxu0 %v3274
        %3431 = vmatprep.subr.bf16.mxu0 %v3271
        %3432 = vmatpush2.bf16.msra.mxu0 %v3270
        %3433 = vmatprep.subr.bf16.mxu0 %v3267
        %3434 = vmatpush2.bf16.msra.mxu0 %v3266
        %3435 = vmatprep.mubr.bf16.mxu0 %v3037
        %3436 = vmatmul.mubr.bf16.gmra.mxu0 %v3036
        %v3437 = vpop.f32.mrf.mxu0
        %v3438 = vadd.f32 %v3021, %v3437
        %v3439 = vpop.f32.mrf.mxu0
        %v3440 = vadd.f32 %v3025, %v3439
        %v3441 = vpop.f32.mrf.mxu0
        %v3442 = vadd.f32 %v3021, %v3441
        %v3443 = vpop.f32.mrf.mxu0
        %v3444 = vadd.f32 %v3025, %v3443
        %3445 = vdwg.mxu0
        %v3446 = vxor.u32 %v3395, 2147483648
        %v3447 = vxor.u32 %v3399, 2147483648
        %v3448 = vmul.f32 %v3446, 1.442695
        %v3449 = vpow.pop %v3448
        %v3450 = vmul.f32 %v3447, 1.442695
        %v3451 = vpow.pop %v3450
        %v3452 = vadd.f32 %v3449, 1.0
        %v3453 = vadd.f32 %v3451, 1.0
        %v3454 = vrcp.pop %v3452
        %v3455 = vmul.f32 1.0, %v3454
        %v3456 = vrcp.pop %v3453
        %v3457 = vmul.f32 1.0, %v3456
        %v3458 = vxor.u32 %v3397, 2147483648
        %v3459 = vxor.u32 %v3401, 2147483648
        %v3460 = vmul.f32 %v3458, 1.442695
        %v3461 = vpow.pop %v3460
        %v3462 = vmul.f32 %v3459, 1.442695
        %v3463 = vpow.pop %v3462
        %v3464 = vadd.f32 %v3461, 1.0
        %v3465 = vadd.f32 %v3463, 1.0
        %v3466 = vrcp.pop %v3464
        %v3467 = vmul.f32 1.0, %v3466
        %v3468 = vrcp.pop %v3465
        %v3469 = vmul.f32 1.0, %v3468
        %v3470 = vtanh.pop %v3438
        %v3471 = vtanh.pop %v3442
        %v3472 = vxor.u32 %v3440, 2147483648
        %v3473 = vxor.u32 %v3444, 2147483648
        %v3474 = vmul.f32 %v3472, 1.442695
        %v3475 = vpow.pop %v3474
        %v3476 = vmul.f32 %v3473, 1.442695
        %v3477 = vpow.pop %v3476
        %v3478 = vadd.f32 %v3475, 1.0
        %v3479 = vadd.f32 %v3477, 1.0
        %v3480 = vrcp.pop %v3478
        %v3481 = vmul.f32 1.0, %v3480
        %v3482 = vrcp.pop %v3479
        %v3483 = vmul.f32 1.0, %v3482
        %v3484 = vmul.f32 %v3467, %v2935
        %v3485 = vmul.f32 %v3469, %v2936
        %v3486 = vmul.f32 %v3455, %v3470
        %v3487 = vmul.f32 %v3457, %v3471
        %v3488 = vadd.f32 %v3484, %v3486
        %v3489 = vadd.f32 %v3485, %v3487
        %v3490 = vtanh.pop %v3488
        %v3491 = vtanh.pop %v3489
        %v3492 = vmul.f32 %v3481, %v3490
        %v3493 = vmul.f32 %v3483, %v3491
        %s3494 = scalar_lea.vmem %s447, 64 [#allocation5]
        %v3495 = vld [vmem:[%s3494] sm:$0xff]
        %v3496 = vld [vmem:[%s3494 + $0x8] sm:$0xff]
        %vm3497 = vcmp.ne.f32.partialorder %v3495, 0.0
        %vm3498 = vcmp.ne.f32.partialorder %v3496, 0.0
        %v3499 = vsel %vm3497, 1, 0
        %v3500 = vsel %vm3498, 1, 0
        %3501 = vset.pattern.permute.xlu0 0
        %3502 = vperm.xlu0 %3501, %v3499
        %v3503 = vpop.permute.xlu0 %3502
        %3504 = vset.pattern.permute.xlu0 0
        %3505 = vperm.xlu0 %3504, %v3500
        %v3506 = vpop.permute.xlu0 %3505
        %vm3507 = vcmp.eq.s32.totalorder %v3503, 1
        %vm3508 = vcmp.eq.s32.totalorder %v3506, 1
        %v3509 = vsel %vm3507, %v2933, %v3492
        %v3510 = vsel %vm3508, %v2934, %v3493
        %v3511 = vsel %vm3507, %v2935, %v3488
        %v3512 = vsel %vm3508, %v2936, %v3489
        %3513 = vst [vmem:[#allocation2] sm:$0xff] %v3509
        %3514 = vst [vmem:[#allocation2 + $0x8] sm:$0xff] %v3510
        %3515 = vst [vmem:[#allocation3] sm:$0xff] %v3511
        %3516 = vst [vmem:[#allocation3 + $0x8] sm:$0xff] %v3512
        %v3517 = vpack.c.bf16 %v3510, %v3509
        %v3519 = vunpack.c.l.b16 %v3517
        %v3520 = vunpack.c.h.b16 %v3517
        %v3521 = vpack.c.b16 %v3519, %v3519
        %v3522 = vpack.c.b16 %v3520, %v3520
        %3525 = vst [vmem:[#allocation4 + $0x4] sm:$0xf] %v3521
        %3526 = vst [vmem:[#allocation4 + $0xc] sm:$0xf] %v3522
        %s3527 = scalar_lea.vmem %s497, 64 [#allocation9]
        %3528 = vst [vmem:[%s3527] sm:$0xff] %v3509
        %3529 = vst [vmem:[%s3527 + $0x8] sm:$0xff] %v3510
        %v3530 = vld [vmem:[#allocation2] sm:$0xff]
        %v3531 = vld [vmem:[#allocation2 + $0x8] sm:$0xff]
        %v3532 = vld [vmem:[#allocation3] sm:$0xff]
        %v3533 = vld [vmem:[#allocation3 + $0x8] sm:$0xff]
        %s3534 = scalar_lea.vmem %s455, 40 [#allocation6]
        %v3535 = vld [vmem:[%s3534] sm:$0xf]
        %v3536 = vld [vmem:[%s3534 + $0x4] sm:$0xf]
        %3537 = vst [vmem:[#allocation4] sm:$0xf] %v3535
        %3538 = vst [vmem:[#allocation4 + $0x8] sm:$0xf] %v3536
        %v3539 = vld [vmem:[#allocation4] sm:$0xff]
        %v3540 = vld [vmem:[#allocation4 + $0x8] sm:$0xff]
        %v3541 = vld [vmem:[%s4] sm:$0xff]
        %v3542 = vld [vmem:[%s4 + $0x8] sm:$0xff]
        %v3543 = vld [vmem:[%s4 + $0x10] sm:$0xff]
        %v3544 = vld [vmem:[%s4 + $0x18] sm:$0xff]
        %v3545 = vld [vmem:[%s4 + $0x20] sm:$0xff]
        %v3546 = vld [vmem:[%s4 + $0x28] sm:$0xff]
        %v3547 = vld [vmem:[%s4 + $0x30] sm:$0xff]
        %v3548 = vld [vmem:[%s4 + $0x38] sm:$0xff]
        %v3549 = vld [vmem:[%s4 + $0x40] sm:$0xff]
        %v3550 = vld [vmem:[%s4 + $0x48] sm:$0xff]
        %v3551 = vld [vmem:[%s4 + $0x50] sm:$0xff]
        %v3552 = vld [vmem:[%s4 + $0x58] sm:$0xff]
        %v3553 = vld [vmem:[%s4 + $0x60] sm:$0xff]
        %v3554 = vld [vmem:[%s4 + $0x68] sm:$0xff]
        %v3555 = vld [vmem:[%s4 + $0x70] sm:$0xff]
        %v3556 = vld [vmem:[%s4 + $0x78] sm:$0xff]
        %v3557 = vld [vmem:[%s4 + $0x80] sm:$0xff]
        %v3558 = vld [vmem:[%s4 + $0x88] sm:$0xff]
        %v3559 = vld [vmem:[%s4 + $0x90] sm:$0xff]
        %v3560 = vld [vmem:[%s4 + $0x98] sm:$0xff]
        %v3561 = vld [vmem:[%s4 + $0xa0] sm:$0xff]
        %v3562 = vld [vmem:[%s4 + $0xa8] sm:$0xff]
        %v3563 = vld [vmem:[%s4 + $0xb0] sm:$0xff]
        %v3564 = vld [vmem:[%s4 + $0xb8] sm:$0xff]
        %v3565 = vld [vmem:[%s4 + $0xc0] sm:$0xff]
        %v3566 = vld [vmem:[%s4 + $0xc8] sm:$0xff]
        %v3567 = vld [vmem:[%s4 + $0xd0] sm:$0xff]
        %v3568 = vld [vmem:[%s4 + $0xd8] sm:$0xff]
        %v3569 = vld [vmem:[%s4 + $0xe0] sm:$0xff]
        %v3570 = vld [vmem:[%s4 + $0xe8] sm:$0xff]
        %v3571 = vld [vmem:[%s4 + $0xf0] sm:$0xff]
        %v3572 = vld [vmem:[%s4 + $0xf8] sm:$0xff]
        %v3573 = vld [vmem:[%s4 + $0x100] sm:$0xff]
        %v3574 = vld [vmem:[%s4 + $0x108] sm:$0xff]
        %v3575 = vld [vmem:[%s4 + $0x110] sm:$0xff]
        %v3576 = vld [vmem:[%s4 + $0x118] sm:$0xff]
        %v3577 = vld [vmem:[%s4 + $0x120] sm:$0xff]
        %v3578 = vld [vmem:[%s4 + $0x128] sm:$0xff]
        %v3579 = vld [vmem:[%s4 + $0x130] sm:$0xff]
        %v3580 = vld [vmem:[%s4 + $0x138] sm:$0xff]
        %v3581 = vld [vmem:[%s4 + $0x140] sm:$0xff]
        %v3582 = vld [vmem:[%s4 + $0x148] sm:$0xff]
        %v3583 = vld [vmem:[%s4 + $0x150] sm:$0xff]
        %v3584 = vld [vmem:[%s4 + $0x158] sm:$0xff]
        %v3585 = vld [vmem:[%s4 + $0x160] sm:$0xff]
        %v3586 = vld [vmem:[%s4 + $0x168] sm:$0xff]
        %v3587 = vld [vmem:[%s4 + $0x170] sm:$0xff]
        %v3588 = vld [vmem:[%s4 + $0x178] sm:$0xff]
        %v3589 = vld [vmem:[%s4 + $0x180] sm:$0xff]
        %v3590 = vld [vmem:[%s4 + $0x188] sm:$0xff]
        %v3591 = vld [vmem:[%s4 + $0x190] sm:$0xff]
        %v3592 = vld [vmem:[%s4 + $0x198] sm:$0xff]
        %v3593 = vld [vmem:[%s4 + $0x1a0] sm:$0xff]
        %v3594 = vld [vmem:[%s4 + $0x1a8] sm:$0xff]
        %v3595 = vld [vmem:[%s4 + $0x1b0] sm:$0xff]
        %v3596 = vld [vmem:[%s4 + $0x1b8] sm:$0xff]
        %v3597 = vld [vmem:[%s4 + $0x1c0] sm:$0xff]
        %v3598 = vld [vmem:[%s4 + $0x1c8] sm:$0xff]
        %v3599 = vld [vmem:[%s4 + $0x1d0] sm:$0xff]
        %v3600 = vld [vmem:[%s4 + $0x1d8] sm:$0xff]
        %v3601 = vld [vmem:[%s4 + $0x1e0] sm:$0xff]
        %v3602 = vld [vmem:[%s4 + $0x1e8] sm:$0xff]
        %v3603 = vld [vmem:[%s4 + $0x1f0] sm:$0xff]
        %v3604 = vld [vmem:[%s4 + $0x1f8] sm:$0xff]
        %v3605 = vld [vmem:[%s5] sm:$0xf]
        %v3607 = vlaneseq
        %v3608 = vshrl.u32 %v3607, 7
        %v3609 = vsub.s32 0, %v3608
        %v3610 = vrot.slane %v3605, %v3609
        %v3611 = vlaneseq
        %v3612 = vshrl.u32 %v3611, 7
        %v3613 = vsub.s32 1, %v3612
        %v3614 = vrot.slane %v3605, %v3613
        %v3615 = vlaneseq
        %v3616 = vshrl.u32 %v3615, 7
        %v3617 = vsub.s32 2, %v3616
        %v3618 = vrot.slane %v3605, %v3617
        %v3619 = vlaneseq
        %v3620 = vshrl.u32 %v3619, 7
        %v3621 = vsub.s32 3, %v3620
        %v3622 = vrot.slane %v3605, %v3621
        %v3629 = vunpack.c.l.b16 %v3539
        %v3630 = vunpack.c.h.b16 %v3539
        %v3631 = vunpack.c.l.b16 %v3540
        %v3632 = vunpack.c.h.b16 %v3540
        %v3633 = vpack.c.b16 %v3631, %v3629
        %v3634 = vpack.c.b16 %v3632, %v3630
        %v3701 = vunpack.c.l.b16 %v3541
        %v3702 = vunpack.c.h.b16 %v3541
        %v3703 = vunpack.c.l.b16 %v3542
        %v3704 = vunpack.c.h.b16 %v3542
        %v3705 = vunpack.c.l.b16 %v3543
        %v3706 = vunpack.c.h.b16 %v3543
        %v3707 = vunpack.c.l.b16 %v3544
        %v3708 = vunpack.c.h.b16 %v3544
        %v3709 = vunpack.c.l.b16 %v3545
        %v3710 = vunpack.c.h.b16 %v3545
        %v3711 = vunpack.c.l.b16 %v3546
        %v3712 = vunpack.c.h.b16 %v3546
        %v3713 = vunpack.c.l.b16 %v3547
        %v3714 = vunpack.c.h.b16 %v3547
        %v3715 = vunpack.c.l.b16 %v3548
        %v3716 = vunpack.c.h.b16 %v3548
        %v3717 = vunpack.c.l.b16 %v3549
        %v3718 = vunpack.c.h.b16 %v3549
        %v3719 = vunpack.c.l.b16 %v3550
        %v3720 = vunpack.c.h.b16 %v3550
        %v3721 = vunpack.c.l.b16 %v3551
        %v3722 = vunpack.c.h.b16 %v3551
        %v3723 = vunpack.c.l.b16 %v3552
        %v3724 = vunpack.c.h.b16 %v3552
        %v3725 = vunpack.c.l.b16 %v3553
        %v3726 = vunpack.c.h.b16 %v3553
        %v3727 = vunpack.c.l.b16 %v3554
        %v3728 = vunpack.c.h.b16 %v3554
        %v3729 = vunpack.c.l.b16 %v3555
        %v3730 = vunpack.c.h.b16 %v3555
        %v3731 = vunpack.c.l.b16 %v3556
        %v3732 = vunpack.c.h.b16 %v3556
        %v3733 = vunpack.c.l.b16 %v3557
        %v3734 = vunpack.c.h.b16 %v3557
        %v3735 = vunpack.c.l.b16 %v3558
        %v3736 = vunpack.c.h.b16 %v3558
        %v3737 = vunpack.c.l.b16 %v3559
        %v3738 = vunpack.c.h.b16 %v3559
        %v3739 = vunpack.c.l.b16 %v3560
        %v3740 = vunpack.c.h.b16 %v3560
        %v3741 = vunpack.c.l.b16 %v3561
        %v3742 = vunpack.c.h.b16 %v3561
        %v3743 = vunpack.c.l.b16 %v3562
        %v3744 = vunpack.c.h.b16 %v3562
        %v3745 = vunpack.c.l.b16 %v3563
        %v3746 = vunpack.c.h.b16 %v3563
        %v3747 = vunpack.c.l.b16 %v3564
        %v3748 = vunpack.c.h.b16 %v3564
        %v3749 = vunpack.c.l.b16 %v3565
        %v3750 = vunpack.c.h.b16 %v3565
        %v3751 = vunpack.c.l.b16 %v3566
        %v3752 = vunpack.c.h.b16 %v3566
        %v3753 = vunpack.c.l.b16 %v3567
        %v3754 = vunpack.c.h.b16 %v3567
        %v3755 = vunpack.c.l.b16 %v3568
        %v3756 = vunpack.c.h.b16 %v3568
        %v3757 = vunpack.c.l.b16 %v3569
        %v3758 = vunpack.c.h.b16 %v3569
        %v3759 = vunpack.c.l.b16 %v3570
        %v3760 = vunpack.c.h.b16 %v3570
        %v3761 = vunpack.c.l.b16 %v3571
        %v3762 = vunpack.c.h.b16 %v3571
        %v3763 = vunpack.c.l.b16 %v3572
        %v3764 = vunpack.c.h.b16 %v3572
        %v3765 = vunpack.c.l.b16 %v3573
        %v3766 = vunpack.c.h.b16 %v3573
        %v3767 = vunpack.c.l.b16 %v3574
        %v3768 = vunpack.c.h.b16 %v3574
        %v3769 = vunpack.c.l.b16 %v3575
        %v3770 = vunpack.c.h.b16 %v3575
        %v3771 = vunpack.c.l.b16 %v3576
        %v3772 = vunpack.c.h.b16 %v3576
        %v3773 = vunpack.c.l.b16 %v3577
        %v3774 = vunpack.c.h.b16 %v3577
        %v3775 = vunpack.c.l.b16 %v3578
        %v3776 = vunpack.c.h.b16 %v3578
        %v3777 = vunpack.c.l.b16 %v3579
        %v3778 = vunpack.c.h.b16 %v3579
        %v3779 = vunpack.c.l.b16 %v3580
        %v3780 = vunpack.c.h.b16 %v3580
        %v3781 = vunpack.c.l.b16 %v3581
        %v3782 = vunpack.c.h.b16 %v3581
        %v3783 = vunpack.c.l.b16 %v3582
        %v3784 = vunpack.c.h.b16 %v3582
        %v3785 = vunpack.c.l.b16 %v3583
        %v3786 = vunpack.c.h.b16 %v3583
        %v3787 = vunpack.c.l.b16 %v3584
        %v3788 = vunpack.c.h.b16 %v3584
        %v3789 = vunpack.c.l.b16 %v3585
        %v3790 = vunpack.c.h.b16 %v3585
        %v3791 = vunpack.c.l.b16 %v3586
        %v3792 = vunpack.c.h.b16 %v3586
        %v3793 = vunpack.c.l.b16 %v3587
        %v3794 = vunpack.c.h.b16 %v3587
        %v3795 = vunpack.c.l.b16 %v3588
        %v3796 = vunpack.c.h.b16 %v3588
        %v3797 = vunpack.c.l.b16 %v3589
        %v3798 = vunpack.c.h.b16 %v3589
        %v3799 = vunpack.c.l.b16 %v3590
        %v3800 = vunpack.c.h.b16 %v3590
        %v3801 = vunpack.c.l.b16 %v3591
        %v3802 = vunpack.c.h.b16 %v3591
        %v3803 = vunpack.c.l.b16 %v3592
        %v3804 = vunpack.c.h.b16 %v3592
        %v3805 = vunpack.c.l.b16 %v3593
        %v3806 = vunpack.c.h.b16 %v3593
        %v3807 = vunpack.c.l.b16 %v3594
        %v3808 = vunpack.c.h.b16 %v3594
        %v3809 = vunpack.c.l.b16 %v3595
        %v3810 = vunpack.c.h.b16 %v3595
        %v3811 = vunpack.c.l.b16 %v3596
        %v3812 = vunpack.c.h.b16 %v3596
        %v3813 = vunpack.c.l.b16 %v3597
        %v3814 = vunpack.c.h.b16 %v3597
        %v3815 = vunpack.c.l.b16 %v3598
        %v3816 = vunpack.c.h.b16 %v3598
        %v3817 = vunpack.c.l.b16 %v3599
        %v3818 = vunpack.c.h.b16 %v3599
        %v3819 = vunpack.c.l.b16 %v3600
        %v3820 = vunpack.c.h.b16 %v3600
        %v3821 = vunpack.c.l.b16 %v3601
        %v3822 = vunpack.c.h.b16 %v3601
        %v3823 = vunpack.c.l.b16 %v3602
        %v3824 = vunpack.c.h.b16 %v3602
        %v3825 = vunpack.c.l.b16 %v3603
        %v3826 = vunpack.c.h.b16 %v3603
        %v3827 = vunpack.c.l.b16 %v3604
        %v3828 = vunpack.c.h.b16 %v3604
        %v3829 = vpack.c.b16 %v3705, %v3701
        %v3830 = vpack.c.b16 %v3706, %v3702
        %v3831 = vpack.c.b16 %v3707, %v3703
        %v3832 = vpack.c.b16 %v3708, %v3704
        %v3833 = vpack.c.b16 %v3713, %v3709
        %v3834 = vpack.c.b16 %v3714, %v3710
        %v3835 = vpack.c.b16 %v3715, %v3711
        %v3836 = vpack.c.b16 %v3716, %v3712
        %v3837 = vpack.c.b16 %v3721, %v3717
        %v3838 = vpack.c.b16 %v3722, %v3718
        %v3839 = vpack.c.b16 %v3723, %v3719
        %v3840 = vpack.c.b16 %v3724, %v3720
        %v3841 = vpack.c.b16 %v3729, %v3725
        %v3842 = vpack.c.b16 %v3730, %v3726
        %v3843 = vpack.c.b16 %v3731, %v3727
        %v3844 = vpack.c.b16 %v3732, %v3728
        %v3845 = vpack.c.b16 %v3737, %v3733
        %v3846 = vpack.c.b16 %v3738, %v3734
        %v3847 = vpack.c.b16 %v3739, %v3735
        %v3848 = vpack.c.b16 %v3740, %v3736
        %v3849 = vpack.c.b16 %v3745, %v3741
        %v3850 = vpack.c.b16 %v3746, %v3742
        %v3851 = vpack.c.b16 %v3747, %v3743
        %v3852 = vpack.c.b16 %v3748, %v3744
        %v3853 = vpack.c.b16 %v3753, %v3749
        %v3854 = vpack.c.b16 %v3754, %v3750
        %v3855 = vpack.c.b16 %v3755, %v3751
        %v3856 = vpack.c.b16 %v3756, %v3752
        %v3857 = vpack.c.b16 %v3761, %v3757
        %v3858 = vpack.c.b16 %v3762, %v3758
        %v3859 = vpack.c.b16 %v3763, %v3759
        %v3860 = vpack.c.b16 %v3764, %v3760
        %v3861 = vpack.c.b16 %v3769, %v3765
        %v3862 = vpack.c.b16 %v3770, %v3766
        %v3863 = vpack.c.b16 %v3771, %v3767
        %v3864 = vpack.c.b16 %v3772, %v3768
        %v3865 = vpack.c.b16 %v3777, %v3773
        %v3866 = vpack.c.b16 %v3778, %v3774
        %v3867 = vpack.c.b16 %v3779, %v3775
        %v3868 = vpack.c.b16 %v3780, %v3776
        %v3869 = vpack.c.b16 %v3785, %v3781
        %v3870 = vpack.c.b16 %v3786, %v3782
        %v3871 = vpack.c.b16 %v3787, %v3783
        %v3872 = vpack.c.b16 %v3788, %v3784
        %v3873 = vpack.c.b16 %v3793, %v3789
        %v3874 = vpack.c.b16 %v3794, %v3790
        %v3875 = vpack.c.b16 %v3795, %v3791
        %v3876 = vpack.c.b16 %v3796, %v3792
        %v3877 = vpack.c.b16 %v3801, %v3797
        %v3878 = vpack.c.b16 %v3802, %v3798
        %v3879 = vpack.c.b16 %v3803, %v3799
        %v3880 = vpack.c.b16 %v3804, %v3800
        %v3881 = vpack.c.b16 %v3809, %v3805
        %v3882 = vpack.c.b16 %v3810, %v3806
        %v3883 = vpack.c.b16 %v3811, %v3807
        %v3884 = vpack.c.b16 %v3812, %v3808
        %v3885 = vpack.c.b16 %v3817, %v3813
        %v3886 = vpack.c.b16 %v3818, %v3814
        %v3887 = vpack.c.b16 %v3819, %v3815
        %v3888 = vpack.c.b16 %v3820, %v3816
        %v3889 = vpack.c.b16 %v3825, %v3821
        %v3890 = vpack.c.b16 %v3826, %v3822
        %v3891 = vpack.c.b16 %v3827, %v3823
        %v3892 = vpack.c.b16 %v3828, %v3824
        %3957 = vmatprep.subr.bf16.mxu0 %v3858
        %3958 = vmatpush1.bf16.msra.mxu0 %v3857
        %3959 = vmatprep.subr.bf16.mxu0 %v3854
        %3960 = vmatpush1.bf16.msra.mxu0 %v3853
        %3961 = vmatprep.subr.bf16.mxu0 %v3850
        %3962 = vmatpush1.bf16.msra.mxu0 %v3849
        %3963 = vmatprep.subr.bf16.mxu0 %v3846
        %3964 = vmatpush1.bf16.msra.mxu0 %v3845
        %3965 = vmatprep.subr.bf16.mxu0 %v3842
        %3966 = vmatpush1.bf16.msra.mxu0 %v3841
        %3967 = vmatprep.subr.bf16.mxu0 %v3838
        %3968 = vmatpush1.bf16.msra.mxu0 %v3837
        %3969 = vmatprep.subr.bf16.mxu0 %v3834
        %3970 = vmatpush1.bf16.msra.mxu0 %v3833
        %3971 = vmatprep.subr.bf16.mxu0 %v3830
        %3972 = vmatpush1.bf16.msra.mxu0 %v3829
        %3973 = vmatprep.subr.bf16.mxu0 %v3890
        %3974 = vmatpush2.bf16.msra.mxu0 %v3889
        %3975 = vmatprep.subr.bf16.mxu0 %v3886
        %3976 = vmatpush2.bf16.msra.mxu0 %v3885
        %3977 = vmatprep.subr.bf16.mxu0 %v3882
        %3978 = vmatpush2.bf16.msra.mxu0 %v3881
        %3979 = vmatprep.subr.bf16.mxu0 %v3878
        %3980 = vmatpush2.bf16.msra.mxu0 %v3877
        %3981 = vmatprep.subr.bf16.mxu0 %v3874
        %3982 = vmatpush2.bf16.msra.mxu0 %v3873
        %3983 = vmatprep.subr.bf16.mxu0 %v3870
        %3984 = vmatpush2.bf16.msra.mxu0 %v3869
        %3985 = vmatprep.subr.bf16.mxu0 %v3866
        %3986 = vmatpush2.bf16.msra.mxu0 %v3865
        %3987 = vmatprep.subr.bf16.mxu0 %v3862
        %3988 = vmatpush2.bf16.msra.mxu0 %v3861
        %3989 = vmatprep.mubr.bf16.mxu0 %v3634
        %3990 = vmatmul.mubr.bf16.gmra.mxu0 %v3633
        %v3991 = vpop.f32.mrf.mxu0
        %v3992 = vadd.f32 %v3610, %v3991
        %v3993 = vpop.f32.mrf.mxu0
        %v3994 = vadd.f32 %v3614, %v3993
        %v3995 = vpop.f32.mrf.mxu0
        %v3996 = vadd.f32 %v3610, %v3995
        %v3997 = vpop.f32.mrf.mxu0
        %v3998 = vadd.f32 %v3614, %v3997
        %3999 = vdwg.mxu0
        %4000 = vmatprep.subr.bf16.mxu0 %v3860
        %4001 = vmatpush1.bf16.msra.mxu0 %v3859
        %4002 = vmatprep.subr.bf16.mxu0 %v3856
        %4003 = vmatpush1.bf16.msra.mxu0 %v3855
        %4004 = vmatprep.subr.bf16.mxu0 %v3852
        %4005 = vmatpush1.bf16.msra.mxu0 %v3851
        %4006 = vmatprep.subr.bf16.mxu0 %v3848
        %4007 = vmatpush1.bf16.msra.mxu0 %v3847
        %4008 = vmatprep.subr.bf16.mxu0 %v3844
        %4009 = vmatpush1.bf16.msra.mxu0 %v3843
        %4010 = vmatprep.subr.bf16.mxu0 %v3840
        %4011 = vmatpush1.bf16.msra.mxu0 %v3839
        %4012 = vmatprep.subr.bf16.mxu0 %v3836
        %4013 = vmatpush1.bf16.msra.mxu0 %v3835
        %4014 = vmatprep.subr.bf16.mxu0 %v3832
        %4015 = vmatpush1.bf16.msra.mxu0 %v3831
        %4016 = vmatprep.subr.bf16.mxu0 %v3892
        %4017 = vmatpush2.bf16.msra.mxu0 %v3891
        %4018 = vmatprep.subr.bf16.mxu0 %v3888
        %4019 = vmatpush2.bf16.msra.mxu0 %v3887
        %4020 = vmatprep.subr.bf16.mxu0 %v3884
        %4021 = vmatpush2.bf16.msra.mxu0 %v3883
        %4022 = vmatprep.subr.bf16.mxu0 %v3880
        %4023 = vmatpush2.bf16.msra.mxu0 %v3879
        %4024 = vmatprep.subr.bf16.mxu0 %v3876
        %4025 = vmatpush2.bf16.msra.mxu0 %v3875
        %4026 = vmatprep.subr.bf16.mxu0 %v3872
        %4027 = vmatpush2.bf16.msra.mxu0 %v3871
        %4028 = vmatprep.subr.bf16.mxu0 %v3868
        %4029 = vmatpush2.bf16.msra.mxu0 %v3867
        %4030 = vmatprep.subr.bf16.mxu0 %v3864
        %4031 = vmatpush2.bf16.msra.mxu0 %v3863
        %4032 = vmatprep.mubr.bf16.mxu0 %v3634
        %4033 = vmatmul.mubr.bf16.gmra.mxu0 %v3633
        %v4034 = vpop.f32.mrf.mxu0
        %v4035 = vadd.f32 %v3618, %v4034
        %v4036 = vpop.f32.mrf.mxu0
        %v4037 = vadd.f32 %v3622, %v4036
        %v4038 = vpop.f32.mrf.mxu0
        %v4039 = vadd.f32 %v3618, %v4038
        %v4040 = vpop.f32.mrf.mxu0
        %v4041 = vadd.f32 %v3622, %v4040
        %4042 = vdwg.mxu0
        %v4043 = vxor.u32 %v3992, 2147483648
        %v4044 = vxor.u32 %v3996, 2147483648
        %v4045 = vmul.f32 %v4043, 1.442695
        %v4046 = vpow.pop %v4045
        %v4047 = vmul.f32 %v4044, 1.442695
        %v4048 = vpow.pop %v4047
        %v4049 = vadd.f32 %v4046, 1.0
        %v4050 = vadd.f32 %v4048, 1.0
        %v4051 = vrcp.pop %v4049
        %v4052 = vmul.f32 1.0, %v4051
        %v4053 = vrcp.pop %v4050
        %v4054 = vmul.f32 1.0, %v4053
        %v4055 = vxor.u32 %v3994, 2147483648
        %v4056 = vxor.u32 %v3998, 2147483648
        %v4057 = vmul.f32 %v4055, 1.442695
        %v4058 = vpow.pop %v4057
        %v4059 = vmul.f32 %v4056, 1.442695
        %v4060 = vpow.pop %v4059
        %v4061 = vadd.f32 %v4058, 1.0
        %v4062 = vadd.f32 %v4060, 1.0
        %v4063 = vrcp.pop %v4061
        %v4064 = vmul.f32 1.0, %v4063
        %v4065 = vrcp.pop %v4062
        %v4066 = vmul.f32 1.0, %v4065
        %v4067 = vtanh.pop %v4035
        %v4068 = vtanh.pop %v4039
        %v4069 = vxor.u32 %v4037, 2147483648
        %v4070 = vxor.u32 %v4041, 2147483648
        %v4071 = vmul.f32 %v4069, 1.442695
        %v4072 = vpow.pop %v4071
        %v4073 = vmul.f32 %v4070, 1.442695
        %v4074 = vpow.pop %v4073
        %v4075 = vadd.f32 %v4072, 1.0
        %v4076 = vadd.f32 %v4074, 1.0
        %v4077 = vrcp.pop %v4075
        %v4078 = vmul.f32 1.0, %v4077
        %v4079 = vrcp.pop %v4076
        %v4080 = vmul.f32 1.0, %v4079
        %v4081 = vmul.f32 %v4064, %v3532
        %v4082 = vmul.f32 %v4066, %v3533
        %v4083 = vmul.f32 %v4052, %v4067
        %v4084 = vmul.f32 %v4054, %v4068
        %v4085 = vadd.f32 %v4081, %v4083
        %v4086 = vadd.f32 %v4082, %v4084
        %v4087 = vtanh.pop %v4085
        %v4088 = vtanh.pop %v4086
        %v4089 = vmul.f32 %v4078, %v4087
        %v4090 = vmul.f32 %v4080, %v4088
        %s4091 = scalar_lea.vmem %s447, 80 [#allocation5]
        %v4092 = vld [vmem:[%s4091] sm:$0xff]
        %v4093 = vld [vmem:[%s4091 + $0x8] sm:$0xff]
        %vm4094 = vcmp.ne.f32.partialorder %v4092, 0.0
        %vm4095 = vcmp.ne.f32.partialorder %v4093, 0.0
        %v4096 = vsel %vm4094, 1, 0
        %v4097 = vsel %vm4095, 1, 0
        %4098 = vset.pattern.permute.xlu0 0
        %4099 = vperm.xlu0 %4098, %v4096
        %v4100 = vpop.permute.xlu0 %4099
        %4101 = vset.pattern.permute.xlu0 0
        %4102 = vperm.xlu0 %4101, %v4097
        %v4103 = vpop.permute.xlu0 %4102
        %vm4104 = vcmp.eq.s32.totalorder %v4100, 1
        %vm4105 = vcmp.eq.s32.totalorder %v4103, 1
        %v4106 = vsel %vm4104, %v3530, %v4089
        %v4107 = vsel %vm4105, %v3531, %v4090
        %v4108 = vsel %vm4104, %v3532, %v4085
        %v4109 = vsel %vm4105, %v3533, %v4086
        %4110 = vst [vmem:[#allocation2] sm:$0xff] %v4106
        %4111 = vst [vmem:[#allocation2 + $0x8] sm:$0xff] %v4107
        %4112 = vst [vmem:[#allocation3] sm:$0xff] %v4108
        %4113 = vst [vmem:[#allocation3 + $0x8] sm:$0xff] %v4109
        %v4114 = vpack.c.bf16 %v4107, %v4106
        %v4116 = vunpack.c.l.b16 %v4114
        %v4117 = vunpack.c.h.b16 %v4114
        %v4118 = vpack.c.b16 %v4116, %v4116
        %v4119 = vpack.c.b16 %v4117, %v4117
        %4122 = vst [vmem:[#allocation4 + $0x4] sm:$0xf] %v4118
        %4123 = vst [vmem:[#allocation4 + $0xc] sm:$0xf] %v4119
        %s4124 = scalar_lea.vmem %s497, 80 [#allocation9]
        %4125 = vst [vmem:[%s4124] sm:$0xff] %v4106
        %4126 = vst [vmem:[%s4124 + $0x8] sm:$0xff] %v4107
        %v4127 = vld [vmem:[#allocation2] sm:$0xff]
        %v4128 = vld [vmem:[#allocation2 + $0x8] sm:$0xff]
        %v4129 = vld [vmem:[#allocation3] sm:$0xff]
        %v4130 = vld [vmem:[#allocation3 + $0x8] sm:$0xff]
        %s4131 = scalar_lea.vmem %s455, 48 [#allocation6]
        %v4132 = vld [vmem:[%s4131] sm:$0xf]
        %v4133 = vld [vmem:[%s4131 + $0x4] sm:$0xf]
        %4134 = vst [vmem:[#allocation4] sm:$0xf] %v4132
        %4135 = vst [vmem:[#allocation4 + $0x8] sm:$0xf] %v4133
        %v4136 = vld [vmem:[#allocation4] sm:$0xff]
        %v4137 = vld [vmem:[#allocation4 + $0x8] sm:$0xff]
        %v4138 = vld [vmem:[%s4] sm:$0xff]
        %v4139 = vld [vmem:[%s4 + $0x8] sm:$0xff]
        %v4140 = vld [vmem:[%s4 + $0x10] sm:$0xff]
        %v4141 = vld [vmem:[%s4 + $0x18] sm:$0xff]
        %v4142 = vld [vmem:[%s4 + $0x20] sm:$0xff]
        %v4143 = vld [vmem:[%s4 + $0x28] sm:$0xff]
        %v4144 = vld [vmem:[%s4 + $0x30] sm:$0xff]
        %v4145 = vld [vmem:[%s4 + $0x38] sm:$0xff]
        %v4146 = vld [vmem:[%s4 + $0x40] sm:$0xff]
        %v4147 = vld [vmem:[%s4 + $0x48] sm:$0xff]
        %v4148 = vld [vmem:[%s4 + $0x50] sm:$0xff]
        %v4149 = vld [vmem:[%s4 + $0x58] sm:$0xff]
        %v4150 = vld [vmem:[%s4 + $0x60] sm:$0xff]
        %v4151 = vld [vmem:[%s4 + $0x68] sm:$0xff]
        %v4152 = vld [vmem:[%s4 + $0x70] sm:$0xff]
        %v4153 = vld [vmem:[%s4 + $0x78] sm:$0xff]
        %v4154 = vld [vmem:[%s4 + $0x80] sm:$0xff]
        %v4155 = vld [vmem:[%s4 + $0x88] sm:$0xff]
        %v4156 = vld [vmem:[%s4 + $0x90] sm:$0xff]
        %v4157 = vld [vmem:[%s4 + $0x98] sm:$0xff]
        %v4158 = vld [vmem:[%s4 + $0xa0] sm:$0xff]
        %v4159 = vld [vmem:[%s4 + $0xa8] sm:$0xff]
        %v4160 = vld [vmem:[%s4 + $0xb0] sm:$0xff]
        %v4161 = vld [vmem:[%s4 + $0xb8] sm:$0xff]
        %v4162 = vld [vmem:[%s4 + $0xc0] sm:$0xff]
        %v4163 = vld [vmem:[%s4 + $0xc8] sm:$0xff]
        %v4164 = vld [vmem:[%s4 + $0xd0] sm:$0xff]
        %v4165 = vld [vmem:[%s4 + $0xd8] sm:$0xff]
        %v4166 = vld [vmem:[%s4 + $0xe0] sm:$0xff]
        %v4167 = vld [vmem:[%s4 + $0xe8] sm:$0xff]
        %v4168 = vld [vmem:[%s4 + $0xf0] sm:$0xff]
        %v4169 = vld [vmem:[%s4 + $0xf8] sm:$0xff]
        %v4170 = vld [vmem:[%s4 + $0x100] sm:$0xff]
        %v4171 = vld [vmem:[%s4 + $0x108] sm:$0xff]
        %v4172 = vld [vmem:[%s4 + $0x110] sm:$0xff]
        %v4173 = vld [vmem:[%s4 + $0x118] sm:$0xff]
        %v4174 = vld [vmem:[%s4 + $0x120] sm:$0xff]
        %v4175 = vld [vmem:[%s4 + $0x128] sm:$0xff]
        %v4176 = vld [vmem:[%s4 + $0x130] sm:$0xff]
        %v4177 = vld [vmem:[%s4 + $0x138] sm:$0xff]
        %v4178 = vld [vmem:[%s4 + $0x140] sm:$0xff]
        %v4179 = vld [vmem:[%s4 + $0x148] sm:$0xff]
        %v4180 = vld [vmem:[%s4 + $0x150] sm:$0xff]
        %v4181 = vld [vmem:[%s4 + $0x158] sm:$0xff]
        %v4182 = vld [vmem:[%s4 + $0x160] sm:$0xff]
        %v4183 = vld [vmem:[%s4 + $0x168] sm:$0xff]
        %v4184 = vld [vmem:[%s4 + $0x170] sm:$0xff]
        %v4185 = vld [vmem:[%s4 + $0x178] sm:$0xff]
        %v4186 = vld [vmem:[%s4 + $0x180] sm:$0xff]
        %v4187 = vld [vmem:[%s4 + $0x188] sm:$0xff]
        %v4188 = vld [vmem:[%s4 + $0x190] sm:$0xff]
        %v4189 = vld [vmem:[%s4 + $0x198] sm:$0xff]
        %v4190 = vld [vmem:[%s4 + $0x1a0] sm:$0xff]
        %v4191 = vld [vmem:[%s4 + $0x1a8] sm:$0xff]
        %v4192 = vld [vmem:[%s4 + $0x1b0] sm:$0xff]
        %v4193 = vld [vmem:[%s4 + $0x1b8] sm:$0xff]
        %v4194 = vld [vmem:[%s4 + $0x1c0] sm:$0xff]
        %v4195 = vld [vmem:[%s4 + $0x1c8] sm:$0xff]
        %v4196 = vld [vmem:[%s4 + $0x1d0] sm:$0xff]
        %v4197 = vld [vmem:[%s4 + $0x1d8] sm:$0xff]
        %v4198 = vld [vmem:[%s4 + $0x1e0] sm:$0xff]
        %v4199 = vld [vmem:[%s4 + $0x1e8] sm:$0xff]
        %v4200 = vld [vmem:[%s4 + $0x1f0] sm:$0xff]
        %v4201 = vld [vmem:[%s4 + $0x1f8] sm:$0xff]
        %v4202 = vld [vmem:[%s5] sm:$0xf]
        %v4204 = vlaneseq
        %v4205 = vshrl.u32 %v4204, 7
        %v4206 = vsub.s32 0, %v4205
        %v4207 = vrot.slane %v4202, %v4206
        %v4208 = vlaneseq
        %v4209 = vshrl.u32 %v4208, 7
        %v4210 = vsub.s32 1, %v4209
        %v4211 = vrot.slane %v4202, %v4210
        %v4212 = vlaneseq
        %v4213 = vshrl.u32 %v4212, 7
        %v4214 = vsub.s32 2, %v4213
        %v4215 = vrot.slane %v4202, %v4214
        %v4216 = vlaneseq
        %v4217 = vshrl.u32 %v4216, 7
        %v4218 = vsub.s32 3, %v4217
        %v4219 = vrot.slane %v4202, %v4218
        %v4226 = vunpack.c.l.b16 %v4136
        %v4227 = vunpack.c.h.b16 %v4136
        %v4228 = vunpack.c.l.b16 %v4137
        %v4229 = vunpack.c.h.b16 %v4137
        %v4230 = vpack.c.b16 %v4228, %v4226
        %v4231 = vpack.c.b16 %v4229, %v4227
        %v4298 = vunpack.c.l.b16 %v4138
        %v4299 = vunpack.c.h.b16 %v4138
        %v4300 = vunpack.c.l.b16 %v4139
        %v4301 = vunpack.c.h.b16 %v4139
        %v4302 = vunpack.c.l.b16 %v4140
        %v4303 = vunpack.c.h.b16 %v4140
        %v4304 = vunpack.c.l.b16 %v4141
        %v4305 = vunpack.c.h.b16 %v4141
        %v4306 = vunpack.c.l.b16 %v4142
        %v4307 = vunpack.c.h.b16 %v4142
        %v4308 = vunpack.c.l.b16 %v4143
        %v4309 = vunpack.c.h.b16 %v4143
        %v4310 = vunpack.c.l.b16 %v4144
        %v4311 = vunpack.c.h.b16 %v4144
        %v4312 = vunpack.c.l.b16 %v4145
        %v4313 = vunpack.c.h.b16 %v4145
        %v4314 = vunpack.c.l.b16 %v4146
        %v4315 = vunpack.c.h.b16 %v4146
        %v4316 = vunpack.c.l.b16 %v4147
        %v4317 = vunpack.c.h.b16 %v4147
        %v4318 = vunpack.c.l.b16 %v4148
        %v4319 = vunpack.c.h.b16 %v4148
        %v4320 = vunpack.c.l.b16 %v4149
        %v4321 = vunpack.c.h.b16 %v4149
        %v4322 = vunpack.c.l.b16 %v4150
        %v4323 = vunpack.c.h.b16 %v4150
        %v4324 = vunpack.c.l.b16 %v4151
        %v4325 = vunpack.c.h.b16 %v4151
        %v4326 = vunpack.c.l.b16 %v4152
        %v4327 = vunpack.c.h.b16 %v4152
        %v4328 = vunpack.c.l.b16 %v4153
        %v4329 = vunpack.c.h.b16 %v4153
        %v4330 = vunpack.c.l.b16 %v4154
        %v4331 = vunpack.c.h.b16 %v4154
        %v4332 = vunpack.c.l.b16 %v4155
        %v4333 = vunpack.c.h.b16 %v4155
        %v4334 = vunpack.c.l.b16 %v4156
        %v4335 = vunpack.c.h.b16 %v4156
        %v4336 = vunpack.c.l.b16 %v4157
        %v4337 = vunpack.c.h.b16 %v4157
        %v4338 = vunpack.c.l.b16 %v4158
        %v4339 = vunpack.c.h.b16 %v4158
        %v4340 = vunpack.c.l.b16 %v4159
        %v4341 = vunpack.c.h.b16 %v4159
        %v4342 = vunpack.c.l.b16 %v4160
        %v4343 = vunpack.c.h.b16 %v4160
        %v4344 = vunpack.c.l.b16 %v4161
        %v4345 = vunpack.c.h.b16 %v4161
        %v4346 = vunpack.c.l.b16 %v4162
        %v4347 = vunpack.c.h.b16 %v4162
        %v4348 = vunpack.c.l.b16 %v4163
        %v4349 = vunpack.c.h.b16 %v4163
        %v4350 = vunpack.c.l.b16 %v4164
        %v4351 = vunpack.c.h.b16 %v4164
        %v4352 = vunpack.c.l.b16 %v4165
        %v4353 = vunpack.c.h.b16 %v4165
        %v4354 = vunpack.c.l.b16 %v4166
        %v4355 = vunpack.c.h.b16 %v4166
        %v4356 = vunpack.c.l.b16 %v4167
        %v4357 = vunpack.c.h.b16 %v4167
        %v4358 = vunpack.c.l.b16 %v4168
        %v4359 = vunpack.c.h.b16 %v4168
        %v4360 = vunpack.c.l.b16 %v4169
        %v4361 = vunpack.c.h.b16 %v4169
        %v4362 = vunpack.c.l.b16 %v4170
        %v4363 = vunpack.c.h.b16 %v4170
        %v4364 = vunpack.c.l.b16 %v4171
        %v4365 = vunpack.c.h.b16 %v4171
        %v4366 = vunpack.c.l.b16 %v4172
        %v4367 = vunpack.c.h.b16 %v4172
        %v4368 = vunpack.c.l.b16 %v4173
        %v4369 = vunpack.c.h.b16 %v4173
        %v4370 = vunpack.c.l.b16 %v4174
        %v4371 = vunpack.c.h.b16 %v4174
        %v4372 = vunpack.c.l.b16 %v4175
        %v4373 = vunpack.c.h.b16 %v4175
        %v4374 = vunpack.c.l.b16 %v4176
        %v4375 = vunpack.c.h.b16 %v4176
        %v4376 = vunpack.c.l.b16 %v4177
        %v4377 = vunpack.c.h.b16 %v4177
        %v4378 = vunpack.c.l.b16 %v4178
        %v4379 = vunpack.c.h.b16 %v4178
        %v4380 = vunpack.c.l.b16 %v4179
        %v4381 = vunpack.c.h.b16 %v4179
        %v4382 = vunpack.c.l.b16 %v4180
        %v4383 = vunpack.c.h.b16 %v4180
        %v4384 = vunpack.c.l.b16 %v4181
        %v4385 = vunpack.c.h.b16 %v4181
        %v4386 = vunpack.c.l.b16 %v4182
        %v4387 = vunpack.c.h.b16 %v4182
        %v4388 = vunpack.c.l.b16 %v4183
        %v4389 = vunpack.c.h.b16 %v4183
        %v4390 = vunpack.c.l.b16 %v4184
        %v4391 = vunpack.c.h.b16 %v4184
        %v4392 = vunpack.c.l.b16 %v4185
        %v4393 = vunpack.c.h.b16 %v4185
        %v4394 = vunpack.c.l.b16 %v4186
        %v4395 = vunpack.c.h.b16 %v4186
        %v4396 = vunpack.c.l.b16 %v4187
        %v4397 = vunpack.c.h.b16 %v4187
        %v4398 = vunpack.c.l.b16 %v4188
        %v4399 = vunpack.c.h.b16 %v4188
        %v4400 = vunpack.c.l.b16 %v4189
        %v4401 = vunpack.c.h.b16 %v4189
        %v4402 = vunpack.c.l.b16 %v4190
        %v4403 = vunpack.c.h.b16 %v4190
        %v4404 = vunpack.c.l.b16 %v4191
        %v4405 = vunpack.c.h.b16 %v4191
        %v4406 = vunpack.c.l.b16 %v4192
        %v4407 = vunpack.c.h.b16 %v4192
        %v4408 = vunpack.c.l.b16 %v4193
        %v4409 = vunpack.c.h.b16 %v4193
        %v4410 = vunpack.c.l.b16 %v4194
        %v4411 = vunpack.c.h.b16 %v4194
        %v4412 = vunpack.c.l.b16 %v4195
        %v4413 = vunpack.c.h.b16 %v4195
        %v4414 = vunpack.c.l.b16 %v4196
        %v4415 = vunpack.c.h.b16 %v4196
        %v4416 = vunpack.c.l.b16 %v4197
        %v4417 = vunpack.c.h.b16 %v4197
        %v4418 = vunpack.c.l.b16 %v4198
        %v4419 = vunpack.c.h.b16 %v4198
        %v4420 = vunpack.c.l.b16 %v4199
        %v4421 = vunpack.c.h.b16 %v4199
        %v4422 = vunpack.c.l.b16 %v4200
        %v4423 = vunpack.c.h.b16 %v4200
        %v4424 = vunpack.c.l.b16 %v4201
        %v4425 = vunpack.c.h.b16 %v4201
        %v4426 = vpack.c.b16 %v4302, %v4298
        %v4427 = vpack.c.b16 %v4303, %v4299
        %v4428 = vpack.c.b16 %v4304, %v4300
        %v4429 = vpack.c.b16 %v4305, %v4301
        %v4430 = vpack.c.b16 %v4310, %v4306
        %v4431 = vpack.c.b16 %v4311, %v4307
        %v4432 = vpack.c.b16 %v4312, %v4308
        %v4433 = vpack.c.b16 %v4313, %v4309
        %v4434 = vpack.c.b16 %v4318, %v4314
        %v4435 = vpack.c.b16 %v4319, %v4315
        %v4436 = vpack.c.b16 %v4320, %v4316
        %v4437 = vpack.c.b16 %v4321, %v4317
        %v4438 = vpack.c.b16 %v4326, %v4322
        %v4439 = vpack.c.b16 %v4327, %v4323
        %v4440 = vpack.c.b16 %v4328, %v4324
        %v4441 = vpack.c.b16 %v4329, %v4325
        %v4442 = vpack.c.b16 %v4334, %v4330
        %v4443 = vpack.c.b16 %v4335, %v4331
        %v4444 = vpack.c.b16 %v4336, %v4332
        %v4445 = vpack.c.b16 %v4337, %v4333
        %v4446 = vpack.c.b16 %v4342, %v4338
        %v4447 = vpack.c.b16 %v4343, %v4339
        %v4448 = vpack.c.b16 %v4344, %v4340
        %v4449 = vpack.c.b16 %v4345, %v4341
        %v4450 = vpack.c.b16 %v4350, %v4346
        %v4451 = vpack.c.b16 %v4351, %v4347
        %v4452 = vpack.c.b16 %v4352, %v4348
        %v4453 = vpack.c.b16 %v4353, %v4349
        %v4454 = vpack.c.b16 %v4358, %v4354
        %v4455 = vpack.c.b16 %v4359, %v4355
        %v4456 = vpack.c.b16 %v4360, %v4356
        %v4457 = vpack.c.b16 %v4361, %v4357
        %v4458 = vpack.c.b16 %v4366, %v4362
        %v4459 = vpack.c.b16 %v4367, %v4363
        %v4460 = vpack.c.b16 %v4368, %v4364
        %v4461 = vpack.c.b16 %v4369, %v4365
        %v4462 = vpack.c.b16 %v4374, %v4370
        %v4463 = vpack.c.b16 %v4375, %v4371
        %v4464 = vpack.c.b16 %v4376, %v4372
        %v4465 = vpack.c.b16 %v4377, %v4373
        %v4466 = vpack.c.b16 %v4382, %v4378
        %v4467 = vpack.c.b16 %v4383, %v4379
        %v4468 = vpack.c.b16 %v4384, %v4380
        %v4469 = vpack.c.b16 %v4385, %v4381
        %v4470 = vpack.c.b16 %v4390, %v4386
        %v4471 = vpack.c.b16 %v4391, %v4387
        %v4472 = vpack.c.b16 %v4392, %v4388
        %v4473 = vpack.c.b16 %v4393, %v4389
        %v4474 = vpack.c.b16 %v4398, %v4394
        %v4475 = vpack.c.b16 %v4399, %v4395
        %v4476 = vpack.c.b16 %v4400, %v4396
        %v4477 = vpack.c.b16 %v4401, %v4397
        %v4478 = vpack.c.b16 %v4406, %v4402
        %v4479 = vpack.c.b16 %v4407, %v4403
        %v4480 = vpack.c.b16 %v4408, %v4404
        %v4481 = vpack.c.b16 %v4409, %v4405
        %v4482 = vpack.c.b16 %v4414, %v4410
        %v4483 = vpack.c.b16 %v4415, %v4411
        %v4484 = vpack.c.b16 %v4416, %v4412
        %v4485 = vpack.c.b16 %v4417, %v4413
        %v4486 = vpack.c.b16 %v4422, %v4418
        %v4487 = vpack.c.b16 %v4423, %v4419
        %v4488 = vpack.c.b16 %v4424, %v4420
        %v4489 = vpack.c.b16 %v4425, %v4421
        %4554 = vmatprep.subr.bf16.mxu0 %v4455
        %4555 = vmatpush1.bf16.msra.mxu0 %v4454
        %4556 = vmatprep.subr.bf16.mxu0 %v4451
        %4557 = vmatpush1.bf16.msra.mxu0 %v4450
        %4558 = vmatprep.subr.bf16.mxu0 %v4447
        %4559 = vmatpush1.bf16.msra.mxu0 %v4446
        %4560 = vmatprep.subr.bf16.mxu0 %v4443
        %4561 = vmatpush1.bf16.msra.mxu0 %v4442
        %4562 = vmatprep.subr.bf16.mxu0 %v4439
        %4563 = vmatpush1.bf16.msra.mxu0 %v4438
        %4564 = vmatprep.subr.bf16.mxu0 %v4435
        %4565 = vmatpush1.bf16.msra.mxu0 %v4434
        %4566 = vmatprep.subr.bf16.mxu0 %v4431
        %4567 = vmatpush1.bf16.msra.mxu0 %v4430
        %4568 = vmatprep.subr.bf16.mxu0 %v4427
        %4569 = vmatpush1.bf16.msra.mxu0 %v4426
        %4570 = vmatprep.subr.bf16.mxu0 %v4487
        %4571 = vmatpush2.bf16.msra.mxu0 %v4486
        %4572 = vmatprep.subr.bf16.mxu0 %v4483
        %4573 = vmatpush2.bf16.msra.mxu0 %v4482
        %4574 = vmatprep.subr.bf16.mxu0 %v4479
        %4575 = vmatpush2.bf16.msra.mxu0 %v4478
        %4576 = vmatprep.subr.bf16.mxu0 %v4475
        %4577 = vmatpush2.bf16.msra.mxu0 %v4474
        %4578 = vmatprep.subr.bf16.mxu0 %v4471
        %4579 = vmatpush2.bf16.msra.mxu0 %v4470
        %4580 = vmatprep.subr.bf16.mxu0 %v4467
        %4581 = vmatpush2.bf16.msra.mxu0 %v4466
        %4582 = vmatprep.subr.bf16.mxu0 %v4463
        %4583 = vmatpush2.bf16.msra.mxu0 %v4462
        %4584 = vmatprep.subr.bf16.mxu0 %v4459
        %4585 = vmatpush2.bf16.msra.mxu0 %v4458
        %4586 = vmatprep.mubr.bf16.mxu0 %v4231
        %4587 = vmatmul.mubr.bf16.gmra.mxu0 %v4230
        %v4588 = vpop.f32.mrf.mxu0
        %v4589 = vadd.f32 %v4207, %v4588
        %v4590 = vpop.f32.mrf.mxu0
        %v4591 = vadd.f32 %v4211, %v4590
        %v4592 = vpop.f32.mrf.mxu0
        %v4593 = vadd.f32 %v4207, %v4592
        %v4594 = vpop.f32.mrf.mxu0
        %v4595 = vadd.f32 %v4211, %v4594
        %4596 = vdwg.mxu0
        %4597 = vmatprep.subr.bf16.mxu0 %v4457
        %4598 = vmatpush1.bf16.msra.mxu0 %v4456
        %4599 = vmatprep.subr.bf16.mxu0 %v4453
        %4600 = vmatpush1.bf16.msra.mxu0 %v4452
        %4601 = vmatprep.subr.bf16.mxu0 %v4449
        %4602 = vmatpush1.bf16.msra.mxu0 %v4448
        %4603 = vmatprep.subr.bf16.mxu0 %v4445
        %4604 = vmatpush1.bf16.msra.mxu0 %v4444
        %4605 = vmatprep.subr.bf16.mxu0 %v4441
        %4606 = vmatpush1.bf16.msra.mxu0 %v4440
        %4607 = vmatprep.subr.bf16.mxu0 %v4437
        %4608 = vmatpush1.bf16.msra.mxu0 %v4436
        %4609 = vmatprep.subr.bf16.mxu0 %v4433
        %4610 = vmatpush1.bf16.msra.mxu0 %v4432
        %4611 = vmatprep.subr.bf16.mxu0 %v4429
        %4612 = vmatpush1.bf16.msra.mxu0 %v4428
        %4613 = vmatprep.subr.bf16.mxu0 %v4489
        %4614 = vmatpush2.bf16.msra.mxu0 %v4488
        %4615 = vmatprep.subr.bf16.mxu0 %v4485
        %4616 = vmatpush2.bf16.msra.mxu0 %v4484
        %4617 = vmatprep.subr.bf16.mxu0 %v4481
        %4618 = vmatpush2.bf16.msra.mxu0 %v4480
        %4619 = vmatprep.subr.bf16.mxu0 %v4477
        %4620 = vmatpush2.bf16.msra.mxu0 %v4476
        %4621 = vmatprep.subr.bf16.mxu0 %v4473
        %4622 = vmatpush2.bf16.msra.mxu0 %v4472
        %4623 = vmatprep.subr.bf16.mxu0 %v4469
        %4624 = vmatpush2.bf16.msra.mxu0 %v4468
        %4625 = vmatprep.subr.bf16.mxu0 %v4465
        %4626 = vmatpush2.bf16.msra.mxu0 %v4464
        %4627 = vmatprep.subr.bf16.mxu0 %v4461
        %4628 = vmatpush2.bf16.msra.mxu0 %v4460
        %4629 = vmatprep.mubr.bf16.mxu0 %v4231
        %4630 = vmatmul.mubr.bf16.gmra.mxu0 %v4230
        %v4631 = vpop.f32.mrf.mxu0
        %v4632 = vadd.f32 %v4215, %v4631
        %v4633 = vpop.f32.mrf.mxu0
        %v4634 = vadd.f32 %v4219, %v4633
        %v4635 = vpop.f32.mrf.mxu0
        %v4636 = vadd.f32 %v4215, %v4635
        %v4637 = vpop.f32.mrf.mxu0
        %v4638 = vadd.f32 %v4219, %v4637
        %4639 = vdwg.mxu0
        %v4640 = vxor.u32 %v4589, 2147483648
        %v4641 = vxor.u32 %v4593, 2147483648
        %v4642 = vmul.f32 %v4640, 1.442695
        %v4643 = vpow.pop %v4642
        %v4644 = vmul.f32 %v4641, 1.442695
        %v4645 = vpow.pop %v4644
        %v4646 = vadd.f32 %v4643, 1.0
        %v4647 = vadd.f32 %v4645, 1.0
        %v4648 = vrcp.pop %v4646
        %v4649 = vmul.f32 1.0, %v4648
        %v4650 = vrcp.pop %v4647
        %v4651 = vmul.f32 1.0, %v4650
        %v4652 = vxor.u32 %v4591, 2147483648
        %v4653 = vxor.u32 %v4595, 2147483648
        %v4654 = vmul.f32 %v4652, 1.442695
        %v4655 = vpow.pop %v4654
        %v4656 = vmul.f32 %v4653, 1.442695
        %v4657 = vpow.pop %v4656
        %v4658 = vadd.f32 %v4655, 1.0
        %v4659 = vadd.f32 %v4657, 1.0
        %v4660 = vrcp.pop %v4658
        %v4661 = vmul.f32 1.0, %v4660
        %v4662 = vrcp.pop %v4659
        %v4663 = vmul.f32 1.0, %v4662
        %v4664 = vtanh.pop %v4632
        %v4665 = vtanh.pop %v4636
        %v4666 = vxor.u32 %v4634, 2147483648
        %v4667 = vxor.u32 %v4638, 2147483648
        %v4668 = vmul.f32 %v4666, 1.442695
        %v4669 = vpow.pop %v4668
        %v4670 = vmul.f32 %v4667, 1.442695
        %v4671 = vpow.pop %v4670
        %v4672 = vadd.f32 %v4669, 1.0
        %v4673 = vadd.f32 %v4671, 1.0
        %v4674 = vrcp.pop %v4672
        %v4675 = vmul.f32 1.0, %v4674
        %v4676 = vrcp.pop %v4673
        %v4677 = vmul.f32 1.0, %v4676
        %v4678 = vmul.f32 %v4661, %v4129
        %v4679 = vmul.f32 %v4663, %v4130
        %v4680 = vmul.f32 %v4649, %v4664
        %v4681 = vmul.f32 %v4651, %v4665
        %v4682 = vadd.f32 %v4678, %v4680
        %v4683 = vadd.f32 %v4679, %v4681
        %v4684 = vtanh.pop %v4682
        %v4685 = vtanh.pop %v4683
        %v4686 = vmul.f32 %v4675, %v4684
        %v4687 = vmul.f32 %v4677, %v4685
        %s4688 = scalar_lea.vmem %s447, 96 [#allocation5]
        %v4689 = vld [vmem:[%s4688] sm:$0xff]
        %v4690 = vld [vmem:[%s4688 + $0x8] sm:$0xff]
        %vm4691 = vcmp.ne.f32.partialorder %v4689, 0.0
        %vm4692 = vcmp.ne.f32.partialorder %v4690, 0.0
        %v4693 = vsel %vm4691, 1, 0
        %v4694 = vsel %vm4692, 1, 0
        %4695 = vset.pattern.permute.xlu0 0
        %4696 = vperm.xlu0 %4695, %v4693
        %v4697 = vpop.permute.xlu0 %4696
        %4698 = vset.pattern.permute.xlu0 0
        %4699 = vperm.xlu0 %4698, %v4694
        %v4700 = vpop.permute.xlu0 %4699
        %vm4701 = vcmp.eq.s32.totalorder %v4697, 1
        %vm4702 = vcmp.eq.s32.totalorder %v4700, 1
        %v4703 = vsel %vm4701, %v4127, %v4686
        %v4704 = vsel %vm4702, %v4128, %v4687
        %v4705 = vsel %vm4701, %v4129, %v4682
        %v4706 = vsel %vm4702, %v4130, %v4683
        %4707 = vst [vmem:[#allocation2] sm:$0xff] %v4703
        %4708 = vst [vmem:[#allocation2 + $0x8] sm:$0xff] %v4704
        %4709 = vst [vmem:[#allocation3] sm:$0xff] %v4705
        %4710 = vst [vmem:[#allocation3 + $0x8] sm:$0xff] %v4706
        %v4711 = vpack.c.bf16 %v4704, %v4703
        %v4713 = vunpack.c.l.b16 %v4711
        %v4714 = vunpack.c.h.b16 %v4711
        %v4715 = vpack.c.b16 %v4713, %v4713
        %v4716 = vpack.c.b16 %v4714, %v4714
        %4719 = vst [vmem:[#allocation4 + $0x4] sm:$0xf] %v4715
        %4720 = vst [vmem:[#allocation4 + $0xc] sm:$0xf] %v4716
        %s4721 = scalar_lea.vmem %s497, 96 [#allocation9]
        %4722 = vst [vmem:[%s4721] sm:$0xff] %v4703
        %4723 = vst [vmem:[%s4721 + $0x8] sm:$0xff] %v4704
        %v4724 = vld [vmem:[#allocation2] sm:$0xff]
        %v4725 = vld [vmem:[#allocation2 + $0x8] sm:$0xff]
        %v4726 = vld [vmem:[#allocation3] sm:$0xff]
        %v4727 = vld [vmem:[#allocation3 + $0x8] sm:$0xff]
        %s4728 = scalar_lea.vmem %s455, 56 [#allocation6]
        %v4729 = vld [vmem:[%s4728] sm:$0xf]
        %v4730 = vld [vmem:[%s4728 + $0x4] sm:$0xf]
        %4731 = vst [vmem:[#allocation4] sm:$0xf] %v4729
        %4732 = vst [vmem:[#allocation4 + $0x8] sm:$0xf] %v4730
        %v4733 = vld [vmem:[#allocation4] sm:$0xff]
        %v4734 = vld [vmem:[#allocation4 + $0x8] sm:$0xff]
        %v4735 = vld [vmem:[%s4] sm:$0xff]
        %v4736 = vld [vmem:[%s4 + $0x8] sm:$0xff]
        %v4737 = vld [vmem:[%s4 + $0x10] sm:$0xff]
        %v4738 = vld [vmem:[%s4 + $0x18] sm:$0xff]
        %v4739 = vld [vmem:[%s4 + $0x20] sm:$0xff]
        %v4740 = vld [vmem:[%s4 + $0x28] sm:$0xff]
        %v4741 = vld [vmem:[%s4 + $0x30] sm:$0xff]
        %v4742 = vld [vmem:[%s4 + $0x38] sm:$0xff]
        %v4743 = vld [vmem:[%s4 + $0x40] sm:$0xff]
        %v4744 = vld [vmem:[%s4 + $0x48] sm:$0xff]
        %v4745 = vld [vmem:[%s4 + $0x50] sm:$0xff]
        %v4746 = vld [vmem:[%s4 + $0x58] sm:$0xff]
        %v4747 = vld [vmem:[%s4 + $0x60] sm:$0xff]
        %v4748 = vld [vmem:[%s4 + $0x68] sm:$0xff]
        %v4749 = vld [vmem:[%s4 + $0x70] sm:$0xff]
        %v4750 = vld [vmem:[%s4 + $0x78] sm:$0xff]
        %v4751 = vld [vmem:[%s4 + $0x80] sm:$0xff]
        %v4752 = vld [vmem:[%s4 + $0x88] sm:$0xff]
        %v4753 = vld [vmem:[%s4 + $0x90] sm:$0xff]
        %v4754 = vld [vmem:[%s4 + $0x98] sm:$0xff]
        %v4755 = vld [vmem:[%s4 + $0xa0] sm:$0xff]
        %v4756 = vld [vmem:[%s4 + $0xa8] sm:$0xff]
        %v4757 = vld [vmem:[%s4 + $0xb0] sm:$0xff]
        %v4758 = vld [vmem:[%s4 + $0xb8] sm:$0xff]
        %v4759 = vld [vmem:[%s4 + $0xc0] sm:$0xff]
        %v4760 = vld [vmem:[%s4 + $0xc8] sm:$0xff]
        %v4761 = vld [vmem:[%s4 + $0xd0] sm:$0xff]
        %v4762 = vld [vmem:[%s4 + $0xd8] sm:$0xff]
        %v4763 = vld [vmem:[%s4 + $0xe0] sm:$0xff]
        %v4764 = vld [vmem:[%s4 + $0xe8] sm:$0xff]
        %v4765 = vld [vmem:[%s4 + $0xf0] sm:$0xff]
        %v4766 = vld [vmem:[%s4 + $0xf8] sm:$0xff]
        %v4767 = vld [vmem:[%s4 + $0x100] sm:$0xff]
        %v4768 = vld [vmem:[%s4 + $0x108] sm:$0xff]
        %v4769 = vld [vmem:[%s4 + $0x110] sm:$0xff]
        %v4770 = vld [vmem:[%s4 + $0x118] sm:$0xff]
        %v4771 = vld [vmem:[%s4 + $0x120] sm:$0xff]
        %v4772 = vld [vmem:[%s4 + $0x128] sm:$0xff]
        %v4773 = vld [vmem:[%s4 + $0x130] sm:$0xff]
        %v4774 = vld [vmem:[%s4 + $0x138] sm:$0xff]
        %v4775 = vld [vmem:[%s4 + $0x140] sm:$0xff]
        %v4776 = vld [vmem:[%s4 + $0x148] sm:$0xff]
        %v4777 = vld [vmem:[%s4 + $0x150] sm:$0xff]
        %v4778 = vld [vmem:[%s4 + $0x158] sm:$0xff]
        %v4779 = vld [vmem:[%s4 + $0x160] sm:$0xff]
        %v4780 = vld [vmem:[%s4 + $0x168] sm:$0xff]
        %v4781 = vld [vmem:[%s4 + $0x170] sm:$0xff]
        %v4782 = vld [vmem:[%s4 + $0x178] sm:$0xff]
        %v4783 = vld [vmem:[%s4 + $0x180] sm:$0xff]
        %v4784 = vld [vmem:[%s4 + $0x188] sm:$0xff]
        %v4785 = vld [vmem:[%s4 + $0x190] sm:$0xff]
        %v4786 = vld [vmem:[%s4 + $0x198] sm:$0xff]
        %v4787 = vld [vmem:[%s4 + $0x1a0] sm:$0xff]
        %v4788 = vld [vmem:[%s4 + $0x1a8] sm:$0xff]
        %v4789 = vld [vmem:[%s4 + $0x1b0] sm:$0xff]
        %v4790 = vld [vmem:[%s4 + $0x1b8] sm:$0xff]
        %v4791 = vld [vmem:[%s4 + $0x1c0] sm:$0xff]
        %v4792 = vld [vmem:[%s4 + $0x1c8] sm:$0xff]
        %v4793 = vld [vmem:[%s4 + $0x1d0] sm:$0xff]
        %v4794 = vld [vmem:[%s4 + $0x1d8] sm:$0xff]
        %v4795 = vld [vmem:[%s4 + $0x1e0] sm:$0xff]
        %v4796 = vld [vmem:[%s4 + $0x1e8] sm:$0xff]
        %v4797 = vld [vmem:[%s4 + $0x1f0] sm:$0xff]
        %v4798 = vld [vmem:[%s4 + $0x1f8] sm:$0xff]
        %v4799 = vld [vmem:[%s5] sm:$0xf]
        %v4801 = vlaneseq
        %v4802 = vshrl.u32 %v4801, 7
        %v4803 = vsub.s32 0, %v4802
        %v4804 = vrot.slane %v4799, %v4803
        %v4805 = vlaneseq
        %v4806 = vshrl.u32 %v4805, 7
        %v4807 = vsub.s32 1, %v4806
        %v4808 = vrot.slane %v4799, %v4807
        %v4809 = vlaneseq
        %v4810 = vshrl.u32 %v4809, 7
        %v4811 = vsub.s32 2, %v4810
        %v4812 = vrot.slane %v4799, %v4811
        %v4813 = vlaneseq
        %v4814 = vshrl.u32 %v4813, 7
        %v4815 = vsub.s32 3, %v4814
        %v4816 = vrot.slane %v4799, %v4815
        %v4823 = vunpack.c.l.b16 %v4733
        %v4824 = vunpack.c.h.b16 %v4733
        %v4825 = vunpack.c.l.b16 %v4734
        %v4826 = vunpack.c.h.b16 %v4734
        %v4827 = vpack.c.b16 %v4825, %v4823
        %v4828 = vpack.c.b16 %v4826, %v4824
        %v4895 = vunpack.c.l.b16 %v4735
        %v4896 = vunpack.c.h.b16 %v4735
        %v4897 = vunpack.c.l.b16 %v4736
        %v4898 = vunpack.c.h.b16 %v4736
        %v4899 = vunpack.c.l.b16 %v4737
        %v4900 = vunpack.c.h.b16 %v4737
        %v4901 = vunpack.c.l.b16 %v4738
        %v4902 = vunpack.c.h.b16 %v4738
        %v4903 = vunpack.c.l.b16 %v4739
        %v4904 = vunpack.c.h.b16 %v4739
        %v4905 = vunpack.c.l.b16 %v4740
        %v4906 = vunpack.c.h.b16 %v4740
        %v4907 = vunpack.c.l.b16 %v4741
        %v4908 = vunpack.c.h.b16 %v4741
        %v4909 = vunpack.c.l.b16 %v4742
        %v4910 = vunpack.c.h.b16 %v4742
        %v4911 = vunpack.c.l.b16 %v4743
        %v4912 = vunpack.c.h.b16 %v4743
        %v4913 = vunpack.c.l.b16 %v4744
        %v4914 = vunpack.c.h.b16 %v4744
        %v4915 = vunpack.c.l.b16 %v4745
        %v4916 = vunpack.c.h.b16 %v4745
        %v4917 = vunpack.c.l.b16 %v4746
        %v4918 = vunpack.c.h.b16 %v4746
        %v4919 = vunpack.c.l.b16 %v4747
        %v4920 = vunpack.c.h.b16 %v4747
        %v4921 = vunpack.c.l.b16 %v4748
        %v4922 = vunpack.c.h.b16 %v4748
        %v4923 = vunpack.c.l.b16 %v4749
        %v4924 = vunpack.c.h.b16 %v4749
        %v4925 = vunpack.c.l.b16 %v4750
        %v4926 = vunpack.c.h.b16 %v4750
        %v4927 = vunpack.c.l.b16 %v4751
        %v4928 = vunpack.c.h.b16 %v4751
        %v4929 = vunpack.c.l.b16 %v4752
        %v4930 = vunpack.c.h.b16 %v4752
        %v4931 = vunpack.c.l.b16 %v4753
        %v4932 = vunpack.c.h.b16 %v4753
        %v4933 = vunpack.c.l.b16 %v4754
        %v4934 = vunpack.c.h.b16 %v4754
        %v4935 = vunpack.c.l.b16 %v4755
        %v4936 = vunpack.c.h.b16 %v4755
        %v4937 = vunpack.c.l.b16 %v4756
        %v4938 = vunpack.c.h.b16 %v4756
        %v4939 = vunpack.c.l.b16 %v4757
        %v4940 = vunpack.c.h.b16 %v4757
        %v4941 = vunpack.c.l.b16 %v4758
        %v4942 = vunpack.c.h.b16 %v4758
        %v4943 = vunpack.c.l.b16 %v4759
        %v4944 = vunpack.c.h.b16 %v4759
        %v4945 = vunpack.c.l.b16 %v4760
        %v4946 = vunpack.c.h.b16 %v4760
        %v4947 = vunpack.c.l.b16 %v4761
        %v4948 = vunpack.c.h.b16 %v4761
        %v4949 = vunpack.c.l.b16 %v4762
        %v4950 = vunpack.c.h.b16 %v4762
        %v4951 = vunpack.c.l.b16 %v4763
        %v4952 = vunpack.c.h.b16 %v4763
        %v4953 = vunpack.c.l.b16 %v4764
        %v4954 = vunpack.c.h.b16 %v4764
        %v4955 = vunpack.c.l.b16 %v4765
        %v4956 = vunpack.c.h.b16 %v4765
        %v4957 = vunpack.c.l.b16 %v4766
        %v4958 = vunpack.c.h.b16 %v4766
        %v4959 = vunpack.c.l.b16 %v4767
        %v4960 = vunpack.c.h.b16 %v4767
        %v4961 = vunpack.c.l.b16 %v4768
        %v4962 = vunpack.c.h.b16 %v4768
        %v4963 = vunpack.c.l.b16 %v4769
        %v4964 = vunpack.c.h.b16 %v4769
        %v4965 = vunpack.c.l.b16 %v4770
        %v4966 = vunpack.c.h.b16 %v4770
        %v4967 = vunpack.c.l.b16 %v4771
        %v4968 = vunpack.c.h.b16 %v4771
        %v4969 = vunpack.c.l.b16 %v4772
        %v4970 = vunpack.c.h.b16 %v4772
        %v4971 = vunpack.c.l.b16 %v4773
        %v4972 = vunpack.c.h.b16 %v4773
        %v4973 = vunpack.c.l.b16 %v4774
        %v4974 = vunpack.c.h.b16 %v4774
        %v4975 = vunpack.c.l.b16 %v4775
        %v4976 = vunpack.c.h.b16 %v4775
        %v4977 = vunpack.c.l.b16 %v4776
        %v4978 = vunpack.c.h.b16 %v4776
        %v4979 = vunpack.c.l.b16 %v4777
        %v4980 = vunpack.c.h.b16 %v4777
        %v4981 = vunpack.c.l.b16 %v4778
        %v4982 = vunpack.c.h.b16 %v4778
        %v4983 = vunpack.c.l.b16 %v4779
        %v4984 = vunpack.c.h.b16 %v4779
        %v4985 = vunpack.c.l.b16 %v4780
        %v4986 = vunpack.c.h.b16 %v4780
        %v4987 = vunpack.c.l.b16 %v4781
        %v4988 = vunpack.c.h.b16 %v4781
        %v4989 = vunpack.c.l.b16 %v4782
        %v4990 = vunpack.c.h.b16 %v4782
        %v4991 = vunpack.c.l.b16 %v4783
        %v4992 = vunpack.c.h.b16 %v4783
        %v4993 = vunpack.c.l.b16 %v4784
        %v4994 = vunpack.c.h.b16 %v4784
        %v4995 = vunpack.c.l.b16 %v4785
        %v4996 = vunpack.c.h.b16 %v4785
        %v4997 = vunpack.c.l.b16 %v4786
        %v4998 = vunpack.c.h.b16 %v4786
        %v4999 = vunpack.c.l.b16 %v4787
        %v5000 = vunpack.c.h.b16 %v4787
        %v5001 = vunpack.c.l.b16 %v4788
        %v5002 = vunpack.c.h.b16 %v4788
        %v5003 = vunpack.c.l.b16 %v4789
        %v5004 = vunpack.c.h.b16 %v4789
        %v5005 = vunpack.c.l.b16 %v4790
        %v5006 = vunpack.c.h.b16 %v4790
        %v5007 = vunpack.c.l.b16 %v4791
        %v5008 = vunpack.c.h.b16 %v4791
        %v5009 = vunpack.c.l.b16 %v4792
        %v5010 = vunpack.c.h.b16 %v4792
        %v5011 = vunpack.c.l.b16 %v4793
        %v5012 = vunpack.c.h.b16 %v4793
        %v5013 = vunpack.c.l.b16 %v4794
        %v5014 = vunpack.c.h.b16 %v4794
        %v5015 = vunpack.c.l.b16 %v4795
        %v5016 = vunpack.c.h.b16 %v4795
        %v5017 = vunpack.c.l.b16 %v4796
        %v5018 = vunpack.c.h.b16 %v4796
        %v5019 = vunpack.c.l.b16 %v4797
        %v5020 = vunpack.c.h.b16 %v4797
        %v5021 = vunpack.c.l.b16 %v4798
        %v5022 = vunpack.c.h.b16 %v4798
        %v5023 = vpack.c.b16 %v4899, %v4895
        %v5024 = vpack.c.b16 %v4900, %v4896
        %v5025 = vpack.c.b16 %v4901, %v4897
        %v5026 = vpack.c.b16 %v4902, %v4898
        %v5027 = vpack.c.b16 %v4907, %v4903
        %v5028 = vpack.c.b16 %v4908, %v4904
        %v5029 = vpack.c.b16 %v4909, %v4905
        %v5030 = vpack.c.b16 %v4910, %v4906
        %v5031 = vpack.c.b16 %v4915, %v4911
        %v5032 = vpack.c.b16 %v4916, %v4912
        %v5033 = vpack.c.b16 %v4917, %v4913
        %v5034 = vpack.c.b16 %v4918, %v4914
        %v5035 = vpack.c.b16 %v4923, %v4919
        %v5036 = vpack.c.b16 %v4924, %v4920
        %v5037 = vpack.c.b16 %v4925, %v4921
        %v5038 = vpack.c.b16 %v4926, %v4922
        %v5039 = vpack.c.b16 %v4931, %v4927
        %v5040 = vpack.c.b16 %v4932, %v4928
        %v5041 = vpack.c.b16 %v4933, %v4929
        %v5042 = vpack.c.b16 %v4934, %v4930
        %v5043 = vpack.c.b16 %v4939, %v4935
        %v5044 = vpack.c.b16 %v4940, %v4936
        %v5045 = vpack.c.b16 %v4941, %v4937
        %v5046 = vpack.c.b16 %v4942, %v4938
        %v5047 = vpack.c.b16 %v4947, %v4943
        %v5048 = vpack.c.b16 %v4948, %v4944
        %v5049 = vpack.c.b16 %v4949, %v4945
        %v5050 = vpack.c.b16 %v4950, %v4946
        %v5051 = vpack.c.b16 %v4955, %v4951
        %v5052 = vpack.c.b16 %v4956, %v4952
        %v5053 = vpack.c.b16 %v4957, %v4953
        %v5054 = vpack.c.b16 %v4958, %v4954
        %v5055 = vpack.c.b16 %v4963, %v4959
        %v5056 = vpack.c.b16 %v4964, %v4960
        %v5057 = vpack.c.b16 %v4965, %v4961
        %v5058 = vpack.c.b16 %v4966, %v4962
        %v5059 = vpack.c.b16 %v4971, %v4967
        %v5060 = vpack.c.b16 %v4972, %v4968
        %v5061 = vpack.c.b16 %v4973, %v4969
        %v5062 = vpack.c.b16 %v4974, %v4970
        %v5063 = vpack.c.b16 %v4979, %v4975
        %v5064 = vpack.c.b16 %v4980, %v4976
        %v5065 = vpack.c.b16 %v4981, %v4977
        %v5066 = vpack.c.b16 %v4982, %v4978
        %v5067 = vpack.c.b16 %v4987, %v4983
        %v5068 = vpack.c.b16 %v4988, %v4984
        %v5069 = vpack.c.b16 %v4989, %v4985
        %v5070 = vpack.c.b16 %v4990, %v4986
        %v5071 = vpack.c.b16 %v4995, %v4991
        %v5072 = vpack.c.b16 %v4996, %v4992
        %v5073 = vpack.c.b16 %v4997, %v4993
        %v5074 = vpack.c.b16 %v4998, %v4994
        %v5075 = vpack.c.b16 %v5003, %v4999
        %v5076 = vpack.c.b16 %v5004, %v5000
        %v5077 = vpack.c.b16 %v5005, %v5001
        %v5078 = vpack.c.b16 %v5006, %v5002
        %v5079 = vpack.c.b16 %v5011, %v5007
        %v5080 = vpack.c.b16 %v5012, %v5008
        %v5081 = vpack.c.b16 %v5013, %v5009
        %v5082 = vpack.c.b16 %v5014, %v5010
        %v5083 = vpack.c.b16 %v5019, %v5015
        %v5084 = vpack.c.b16 %v5020, %v5016
        %v5085 = vpack.c.b16 %v5021, %v5017
        %v5086 = vpack.c.b16 %v5022, %v5018
        %5151 = vmatprep.subr.bf16.mxu0 %v5052
        %5152 = vmatpush1.bf16.msra.mxu0 %v5051
        %5153 = vmatprep.subr.bf16.mxu0 %v5048
        %5154 = vmatpush1.bf16.msra.mxu0 %v5047
        %5155 = vmatprep.subr.bf16.mxu0 %v5044
        %5156 = vmatpush1.bf16.msra.mxu0 %v5043
        %5157 = vmatprep.subr.bf16.mxu0 %v5040
        %5158 = vmatpush1.bf16.msra.mxu0 %v5039
        %5159 = vmatprep.subr.bf16.mxu0 %v5036
        %5160 = vmatpush1.bf16.msra.mxu0 %v5035
        %5161 = vmatprep.subr.bf16.mxu0 %v5032
        %5162 = vmatpush1.bf16.msra.mxu0 %v5031
        %5163 = vmatprep.subr.bf16.mxu0 %v5028
        %5164 = vmatpush1.bf16.msra.mxu0 %v5027
        %5165 = vmatprep.subr.bf16.mxu0 %v5024
        %5166 = vmatpush1.bf16.msra.mxu0 %v5023
        %5167 = vmatprep.subr.bf16.mxu0 %v5084
        %5168 = vmatpush2.bf16.msra.mxu0 %v5083
        %5169 = vmatprep.subr.bf16.mxu0 %v5080
        %5170 = vmatpush2.bf16.msra.mxu0 %v5079
        %5171 = vmatprep.subr.bf16.mxu0 %v5076
        %5172 = vmatpush2.bf16.msra.mxu0 %v5075
        %5173 = vmatprep.subr.bf16.mxu0 %v5072
        %5174 = vmatpush2.bf16.msra.mxu0 %v5071
        %5175 = vmatprep.subr.bf16.mxu0 %v5068
        %5176 = vmatpush2.bf16.msra.mxu0 %v5067
        %5177 = vmatprep.subr.bf16.mxu0 %v5064
        %5178 = vmatpush2.bf16.msra.mxu0 %v5063
        %5179 = vmatprep.subr.bf16.mxu0 %v5060
        %5180 = vmatpush2.bf16.msra.mxu0 %v5059
        %5181 = vmatprep.subr.bf16.mxu0 %v5056
        %5182 = vmatpush2.bf16.msra.mxu0 %v5055
        %5183 = vmatprep.mubr.bf16.mxu0 %v4828
        %5184 = vmatmul.mubr.bf16.gmra.mxu0 %v4827
        %v5185 = vpop.f32.mrf.mxu0
        %v5186 = vadd.f32 %v4804, %v5185
        %v5187 = vpop.f32.mrf.mxu0
        %v5188 = vadd.f32 %v4808, %v5187
        %v5189 = vpop.f32.mrf.mxu0
        %v5190 = vadd.f32 %v4804, %v5189
        %v5191 = vpop.f32.mrf.mxu0
        %v5192 = vadd.f32 %v4808, %v5191
        %5193 = vdwg.mxu0
        %5194 = vmatprep.subr.bf16.mxu0 %v5054
        %5195 = vmatpush1.bf16.msra.mxu0 %v5053
        %5196 = vmatprep.subr.bf16.mxu0 %v5050
        %5197 = vmatpush1.bf16.msra.mxu0 %v5049
        %5198 = vmatprep.subr.bf16.mxu0 %v5046
        %5199 = vmatpush1.bf16.msra.mxu0 %v5045
        %5200 = vmatprep.subr.bf16.mxu0 %v5042
        %5201 = vmatpush1.bf16.msra.mxu0 %v5041
        %5202 = vmatprep.subr.bf16.mxu0 %v5038
        %5203 = vmatpush1.bf16.msra.mxu0 %v5037
        %5204 = vmatprep.subr.bf16.mxu0 %v5034
        %5205 = vmatpush1.bf16.msra.mxu0 %v5033
        %5206 = vmatprep.subr.bf16.mxu0 %v5030
        %5207 = vmatpush1.bf16.msra.mxu0 %v5029
        %5208 = vmatprep.subr.bf16.mxu0 %v5026
        %5209 = vmatpush1.bf16.msra.mxu0 %v5025
        %5210 = vmatprep.subr.bf16.mxu0 %v5086
        %5211 = vmatpush2.bf16.msra.mxu0 %v5085
        %5212 = vmatprep.subr.bf16.mxu0 %v5082
        %5213 = vmatpush2.bf16.msra.mxu0 %v5081
        %5214 = vmatprep.subr.bf16.mxu0 %v5078
        %5215 = vmatpush2.bf16.msra.mxu0 %v5077
        %5216 = vmatprep.subr.bf16.mxu0 %v5074
        %5217 = vmatpush2.bf16.msra.mxu0 %v5073
        %5218 = vmatprep.subr.bf16.mxu0 %v5070
        %5219 = vmatpush2.bf16.msra.mxu0 %v5069
        %5220 = vmatprep.subr.bf16.mxu0 %v5066
        %5221 = vmatpush2.bf16.msra.mxu0 %v5065
        %5222 = vmatprep.subr.bf16.mxu0 %v5062
        %5223 = vmatpush2.bf16.msra.mxu0 %v5061
        %5224 = vmatprep.subr.bf16.mxu0 %v5058
        %5225 = vmatpush2.bf16.msra.mxu0 %v5057
        %5226 = vmatprep.mubr.bf16.mxu0 %v4828
        %5227 = vmatmul.mubr.bf16.gmra.mxu0 %v4827
        %v5228 = vpop.f32.mrf.mxu0
        %v5229 = vadd.f32 %v4812, %v5228
        %v5230 = vpop.f32.mrf.mxu0
        %v5231 = vadd.f32 %v4816, %v5230
        %v5232 = vpop.f32.mrf.mxu0
        %v5233 = vadd.f32 %v4812, %v5232
        %v5234 = vpop.f32.mrf.mxu0
        %v5235 = vadd.f32 %v4816, %v5234
        %5236 = vdwg.mxu0
        %v5237 = vxor.u32 %v5186, 2147483648
        %v5238 = vxor.u32 %v5190, 2147483648
        %v5239 = vmul.f32 %v5237, 1.442695
        %v5240 = vpow.pop %v5239
        %v5241 = vmul.f32 %v5238, 1.442695
        %v5242 = vpow.pop %v5241
        %v5243 = vadd.f32 %v5240, 1.0
        %v5244 = vadd.f32 %v5242, 1.0
        %v5245 = vrcp.pop %v5243
        %v5246 = vmul.f32 1.0, %v5245
        %v5247 = vrcp.pop %v5244
        %v5248 = vmul.f32 1.0, %v5247
        %v5249 = vxor.u32 %v5188, 2147483648
        %v5250 = vxor.u32 %v5192, 2147483648
        %v5251 = vmul.f32 %v5249, 1.442695
        %v5252 = vpow.pop %v5251
        %v5253 = vmul.f32 %v5250, 1.442695
        %v5254 = vpow.pop %v5253
        %v5255 = vadd.f32 %v5252, 1.0
        %v5256 = vadd.f32 %v5254, 1.0
        %v5257 = vrcp.pop %v5255
        %v5258 = vmul.f32 1.0, %v5257
        %v5259 = vrcp.pop %v5256
        %v5260 = vmul.f32 1.0, %v5259
        %v5261 = vtanh.pop %v5229
        %v5262 = vtanh.pop %v5233
        %v5263 = vxor.u32 %v5231, 2147483648
        %v5264 = vxor.u32 %v5235, 2147483648
        %v5265 = vmul.f32 %v5263, 1.442695
        %v5266 = vpow.pop %v5265
        %v5267 = vmul.f32 %v5264, 1.442695
        %v5268 = vpow.pop %v5267
        %v5269 = vadd.f32 %v5266, 1.0
        %v5270 = vadd.f32 %v5268, 1.0
        %v5271 = vrcp.pop %v5269
        %v5272 = vmul.f32 1.0, %v5271
        %v5273 = vrcp.pop %v5270
        %v5274 = vmul.f32 1.0, %v5273
        %v5275 = vmul.f32 %v5258, %v4726
        %v5276 = vmul.f32 %v5260, %v4727
        %v5277 = vmul.f32 %v5246, %v5261
        %v5278 = vmul.f32 %v5248, %v5262
        %v5279 = vadd.f32 %v5275, %v5277
        %v5280 = vadd.f32 %v5276, %v5278
        %v5281 = vtanh.pop %v5279
        %v5282 = vtanh.pop %v5280
        %v5283 = vmul.f32 %v5272, %v5281
        %v5284 = vmul.f32 %v5274, %v5282
        %s5285 = scalar_lea.vmem %s447, 112 [#allocation5]
        %v5286 = vld [vmem:[%s5285] sm:$0xff]
        %v5287 = vld [vmem:[%s5285 + $0x8] sm:$0xff]
        %vm5288 = vcmp.ne.f32.partialorder %v5286, 0.0
        %vm5289 = vcmp.ne.f32.partialorder %v5287, 0.0
        %v5290 = vsel %vm5288, 1, 0
        %v5291 = vsel %vm5289, 1, 0
        %5292 = vset.pattern.permute.xlu0 0
        %5293 = vperm.xlu0 %5292, %v5290
        %v5294 = vpop.permute.xlu0 %5293
        %5295 = vset.pattern.permute.xlu0 0
        %5296 = vperm.xlu0 %5295, %v5291
        %v5297 = vpop.permute.xlu0 %5296
        %vm5298 = vcmp.eq.s32.totalorder %v5294, 1
        %vm5299 = vcmp.eq.s32.totalorder %v5297, 1
        %v5300 = vsel %vm5298, %v4724, %v5283
        %v5301 = vsel %vm5299, %v4725, %v5284
        %v5302 = vsel %vm5298, %v4726, %v5279
        %v5303 = vsel %vm5299, %v4727, %v5280
        %5304 = vst [vmem:[#allocation2] sm:$0xff] %v5300
        %5305 = vst [vmem:[#allocation2 + $0x8] sm:$0xff] %v5301
        %5306 = vst [vmem:[#allocation3] sm:$0xff] %v5302
        %5307 = vst [vmem:[#allocation3 + $0x8] sm:$0xff] %v5303
        %v5308 = vpack.c.bf16 %v5301, %v5300
        %v5310 = vunpack.c.l.b16 %v5308
        %v5311 = vunpack.c.h.b16 %v5308
        %v5312 = vpack.c.b16 %v5310, %v5310
        %v5313 = vpack.c.b16 %v5311, %v5311
        %5316 = vst [vmem:[#allocation4 + $0x4] sm:$0xf] %v5312
        %5317 = vst [vmem:[#allocation4 + $0xc] sm:$0xf] %v5313
        %s5318 = scalar_lea.vmem %s497, 112 [#allocation9]
        %5319 = vst [vmem:[%s5318] sm:$0xff] %v5300
        %5320 = vst [vmem:[%s5318 + $0x8] sm:$0xff] %v5301
        %v5321 = vld [vmem:[#allocation3] sm:$0xff]
        %v5322 = vld [vmem:[#allocation3 + $0x8] sm:$0xff]
        %5323 = vst [vmem:[%s504] sm:$0xff] %v5321
        %5324 = vst [vmem:[%s504 + $0x8] sm:$0xff] %v5322
        %s5325 = sand.u32 %s200, 1
        %s5326 = scalar_lea.sflag [#allocation8], %s5325
        %s5327 = sand.u32 %s200, 1
        %s5328 = smul.addr %s5327, 128
        %s5329 = scalar_lea.vmem [#allocation9], %s5328
        %s5330 = sand.u32 %s226, 1
        %s5331 = scalar_lea.sflag [#allocation11], %s5330
        %s5332 = sand.u32 %s226, 1
        %s5333 = smul.addr %s5332, 16
        %s5334 = scalar_lea.vmem [#allocation10], %s5333
        // Predicated region
        $region91: #{tpu_custom_call.1} parent=77 // pred_check
          %p5335 = pneg %p210
        $region92: #{tpu_custom_call.1} parent=77 // pred_check_branch
          %5337 = sbr.rel (%p5335) target = $region94
        $region93: #{tpu_custom_call.1} parent=77 // pred_region
          #allocation15 [shape = 'u32[6]{0}', space=smem, size = 0x18, scoped, tag = 'DMA stride descriptor']
          %s5338 = smul.u32 8, %s33
          %s5339 = smul.u32 2, %s32
          %s5341 = ssub.s32 2048, 2048
          %5342 = vsyncadd %s5326, %s5341
          %s5343 = smul.addr %s5338, 4
          %s5344 = sadd.s32 %s5339, %s5343
          %s5345 = smul.addr %s5344, 128
          %s5346 = scalar_lea.hbm %s6, %s5345
          %s5348 = sshll.u32 1, 14
          %s5349 = sxor.u32 4294967295, %s5348
          %s5352 = sshll.u32 7, 18
          %s5353 = sxor.u32 4294967295, %s5352
          %s5354 = sand.u32 0, %s5353
          %s5356 = sor.u32 %s5354, 0
          %s5357 = sshll.u32 %s5329, 4
          %s5358 = int_to_ptr.vmem [resolvable:$true] %s5357
          %5364 = sst [smem:[#allocation15]] 256
          %s5365 = scalar_lea.smem [#allocation15], 1
          %5366 = sst [smem:[%s5365]] 512
          %s5367 = scalar_lea.smem [#allocation15], 2
          %5368 = sst [smem:[%s5367]] 2
          %s5369 = scalar_lea.smem [#allocation15], 3
          %5370 = sst [smem:[%s5369]] 128
          %s5371 = scalar_lea.smem [#allocation15], 4
          %5372 = sst [smem:[%s5371]] 128
          %s5373 = scalar_lea.smem [#allocation15], 5
          %5374 = sst [smem:[%s5373]] 8
          %5376 = dma.general %s5358, 2048, %s5346, %s5326, 131072, [#allocation15], %s5356, 0
        $region94: #{tpu_custom_call.1} parent=77 // pred_fallthru
          _
        // Predicated region
        $region95: #{tpu_custom_call.1} parent=77 // pred_check
          %p5377 = pneg %p236
        $region96: #{tpu_custom_call.1} parent=77 // pred_check_branch
          %5379 = sbr.rel (%p5377) target = $region98
        $region97: #{tpu_custom_call.1} parent=77 // pred_region
          %s5380 = smul.u32 2, %s32
          %s5382 = ssub.s32 256, 256
          %5383 = vsyncadd %s5331, %s5382
          %s5384 = smul.addr %s5380, 128
          %s5385 = scalar_lea.hbm %s7, %s5384
          %s5386 = sshll.u32 %s5334, 4
          %s5387 = int_to_ptr.vmem [resolvable:$true] %s5386
          %5392 = dma.vmem_to_hbm [thread:$0]  %s5387, 256, %s5385, %s5331, 128, 128, 8
        $region98: #{tpu_custom_call.1} parent=77 // pred_fallthru
          _
      $region78: #{tpu_custom_call.1} parent=5 // pred_fallthru
        _
      %p5393 = scmp.le.s32.totalorder 2, %s23
      // Predicated region
      $region99: #{tpu_custom_call.1} parent=5 // pred_check
        %p5394 = pneg %p5393
      $region100: #{tpu_custom_call.1} parent=5 // pred_check_branch
        %5396 = sbr.rel (%p5394) target = $region102
      $region101: #{tpu_custom_call.1} parent=5 // pred_region
        %s5397 = ssub.s32 %s23, 2
        // Predicated region
        $region103: #{tpu_custom_call.1} parent=101 // pred_check
          %p5398 = pneg %p216
        $region104: #{tpu_custom_call.1} parent=101 // pred_check_branch
          %5400 = sbr.rel (%p5398) target = $region106
        $region105: #{tpu_custom_call.1} parent=101 // pred_region
          %s5401 = sand.u32 %s201, 1
          %s5402 = scalar_lea.sflag [#allocation8], %s5401
          %s5403 = sand.u32 %s201, 1
          %s5404 = smul.addr %s5403, 128
          %s5405 = scalar_lea.vmem [#allocation9], %s5404
          %5406 = dma.done %s5402, 2048
        $region106: #{tpu_custom_call.1} parent=101 // pred_fallthru
          _
        // Predicated region
        $region107: #{tpu_custom_call.1} parent=101 // pred_check
          %p5407 = pneg %p242
        $region108: #{tpu_custom_call.1} parent=101 // pred_check_branch
          %5409 = sbr.rel (%p5407) target = $region110
        $region109: #{tpu_custom_call.1} parent=101 // pred_region
          %s5410 = sand.u32 %s227, 1
          %s5411 = scalar_lea.sflag [#allocation11], %s5410
          %s5412 = sand.u32 %s227, 1
          %s5413 = smul.addr %s5412, 16
          %s5414 = scalar_lea.vmem [#allocation10], %s5413
          %5415 = dma.done %s5411, 256
        $region110: #{tpu_custom_call.1} parent=101 // pred_fallthru
          _
      $region102: #{tpu_custom_call.1} parent=5 // pred_fallthru
        _
    $region6: #{tpu_custom_call.1} parent=1 // loop_footer
      %s27 = sadd.s32 1, %s23
    $region7: #{tpu_custom_call.1} parent=1 // loop_footer_branch
      %22 = sbr.rel target = $region3
    $region8: #{tpu_custom_call.1} parent=1 // loop_exit
      _
    %5416 = vsyncpa [#allocation7], 1
    %s5417 = scalar_lea.sflag [#allocation7], 1
    %5418 = vsyncpa %s5417, 1
    %5419 = vsyncpa [#allocation8], 1
    %s5420 = scalar_lea.sflag [#allocation8], 1
    %5421 = vsyncpa %s5420, 1
    %5422 = vsyncpa [#allocation11], 1
    %s5423 = scalar_lea.sflag [#allocation11], 1
    %5424 = vsyncpa %s5423, 1

</llo_original>
